<compile_context>
chip_gen: v5e
topology: v5e:2x2
jax: 0.10.0
libtpu: 0.0.40
codegen_flags: <defaults>
</compile_context>

<pallas_src>
import functools
import math

import numpy as np
import jax
import jax.numpy as jnp
from jax import lax
from jax.experimental import pallas as pl
from jax.experimental.pallas import tpu as pltpu

# ---------------- configuration (small synthetic shapes) ----------------
B = 2
PATCH = 8
TEMPLATE_SZ = 16                      # -> 2x2 = 4 template tokens
SEARCH_SZ = 32                        # -> 4x4 = 16 search tokens
D = 32                                # embed dim
MLP_H = 64
FEAT_SZ = SEARCH_SZ // PATCH          # box_head.feat_sz = 4
FEAT_LEN = FEAT_SZ * FEAT_SZ          # feat_len_s = 16
N_Z = (TEMPLATE_SZ // PATCH) ** 2     # 4
N_X = FEAT_LEN                        # 16
N_TOK = 2 * (N_Z + N_X)               # 40 tokens per batch: [z, event_z, x, event_x]
C_HEAD = 2 * D                        # 64  box-head input channels
HEAD_C1 = 64                          # conv1 combined output channels (32 tl + 32 br)
HEAD_C2 = 32                          # conv2 combined output channels (16 tl + 16 br)
HP = FEAT_SZ + 2                      # 6   vertically zero-padded height

LN_EPS = 1e-6                         # timm ViT LayerNorm eps (torch default is 1e-5)
ATTN_SCALE = 1.0 / math.sqrt(D)

_VMEM = pl.BlockSpec(memory_space=pltpu.MemorySpace.VMEM)
_BF16 = jnp.bfloat16
_F32 = jnp.float32


# ------------------------------------------------------------------------
# Fused backbone kernel (single pallas_call, no grid, everything in VMEM)
# ------------------------------------------------------------------------
def _backbone_kernel(patch_ref, pos_ref, pw_ref, pb_ref,
                     g1_ref, be1_ref, wqkv_ref, bqkv_ref, wo_ref, bo_ref,
                     g2_ref, be2_ref, w1_ref, b1_ref, w2_ref, b2_ref,
                     feat_ref, *, nb):
    def mm(x_f32, w_ref, b_ref):
        # bf16 MXU inputs, f32 accumulation, f32 bias add.
        return jnp.dot(x_f32.astype(_BF16), w_ref[...],
                       preferred_element_type=_F32) + b_ref[...]

    def ln(x, g_ref, b_ref):
        mu = jnp.mean(x, axis=-1, keepdims=True)
        var = jnp.mean((x - mu) ** 2, axis=-1, keepdims=True)
        return (x - mu) * lax.rsqrt(var + LN_EPS) * g_ref[...] + b_ref[...]

    # patch embedding + learned positional embedding
    tok = mm(patch_ref[...], pw_ref, pb_ref) + pos_ref[...]          # (nb*N_TOK, D) f32

    # --- pre-LN single-head attention block (fused QKV projection) ---
    h1 = ln(tok, g1_ref, be1_ref)
    qkv = mm(h1, wqkv_ref, bqkv_ref)                                 # (nb*N_TOK, 3D)
    q = qkv[:, 0:D] * ATTN_SCALE                                     # fold 1/sqrt(d) into q
    k = qkv[:, D:2 * D]
    v = qkv[:, 2 * D:3 * D]

    outs = []
    for b in range(nb):                                              # static B=2 loop
        lo, hi = b * N_TOK, (b + 1) * N_TOK
        qb = q[lo:hi, :].astype(_BF16)
        kb = k[lo:hi, :].astype(_BF16)
        vb = v[lo:hi, :].astype(_BF16)
        s = lax.dot_general(qb, kb, (((1,), (1,)), ((), ())),
                            preferred_element_type=_F32)             # (N_TOK, N_TOK)
        s = s - jnp.max(s, axis=-1, keepdims=True)
        e = jnp.exp(s)
        p = e * pl.reciprocal(jnp.sum(e, axis=-1, keepdims=True), approx=True)
        outs.append(jnp.dot(p.astype(_BF16), vb, preferred_element_type=_F32))
    attn = jnp.concatenate(outs, axis=0)                             # (nb*N_TOK, D)

    tok = tok + mm(attn, wo_ref, bo_ref)

    # --- pre-LN MLP block ---
    h2 = ln(tok, g2_ref, be2_ref)
    m = jnp.maximum(mm(h2, w1_ref, b1_ref), 0.0)
    tok = tok + mm(m, w2_ref, b2_ref)

    # keep only the search tokens of each batch element:
    # token order is [z(4), event_z(4), x(16), event_x(16)], so rows
    # [2*N_Z, N_TOK) give [rgb-search, event-search] (8-aligned slice).
    for b in range(nb):
        feat_ref[b, :, :] = tok[b * N_TOK + 2 * N_Z:(b + 1) * N_TOK, :]


def patchify(img):
    """img: (B, 3, H, W) NCHW -> (B, (H/P)*(W/P), 3*P*P).  Pure layout."""
    b, c, h, w = img.shape
    x = img.reshape(b, c, h // PATCH, PATCH, w // PATCH, PATCH)
    x = jnp.transpose(x, (0, 2, 4, 1, 3, 5))
    return x.reshape(b, (h // PATCH) * (w // PATCH), c * PATCH * PATCH)


def backbone_forward(kp, template, search, event_template, event_search):
    """Synthetic CE transformer backbone -> (B, 2*feat_len_s, D) search tokens."""
    bsz = template.shape[0]
    patches = jnp.concatenate(
        [patchify(template), patchify(event_template),
         patchify(search), patchify(event_search)], axis=1)          # (B, N_TOK, 3*P*P)
    flat = patches.reshape(bsz * N_TOK, 3 * PATCH * PATCH)
    pos = jnp.broadcast_to(kp['pos'], (bsz, N_TOK, D)).reshape(bsz * N_TOK, D)

    feat = pl.pallas_call(
        functools.partial(_backbone_kernel, nb=bsz),
        out_shape=jax.ShapeDtypeStruct((bsz, 2 * FEAT_LEN, D), _F32),
        in_specs=[_VMEM] * 16,
        out_specs=_VMEM,
    )(flat, pos, kp['patch_w'], kp['patch_b'],
      kp['ln1_g'], kp['ln1_b'], kp['w_qkv'], kp['b_qkv'], kp['wo'], kp['bo'],
      kp['ln2_g'], kp['ln2_b'], kp['w1'], kp['b1'], kp['w2'], kp['b2'])
    return feat, {}


# ------------------------------------------------------------------------
# Fused corner box-head kernel (convs as banded matmuls + soft-argmax)
# ------------------------------------------------------------------------
def _box_head_kernel(x_ref, a1_ref, b1_ref, a2_ref, b2_ref,
                     a3t_ref, b3t_ref, a3b_ref, b3b_ref,
                     box_ref, smap_ref, pad_a, pad_b, *, nb):
    # soft-argmax coordinate grids built in-kernel (no extra input DMAs)
    ix = lax.broadcasted_iota(jnp.int32, (FEAT_SZ, FEAT_SZ), 1).astype(_F32)
    iy = lax.broadcasted_iota(jnp.int32, (FEAT_SZ, FEAT_SZ), 0).astype(_F32)
    coord_x = (ix + 0.5) * (1.0 / FEAT_SZ)
    coord_y = (iy + 0.5) * (1.0 / FEAT_SZ)

    a1 = a1_ref[...]            # (3*4*64, 256) bf16
    a2 = a2_ref[...]            # (3*4*64, 128) bf16
    a3t = a3t_ref[...]          # (3*4*32, 4)   bf16
    a3b = a3b_ref[...]

    # zero the vertically-padded scratch maps once; interiors overwritten below
    pad_a[...] = jnp.zeros(pad_a.shape, pad_a.dtype)
    pad_b[...] = jnp.zeros(pad_b.shape, pad_b.dtype)

    def conv_rows(src_ref, base):
        # 3 vertically shifted row blocks of the padded map, lane-concatenated
        return jnp.concatenate(
            [src_ref[base + di:base + di + FEAT_SZ, :] for di in range(3)], axis=1)

    def fullmax(s):
        return jnp.max(jnp.max(s, axis=1, keepdims=True), axis=0, keepdims=True)

    def fullsum(s):
        return jnp.sum(jnp.sum(s, axis=1, keepdims=True), axis=0, keepdims=True)

    def softmax2d(s):
        e = jnp.exp(s - fullmax(s))
        return e * pl.reciprocal(fullsum(e), approx=True)

    for b in range(nb):                                              # static B=2 loop
        base = b * HP

        # conv1 (tl & br fused along output channels) + ReLU
        r1 = conv_rows(x_ref, base).astype(_BF16)                    # (4, 768)
        y1 = jnp.dot(r1, a1, preferred_element_type=_F32) + b1_ref[...]
        y1 = jnp.maximum(y1, 0.0)                                    # (4, 4*64)
        pad_a[base + 1:base + 1 + FEAT_SZ, :] = y1

        # conv2 (block-diagonal tl/br) + ReLU
        r2 = conv_rows(pad_a, base).astype(_BF16)                    # (4, 768)
        y2 = jnp.dot(r2, a2, preferred_element_type=_F32) + b2_ref[...]
        y2 = jnp.maximum(y2, 0.0)                                    # (4, 4*32)
        pad_b[base + 1:base + 1 + FEAT_SZ, :] = y2

        # conv3 -> (4, 4) score maps (rows=h, cols=w) per branch
        r3 = conv_rows(pad_b, base).astype(_BF16)                    # (4, 384)
        s_tl = jnp.dot(r3, a3t, preferred_element_type=_F32) + b3t_ref[...]
        s_br = jnp.dot(r3, a3b, preferred_element_type=_F32) + b3b_ref[...]

        p_tl = softmax2d(s_tl)
        p_br = softmax2d(s_br)
        smap_ref[b, 0, :, :] = p_tl
        smap_ref[b, 1, :, :] = p_br

        x_tl = fullsum(p_tl * coord_x)
        y_tl = fullsum(p_tl * coord_y)
        x_br = fullsum(p_br * coord_x)
        y_br = fullsum(p_br * coord_y)
        # xyxy -> cxcywh (folded into the kernel)
        row = jnp.concatenate([(x_tl + x_br) * 0.5, (y_tl + y_br) * 0.5,
                               x_br - x_tl, y_br - y_tl], axis=1)    # (1, 4)
        box_ref[b:b + 1, :] = row


def forward_head(kp, cat_feature):
    """Exact CEUTrack.forward_head semantics (CORNER head)."""
    bsz = cat_feature.shape[0]
    # --- pure layout glue: enc_opt1/enc_opt2 cat + permute/reshape to NHWC ---
    enc_opt = jnp.concatenate(
        [cat_feature[:, FEAT_LEN:, :], cat_feature[:, :FEAT_LEN, :]], axis=-1)  # (B,16,2C)
    x0 = enc_opt.reshape(bsz, FEAT_SZ, FEAT_SZ, C_HEAD)                          # NHWC
    xp = jnp.pad(x0, ((0, 0), (1, 1), (0, 0), (0, 0)))                           # vertical zero pad
    x2d = xp.reshape(bsz * HP, FEAT_SZ * C_HEAD)                                 # (B*6, 256)

    box, smap = pl.pallas_call(
        functools.partial(_box_head_kernel, nb=bsz),
        out_shape=(jax.ShapeDtypeStruct((bsz, 4), _F32),
                   jax.ShapeDtypeStruct((bsz, 2, FEAT_SZ, FEAT_SZ), _F32)),
        in_specs=[_VMEM] * 9,
        out_specs=(_VMEM, _VMEM),
        scratch_shapes=[pltpu.VMEM((bsz * HP, FEAT_SZ * HEAD_C1), _F32),
                        pltpu.VMEM((bsz * HP, FEAT_SZ * HEAD_C2), _F32)],
    )(x2d, kp['A1'], kp['b1v'], kp['A2'], kp['b2v'],
      kp['A3t'], kp['b3t'], kp['A3b'], kp['b3b'])

    return {'pred_boxes': box.reshape(bsz, 1, 4), 'score_map': smap}


# ------------------------------------------------------------------------
# Composed forward (jitted)
# ------------------------------------------------------------------------
def where(cond, x, y):
    """Mirror of the PyTorch helper: cond*x + (1-cond)*y (unused in forward)."""
    c = cond.astype(_F32)
    return c * x + (1.0 - c) * y


@jax.jit
def _ceutrack_forward_jit(kp, template, search, event_template, event_search):
    x, aux_dict = backbone_forward(kp, template, search, event_template, event_search)
    feat_last = x
    out = forward_head(kp, feat_last)
    out.update(aux_dict)
    out['backbone_feat'] = x
    return out


def ceutrack_forward(kp, template, search, event_template, event_search,
                     ce_template_mask=None, ce_keep_rate=None, return_last_attn=False):
    # TODO(synk): candidate-elimination masking (ce_template_mask / ce_keep_rate /
    # return_last_attn) has no effect in this synthetic backbone.
    return _ceutrack_forward_jit(kp, template, search, event_template, event_search)


# ------------------------------------------------------------------------
# Parameters: deterministic init (torch-style layout) + kernel-ready prep
# ------------------------------------------------------------------------
def init_params(key):
    keys = iter(jax.random.split(key, 24))

    def nrm(shape, scale=0.02):
        return scale * jax.random.normal(next(keys), shape, _F32)

    p = {}
    p['patch_w'] = nrm((3 * PATCH * PATCH, D)); p['patch_b'] = jnp.zeros((1, D), _F32)
    p['pos'] = nrm((1, N_TOK, D))
    p['ln1_g'] = jnp.ones((1, D), _F32); p['ln1_b'] = jnp.zeros((1, D), _F32)
    for name in ('wq', 'wk', 'wv', 'wo'):
        p[name] = nrm((D, D))
    for name in ('bq', 'bk', 'bv', 'bo'):
        p[name] = jnp.zeros((1, D), _F32)
    p['ln2_g'] = jnp.ones((1, D), _F32); p['ln2_b'] = jnp.zeros((1, D), _F32)
    p['w1'] = nrm((D, MLP_H)); p['b1'] = jnp.zeros((1, MLP_H), _F32)
    p['w2'] = nrm((MLP_H, D)); p['b2'] = jnp.zeros((1, D), _F32)
    for pfx in ('tl_', 'br_'):
        p[pfx + 'w1'] = nrm((32, C_HEAD, 3, 3)); p[pfx + 'b1'] = jnp.zeros((32,), _F32)
        p[pfx + 'w2'] = nrm((16, 32, 3, 3));     p[pfx + 'b2'] = jnp.zeros((16,), _F32)
        p[pfx + 'w3'] = nrm((1, 16, 3, 3));      p[pfx + 'b3'] = jnp.zeros((1,), _F32)
    # nn.Parameter noise from __init__ (unused in forward, kept for fidelity)
    p['noise'] = jnp.zeros((1, 3, 256, 256), _F32)
    # TODO(synk): Att_SGD optimizer and forward_attck_rgb_event_frame_sequce rely on
    # autograd + in-place parameter updates; not part of the forward pass, not ported.
    return p


def _build_banded_conv(entries, cin_tot, cout_tot):
    """Lower 3x3 'same' convs (torch OIHW weights) onto a banded matmul matrix.

    A[di*W*cin_tot + win*cin_tot + cin, w*cout_tot + cout] = W[cout, cin, di, dj]
    with win = w + dj - 1 (rows for out-of-range horizontal taps are absent,
    which implements the left/right zero padding implicitly)."""
    W = FEAT_SZ
    A = np.zeros((3 * W * cin_tot, W * cout_tot), np.float32)
    for w_t, cin_off, cout_off in entries:
        w_np = np.asarray(w_t)                      # (Cout_i, Cin_i, 3, 3)
        co, ci = w_np.shape[0], w_np.shape[1]
        for di in range(3):
            for dj in range(3):
                for w in range(W):
                    win = w + dj - 1
                    if 0 <= win < W:
                        r = di * W * cin_tot + win * cin_tot + cin_off
                        c = w * cout_tot + cout_off
                        A[r:r + ci, c:c + co] = w_np[:, :, di, dj].T
    return A


def prepare_kernel_params(p):
    """One-time host-side reparameterization into kernel-friendly arrays."""
    kp = {
        'pos': p['pos'],
        'patch_w': p['patch_w'].astype(_BF16), 'patch_b': p['patch_b'],
        'ln1_g': p['ln1_g'], 'ln1_b': p['ln1_b'],
        'ln2_g': p['ln2_g'], 'ln2_b': p['ln2_b'],
        # fused QKV projection (one (D, 3D) matmul instead of three)
        'w_qkv': jnp.concatenate([p['wq'], p['wk'], p['wv']], axis=1).astype(_BF16),
        'b_qkv': jnp.concatenate([p['bq'], p['bk'], p['bv']], axis=1),
        'wo': p['wo'].astype(_BF16), 'bo': p['bo'],
        'w1': p['w1'].astype(_BF16), 'b1': p['b1'],
        'w2': p['w2'].astype(_BF16), 'b2': p['b2'],
    }
    # corner head: conv1 fuses tl/br outputs (shared input), conv2 is
    # block-diagonal, conv3 stays per-branch so the soft-argmax maps come out
    # as clean (4, 4) blocks.
    A1 = _build_banded_conv([(p['tl_w1'], 0, 0), (p['br_w1'], 0, HEAD_C1 // 2)],
                            C_HEAD, HEAD_C1)
    A2 = _build_banded_conv([(p['tl_w2'], 0, 0),
                             (p['br_w2'], HEAD_C1 // 2, HEAD_C2 // 2)],
                            HEAD_C1, HEAD_C2)
    A3t = _build_banded_conv([(p['tl_w3'], 0, 0)], HEAD_C2, 1)
    A3b = _build_banded_conv([(p['br_w3'], HEAD_C2 // 2, 0)], HEAD_C2, 1)
    kp['A1'] = jnp.asarray(A1).astype(_BF16)
    kp['A2'] = jnp.asarray(A2).astype(_BF16)
    kp['A3t'] = jnp.asarray(A3t).astype(_BF16)
    kp['A3b'] = jnp.asarray(A3b).astype(_BF16)
    kp['b1v'] = jnp.tile(jnp.concatenate([p['tl_b1'], p['br_b1']]),
                         FEAT_SZ).reshape(1, FEAT_SZ * HEAD_C1)
    kp['b2v'] = jnp.tile(jnp.concatenate([p['tl_b2'], p['br_b2']]),
                         FEAT_SZ).reshape(1, FEAT_SZ * HEAD_C2)
    kp['b3t'] = jnp.full((1, FEAT_SZ), p['tl_b3'][0], _F32)
    kp['b3b'] = jnp.full((1, FEAT_SZ), p['br_b3'][0], _F32)
    return kp


if __name__ == "__main__":
    ikey = jax.random.PRNGKey(0)
    k1, k2, k3, k4 = jax.random.split(ikey, 4)
    template = jax.random.normal(k1, (B, 3, TEMPLATE_SZ, TEMPLATE_SZ), _F32)
    search = jax.random.normal(k2, (B, 3, SEARCH_SZ, SEARCH_SZ), _F32)
    event_template = jax.random.normal(k3, (B, 3, TEMPLATE_SZ, TEMPLATE_SZ), _F32)
    event_search = jax.random.normal(k4, (B, 3, SEARCH_SZ, SEARCH_SZ), _F32)

    params = init_params(jax.random.PRNGKey(42))
    kparams = prepare_kernel_params(params)

    out = ceutrack_forward(kparams, template, search, event_template, event_search)
    jax.block_until_ready(out['pred_boxes'])
    jax.block_until_ready(out['score_map'])
    jax.block_until_ready(out['backbone_feat'])

    assert out['pred_boxes'].shape == (B, 1, 4)
    assert out['score_map'].shape == (B, 2, FEAT_SZ, FEAT_SZ)
    assert out['backbone_feat'].shape == (B, 2 * FEAT_LEN, D)
    assert bool(jnp.all(jnp.isfinite(out['pred_boxes'])))
    print("KERNEL_OK")
</pallas_src>

<mosaic_0001>
module attributes {stable_mosaic.version = 11 : i64} {
  func.func @_backbone_kernel(%arg0: memref<80x192xf32, #tpu.memory_space<vmem>>, %arg1: memref<80x32xf32, #tpu.memory_space<vmem>>, %arg2: memref<192x32xbf16, #tpu.memory_space<vmem>>, %arg3: memref<1x32xf32, #tpu.memory_space<vmem>>, %arg4: memref<1x32xf32, #tpu.memory_space<vmem>>, %arg5: memref<1x32xf32, #tpu.memory_space<vmem>>, %arg6: memref<32x96xbf16, #tpu.memory_space<vmem>>, %arg7: memref<1x96xf32, #tpu.memory_space<vmem>>, %arg8: memref<32x32xbf16, #tpu.memory_space<vmem>>, %arg9: memref<1x32xf32, #tpu.memory_space<vmem>>, %arg10: memref<1x32xf32, #tpu.memory_space<vmem>>, %arg11: memref<1x32xf32, #tpu.memory_space<vmem>>, %arg12: memref<32x64xbf16, #tpu.memory_space<vmem>>, %arg13: memref<1x64xf32, #tpu.memory_space<vmem>>, %arg14: memref<64x32xbf16, #tpu.memory_space<vmem>>, %arg15: memref<1x32xf32, #tpu.memory_space<vmem>>, %arg16: memref<2x32x32xf32, #tpu.memory_space<vmem>>) attributes {dimension_semantics = [], scalar_prefetch = 0 : i64, scratch_operands = 0 : i64, tpu.core_type = #tpu.core_type<tc>} {
    %c0 = arith.constant 0 : index
    %c0_0 = arith.constant 0 : index
    %0 = vector.load %arg0[%c0, %c0_0] : memref<80x192xf32, #tpu.memory_space<vmem>>, vector<80x192xf32>
    %1 = arith.truncf %0 : vector<80x192xf32> to vector<80x192xbf16>
    %c0_1 = arith.constant 0 : index
    %c0_2 = arith.constant 0 : index
    %2 = vector.load %arg2[%c0_1, %c0_2] : memref<192x32xbf16, #tpu.memory_space<vmem>>, vector<192x32xbf16>
    %cst = arith.constant dense<0.000000e+00> : vector<80x32xf32>
    %3 = tpu.matmul %1, %2, %cst {dimension_numbers = #tpu.dot_dimension_numbers<[1], [0], [0], [1], [0, 0, 1, 1], [], []>} : vector<80x192xbf16>, vector<192x32xbf16>, vector<80x32xf32> -> vector<80x32xf32>
    %c0_3 = arith.constant 0 : index
    %c0_4 = arith.constant 0 : index
    %4 = vector.load %arg3[%c0_3, %c0_4] : memref<1x32xf32, #tpu.memory_space<vmem>>, vector<1x32xf32>
    %5 = vector.broadcast %4 : vector<1x32xf32> to vector<80x32xf32>
    %6 = arith.addf %3, %5 : vector<80x32xf32>
    %c0_5 = arith.constant 0 : index
    %c0_6 = arith.constant 0 : index
    %7 = vector.load %arg1[%c0_5, %c0_6] : memref<80x32xf32, #tpu.memory_space<vmem>>, vector<80x32xf32>
    %8 = arith.addf %6, %7 : vector<80x32xf32>
    %cst_7 = arith.constant dense<0.000000e+00> : vector<80xf32>
    %9 = vector.multi_reduction <add>, %8, %cst_7 [1] : vector<80x32xf32> to vector<80xf32>
    %10 = vector.shape_cast %9 : vector<80xf32> to vector<80x1xf32>
    %cst_8 = arith.constant 3.200000e+01 : f32
    %11 = vector.broadcast %cst_8 : f32 to vector<80x1xf32>
    %12 = arith.divf %10, %11 : vector<80x1xf32>
    %13 = vector.broadcast %12 : vector<80x1xf32> to vector<80x32xf32>
    %14 = arith.subf %8, %13 : vector<80x32xf32>
    %15 = arith.mulf %14, %14 : vector<80x32xf32>
    %cst_9 = arith.constant dense<0.000000e+00> : vector<80xf32>
    %16 = vector.multi_reduction <add>, %15, %cst_9 [1] : vector<80x32xf32> to vector<80xf32>
    %17 = vector.shape_cast %16 : vector<80xf32> to vector<80x1xf32>
    %cst_10 = arith.constant 3.200000e+01 : f32
    %18 = vector.broadcast %cst_10 : f32 to vector<80x1xf32>
    %19 = arith.divf %17, %18 : vector<80x1xf32>
    %20 = vector.broadcast %12 : vector<80x1xf32> to vector<80x32xf32>
    %21 = arith.subf %8, %20 : vector<80x32xf32>
    %cst_11 = arith.constant 9.99999997E-7 : f32
    %22 = vector.broadcast %cst_11 : f32 to vector<80x1xf32>
    %23 = arith.addf %19, %22 : vector<80x1xf32>
    %24 = math.rsqrt %23 : vector<80x1xf32>
    %25 = vector.broadcast %24 : vector<80x1xf32> to vector<80x32xf32>
    %26 = arith.mulf %21, %25 : vector<80x32xf32>
    %c0_12 = arith.constant 0 : index
    %c0_13 = arith.constant 0 : index
    %27 = vector.load %arg4[%c0_12, %c0_13] : memref<1x32xf32, #tpu.memory_space<vmem>>, vector<1x32xf32>
    %28 = vector.broadcast %27 : vector<1x32xf32> to vector<80x32xf32>
    %29 = arith.mulf %26, %28 : vector<80x32xf32>
    %c0_14 = arith.constant 0 : index
    %c0_15 = arith.constant 0 : index
    %30 = vector.load %arg5[%c0_14, %c0_15] : memref<1x32xf32, #tpu.memory_space<vmem>>, vector<1x32xf32>
    %31 = vector.broadcast %30 : vector<1x32xf32> to vector<80x32xf32>
    %32 = arith.addf %29, %31 : vector<80x32xf32>
    %33 = arith.truncf %32 : vector<80x32xf32> to vector<80x32xbf16>
    %c0_16 = arith.constant 0 : index
    %c0_17 = arith.constant 0 : index
    %34 = vector.load %arg6[%c0_16, %c0_17] : memref<32x96xbf16, #tpu.memory_space<vmem>>, vector<32x96xbf16>
    %cst_18 = arith.constant dense<0.000000e+00> : vector<80x96xf32>
    %35 = tpu.matmul %33, %34, %cst_18 {dimension_numbers = #tpu.dot_dimension_numbers<[1], [0], [0], [1], [0, 0, 1, 1], [], []>} : vector<80x32xbf16>, vector<32x96xbf16>, vector<80x96xf32> -> vector<80x96xf32>
    %c0_19 = arith.constant 0 : index
    %c0_20 = arith.constant 0 : index
    %36 = vector.load %arg7[%c0_19, %c0_20] : memref<1x96xf32, #tpu.memory_space<vmem>>, vector<1x96xf32>
    %37 = vector.broadcast %36 : vector<1x96xf32> to vector<80x96xf32>
    %38 = arith.addf %35, %37 : vector<80x96xf32>
    %39 = vector.extract_strided_slice %38 {offsets = [0, 0], sizes = [80, 32], strides = [1, 1]} : vector<80x96xf32> to vector<80x32xf32>
    %cst_21 = arith.constant 0.176776692 : f32
    %40 = vector.broadcast %cst_21 : f32 to vector<80x32xf32>
    %41 = arith.mulf %39, %40 : vector<80x32xf32>
    %42 = vector.extract_strided_slice %38 {offsets = [0, 32], sizes = [80, 32], strides = [1, 1]} : vector<80x96xf32> to vector<80x32xf32>
    %43 = vector.extract_strided_slice %38 {offsets = [0, 64], sizes = [80, 32], strides = [1, 1]} : vector<80x96xf32> to vector<80x32xf32>
    %44 = vector.extract_strided_slice %41 {offsets = [0, 0], sizes = [40, 32], strides = [1, 1]} : vector<80x32xf32> to vector<40x32xf32>
    %45 = arith.truncf %44 : vector<40x32xf32> to vector<40x32xbf16>
    %46 = vector.extract_strided_slice %42 {offsets = [0, 0], sizes = [40, 32], strides = [1, 1]} : vector<80x32xf32> to vector<40x32xf32>
    %47 = arith.truncf %46 : vector<40x32xf32> to vector<40x32xbf16>
    %48 = vector.extract_strided_slice %43 {offsets = [0, 0], sizes = [40, 32], strides = [1, 1]} : vector<80x32xf32> to vector<40x32xf32>
    %49 = arith.truncf %48 : vector<40x32xf32> to vector<40x32xbf16>
    %cst_22 = arith.constant dense<0.000000e+00> : vector<40x40xf32>
    %50 = tpu.matmul %45, %47, %cst_22 {dimension_numbers = #tpu.dot_dimension_numbers<[1], [1], [0], [0], [0, 0, 1, 0], [], []>} : vector<40x32xbf16>, vector<40x32xbf16>, vector<40x40xf32> -> vector<40x40xf32>
    %cst_23 = arith.constant dense<0xFF800000> : vector<40xf32>
    %51 = vector.multi_reduction <maximumf>, %50, %cst_23 [1] : vector<40x40xf32> to vector<40xf32>
    %52 = vector.shape_cast %51 : vector<40xf32> to vector<40x1xf32>
    %53 = vector.broadcast %52 : vector<40x1xf32> to vector<40x40xf32>
    %54 = arith.subf %50, %53 : vector<40x40xf32>
    %55 = math.exp %54 : vector<40x40xf32>
    %cst_24 = arith.constant dense<0.000000e+00> : vector<40xf32>
    %56 = vector.multi_reduction <add>, %55, %cst_24 [1] : vector<40x40xf32> to vector<40xf32>
    %57 = vector.shape_cast %56 : vector<40xf32> to vector<40x1xf32>
    %58 = tpu.reciprocal %57 {approx = true} : vector<40x1xf32> -> vector<40x1xf32>
    %59 = vector.broadcast %58 : vector<40x1xf32> to vector<40x40xf32>
    %60 = arith.mulf %55, %59 : vector<40x40xf32>
    %61 = arith.truncf %60 : vector<40x40xf32> to vector<40x40xbf16>
    %cst_25 = arith.constant dense<0.000000e+00> : vector<40x32xf32>
    %62 = tpu.matmul %61, %49, %cst_25 {dimension_numbers = #tpu.dot_dimension_numbers<[1], [0], [0], [1], [0, 0, 1, 1], [], []>} : vector<40x40xbf16>, vector<40x32xbf16>, vector<40x32xf32> -> vector<40x32xf32>
    %63 = vector.extract_strided_slice %41 {offsets = [40, 0], sizes = [40, 32], strides = [1, 1]} : vector<80x32xf32> to vector<40x32xf32>
    %64 = arith.truncf %63 : vector<40x32xf32> to vector<40x32xbf16>
    %65 = vector.extract_strided_slice %42 {offsets = [40, 0], sizes = [40, 32], strides = [1, 1]} : vector<80x32xf32> to vector<40x32xf32>
    %66 = arith.truncf %65 : vector<40x32xf32> to vector<40x32xbf16>
    %67 = vector.extract_strided_slice %43 {offsets = [40, 0], sizes = [40, 32], strides = [1, 1]} : vector<80x32xf32> to vector<40x32xf32>
    %68 = arith.truncf %67 : vector<40x32xf32> to vector<40x32xbf16>
    %cst_26 = arith.constant dense<0.000000e+00> : vector<40x40xf32>
    %69 = tpu.matmul %64, %66, %cst_26 {dimension_numbers = #tpu.dot_dimension_numbers<[1], [1], [0], [0], [0, 0, 1, 0], [], []>} : vector<40x32xbf16>, vector<40x32xbf16>, vector<40x40xf32> -> vector<40x40xf32>
    %cst_27 = arith.constant dense<0xFF800000> : vector<40xf32>
    %70 = vector.multi_reduction <maximumf>, %69, %cst_27 [1] : vector<40x40xf32> to vector<40xf32>
    %71 = vector.shape_cast %70 : vector<40xf32> to vector<40x1xf32>
    %72 = vector.broadcast %71 : vector<40x1xf32> to vector<40x40xf32>
    %73 = arith.subf %69, %72 : vector<40x40xf32>
    %74 = math.exp %73 : vector<40x40xf32>
    %cst_28 = arith.constant dense<0.000000e+00> : vector<40xf32>
    %75 = vector.multi_reduction <add>, %74, %cst_28 [1] : vector<40x40xf32> to vector<40xf32>
    %76 = vector.shape_cast %75 : vector<40xf32> to vector<40x1xf32>
    %77 = tpu.reciprocal %76 {approx = true} : vector<40x1xf32> -> vector<40x1xf32>
    %78 = vector.broadcast %77 : vector<40x1xf32> to vector<40x40xf32>
    %79 = arith.mulf %74, %78 : vector<40x40xf32>
    %80 = arith.truncf %79 : vector<40x40xf32> to vector<40x40xbf16>
    %cst_29 = arith.constant dense<0.000000e+00> : vector<40x32xf32>
    %81 = tpu.matmul %80, %68, %cst_29 {dimension_numbers = #tpu.dot_dimension_numbers<[1], [0], [0], [1], [0, 0, 1, 1], [], []>} : vector<40x40xbf16>, vector<40x32xbf16>, vector<40x32xf32> -> vector<40x32xf32>
    %82 = tpu.concatenate %62, %81 in 0 : vector<40x32xf32>, vector<40x32xf32> -> vector<80x32xf32>
    %83 = arith.truncf %82 : vector<80x32xf32> to vector<80x32xbf16>
    %c0_30 = arith.constant 0 : index
    %c0_31 = arith.constant 0 : index
    %84 = vector.load %arg8[%c0_30, %c0_31] : memref<32x32xbf16, #tpu.memory_space<vmem>>, vector<32x32xbf16>
    %cst_32 = arith.constant dense<0.000000e+00> : vector<80x32xf32>
    %85 = tpu.matmul %83, %84, %cst_32 {dimension_numbers = #tpu.dot_dimension_numbers<[1], [0], [0], [1], [0, 0, 1, 1], [], []>} : vector<80x32xbf16>, vector<32x32xbf16>, vector<80x32xf32> -> vector<80x32xf32>
    %c0_33 = arith.constant 0 : index
    %c0_34 = arith.constant 0 : index
    %86 = vector.load %arg9[%c0_33, %c0_34] : memref<1x32xf32, #tpu.memory_space<vmem>>, vector<1x32xf32>
    %87 = vector.broadcast %86 : vector<1x32xf32> to vector<80x32xf32>
    %88 = arith.addf %85, %87 : vector<80x32xf32>
    %89 = arith.addf %8, %88 : vector<80x32xf32>
    %cst_35 = arith.constant dense<0.000000e+00> : vector<80xf32>
    %90 = vector.multi_reduction <add>, %89, %cst_35 [1] : vector<80x32xf32> to vector<80xf32>
    %91 = vector.shape_cast %90 : vector<80xf32> to vector<80x1xf32>
    %cst_36 = arith.constant 3.200000e+01 : f32
    %92 = vector.broadcast %cst_36 : f32 to vector<80x1xf32>
    %93 = arith.divf %91, %92 : vector<80x1xf32>
    %94 = vector.broadcast %93 : vector<80x1xf32> to vector<80x32xf32>
    %95 = arith.subf %89, %94 : vector<80x32xf32>
    %96 = arith.mulf %95, %95 : vector<80x32xf32>
    %cst_37 = arith.constant dense<0.000000e+00> : vector<80xf32>
    %97 = vector.multi_reduction <add>, %96, %cst_37 [1] : vector<80x32xf32> to vector<80xf32>
    %98 = vector.shape_cast %97 : vector<80xf32> to vector<80x1xf32>
    %cst_38 = arith.constant 3.200000e+01 : f32
    %99 = vector.broadcast %cst_38 : f32 to vector<80x1xf32>
    %100 = arith.divf %98, %99 : vector<80x1xf32>
    %101 = vector.broadcast %93 : vector<80x1xf32> to vector<80x32xf32>
    %102 = arith.subf %89, %101 : vector<80x32xf32>
    %cst_39 = arith.constant 9.99999997E-7 : f32
    %103 = vector.broadcast %cst_39 : f32 to vector<80x1xf32>
    %104 = arith.addf %100, %103 : vector<80x1xf32>
    %105 = math.rsqrt %104 : vector<80x1xf32>
    %106 = vector.broadcast %105 : vector<80x1xf32> to vector<80x32xf32>
    %107 = arith.mulf %102, %106 : vector<80x32xf32>
    %c0_40 = arith.constant 0 : index
    %c0_41 = arith.constant 0 : index
    %108 = vector.load %arg10[%c0_40, %c0_41] : memref<1x32xf32, #tpu.memory_space<vmem>>, vector<1x32xf32>
    %109 = vector.broadcast %108 : vector<1x32xf32> to vector<80x32xf32>
    %110 = arith.mulf %107, %109 : vector<80x32xf32>
    %c0_42 = arith.constant 0 : index
    %c0_43 = arith.constant 0 : index
    %111 = vector.load %arg11[%c0_42, %c0_43] : memref<1x32xf32, #tpu.memory_space<vmem>>, vector<1x32xf32>
    %112 = vector.broadcast %111 : vector<1x32xf32> to vector<80x32xf32>
    %113 = arith.addf %110, %112 : vector<80x32xf32>
    %114 = arith.truncf %113 : vector<80x32xf32> to vector<80x32xbf16>
    %c0_44 = arith.constant 0 : index
    %c0_45 = arith.constant 0 : index
    %115 = vector.load %arg12[%c0_44, %c0_45] : memref<32x64xbf16, #tpu.memory_space<vmem>>, vector<32x64xbf16>
    %cst_46 = arith.constant dense<0.000000e+00> : vector<80x64xf32>
    %116 = tpu.matmul %114, %115, %cst_46 {dimension_numbers = #tpu.dot_dimension_numbers<[1], [0], [0], [1], [0, 0, 1, 1], [], []>} : vector<80x32xbf16>, vector<32x64xbf16>, vector<80x64xf32> -> vector<80x64xf32>
    %c0_47 = arith.constant 0 : index
    %c0_48 = arith.constant 0 : index
    %117 = vector.load %arg13[%c0_47, %c0_48] : memref<1x64xf32, #tpu.memory_space<vmem>>, vector<1x64xf32>
    %118 = vector.broadcast %117 : vector<1x64xf32> to vector<80x64xf32>
    %119 = arith.addf %116, %118 : vector<80x64xf32>
    %cst_49 = arith.constant 0.000000e+00 : f32
    %120 = vector.broadcast %cst_49 : f32 to vector<80x64xf32>
    %121 = arith.maximumf %119, %120 : vector<80x64xf32>
    %122 = arith.truncf %121 : vector<80x64xf32> to vector<80x64xbf16>
    %c0_50 = arith.constant 0 : index
    %c0_51 = arith.constant 0 : index
    %123 = vector.load %arg14[%c0_50, %c0_51] : memref<64x32xbf16, #tpu.memory_space<vmem>>, vector<64x32xbf16>
    %cst_52 = arith.constant dense<0.000000e+00> : vector<80x32xf32>
    %124 = tpu.matmul %122, %123, %cst_52 {dimension_numbers = #tpu.dot_dimension_numbers<[1], [0], [0], [1], [0, 0, 1, 1], [], []>} : vector<80x64xbf16>, vector<64x32xbf16>, vector<80x32xf32> -> vector<80x32xf32>
    %c0_53 = arith.constant 0 : index
    %c0_54 = arith.constant 0 : index
    %125 = vector.load %arg15[%c0_53, %c0_54] : memref<1x32xf32, #tpu.memory_space<vmem>>, vector<1x32xf32>
    %126 = vector.broadcast %125 : vector<1x32xf32> to vector<80x32xf32>
    %127 = arith.addf %124, %126 : vector<80x32xf32>
    %128 = arith.addf %89, %127 : vector<80x32xf32>
    %129 = vector.extract_strided_slice %128 {offsets = [8, 0], sizes = [32, 32], strides = [1, 1]} : vector<80x32xf32> to vector<32x32xf32>
    %c0_55 = arith.constant 0 : index
    %c0_56 = arith.constant 0 : index
    %c0_57 = arith.constant 0 : index
    %130 = vector.load %arg16[%c0_55, %c0_56, %c0_57] : memref<2x32x32xf32, #tpu.memory_space<vmem>>, vector<1x32x32xf32>
    %131 = vector.shape_cast %130 : vector<1x32x32xf32> to vector<32x32xf32>
    %132 = vector.shape_cast %129 : vector<32x32xf32> to vector<1x32x32xf32>
    tpu.vector_store %arg16[%c0_55, %c0_56, %c0_57], %132 {strides = array<i32>} : memref<2x32x32xf32, #tpu.memory_space<vmem>>, vector<1x32x32xf32>,
    %133 = vector.extract_strided_slice %128 {offsets = [48, 0], sizes = [32, 32], strides = [1, 1]} : vector<80x32xf32> to vector<32x32xf32>
    %c1 = arith.constant 1 : index
    %c0_58 = arith.constant 0 : index
    %c0_59 = arith.constant 0 : index
    %134 = vector.load %arg16[%c1, %c0_58, %c0_59] : memref<2x32x32xf32, #tpu.memory_space<vmem>>, vector<1x32x32xf32>
    %135 = vector.shape_cast %134 : vector<1x32x32xf32> to vector<32x32xf32>
    %136 = vector.shape_cast %133 : vector<32x32xf32> to vector<1x32x32xf32>
    tpu.vector_store %arg16[%c1, %c0_58, %c0_59], %136 {strides = array<i32>} : memref<2x32x32xf32, #tpu.memory_space<vmem>>, vector<1x32x32xf32>,
    return
  }
}

module attributes {stable_mosaic.version = 11 : i64} {
  func.func @_box_head_kernel(%arg0: memref<12x256xf32, #tpu.memory_space<vmem>>, %arg1: memref<768x256xbf16, #tpu.memory_space<vmem>>, %arg2: memref<1x256xf32, #tpu.memory_space<vmem>>, %arg3: memref<768x128xbf16, #tpu.memory_space<vmem>>, %arg4: memref<1x128xf32, #tpu.memory_space<vmem>>, %arg5: memref<384x4xbf16, #tpu.memory_space<vmem>>, %arg6: memref<1x4xf32, #tpu.memory_space<vmem>>, %arg7: memref<384x4xbf16, #tpu.memory_space<vmem>>, %arg8: memref<1x4xf32, #tpu.memory_space<vmem>>, %arg9: memref<2x4xf32, #tpu.memory_space<vmem>>, %arg10: memref<2x2x4x4xf32, #tpu.memory_space<vmem>>, %arg11: memref<12x256xf32, #tpu.memory_space<vmem>>, %arg12: memref<12x128xf32, #tpu.memory_space<vmem>>) attributes {dimension_semantics = [], scalar_prefetch = 0 : i64, scratch_operands = 2 : i64, tpu.core_type = #tpu.core_type<tc>} {
    %0 = tpu.iota {dimensions = array<i32: 1>} : vector<4x4xi32>
    %1 = arith.sitofp %0 : vector<4x4xi32> to vector<4x4xf32>
    %2 = tpu.iota {dimensions = array<i32: 0>} : vector<4x4xi32>
    %3 = arith.sitofp %2 : vector<4x4xi32> to vector<4x4xf32>
    %cst = arith.constant 5.000000e-01 : f32
    %4 = vector.broadcast %cst : f32 to vector<4x4xf32>
    %5 = arith.addf %1, %4 : vector<4x4xf32>
    %cst_0 = arith.constant 2.500000e-01 : f32
    %6 = vector.broadcast %cst_0 : f32 to vector<4x4xf32>
    %7 = arith.mulf %5, %6 : vector<4x4xf32>
    %cst_1 = arith.constant 5.000000e-01 : f32
    %8 = vector.broadcast %cst_1 : f32 to vector<4x4xf32>
    %9 = arith.addf %3, %8 : vector<4x4xf32>
    %cst_2 = arith.constant 2.500000e-01 : f32
    %10 = vector.broadcast %cst_2 : f32 to vector<4x4xf32>
    %11 = arith.mulf %9, %10 : vector<4x4xf32>
    %c0 = arith.constant 0 : index
    %c0_3 = arith.constant 0 : index
    %12 = vector.load %arg1[%c0, %c0_3] : memref<768x256xbf16, #tpu.memory_space<vmem>>, vector<768x256xbf16>
    %c0_4 = arith.constant 0 : index
    %c0_5 = arith.constant 0 : index
    %13 = vector.load %arg3[%c0_4, %c0_5] : memref<768x128xbf16, #tpu.memory_space<vmem>>, vector<768x128xbf16>
    %c0_6 = arith.constant 0 : index
    %c0_7 = arith.constant 0 : index
    %14 = vector.load %arg5[%c0_6, %c0_7] : memref<384x4xbf16, #tpu.memory_space<vmem>>, vector<384x4xbf16>
    %c0_8 = arith.constant 0 : index
    %c0_9 = arith.constant 0 : index
    %15 = vector.load %arg7[%c0_8, %c0_9] : memref<384x4xbf16, #tpu.memory_space<vmem>>, vector<384x4xbf16>
    %cst_10 = arith.constant 0.000000e+00 : f32
    %16 = vector.broadcast %cst_10 : f32 to vector<12x256xf32>
    %c0_11 = arith.constant 0 : index
    %c0_12 = arith.constant 0 : index
    %17 = vector.load %arg11[%c0_11, %c0_12] : memref<12x256xf32, #tpu.memory_space<vmem>>, vector<12x256xf32>
    tpu.vector_store %arg11[%c0_11, %c0_12], %16 {strides = array<i32>} : memref<12x256xf32, #tpu.memory_space<vmem>>, vector<12x256xf32>,
    %cst_13 = arith.constant 0.000000e+00 : f32
    %18 = vector.broadcast %cst_13 : f32 to vector<12x128xf32>
    %c0_14 = arith.constant 0 : index
    %c0_15 = arith.constant 0 : index
    %19 = vector.load %arg12[%c0_14, %c0_15] : memref<12x128xf32, #tpu.memory_space<vmem>>, vector<12x128xf32>
    tpu.vector_store %arg12[%c0_14, %c0_15], %18 {strides = array<i32>} : memref<12x128xf32, #tpu.memory_space<vmem>>, vector<12x128xf32>,
    %c0_16 = arith.constant 0 : index
    %c0_17 = arith.constant 0 : index
    %20 = vector.load %arg0[%c0_16, %c0_17] : memref<12x256xf32, #tpu.memory_space<vmem>>, vector<4x256xf32>
    %c1 = arith.constant 1 : index
    %c0_18 = arith.constant 0 : index
    %21 = vector.load %arg0[%c1, %c0_18] : memref<12x256xf32, #tpu.memory_space<vmem>>, vector<4x256xf32>
    %c2 = arith.constant 2 : index
    %c0_19 = arith.constant 0 : index
    %22 = vector.load %arg0[%c2, %c0_19] : memref<12x256xf32, #tpu.memory_space<vmem>>, vector<4x256xf32>
    %23 = tpu.concatenate %20, %21, %22 in 1 : vector<4x256xf32>, vector<4x256xf32>, vector<4x256xf32> -> vector<4x768xf32>
    %24 = arith.truncf %23 : vector<4x768xf32> to vector<4x768xbf16>
    %cst_20 = arith.constant dense<0.000000e+00> : vector<4x256xf32>
    %25 = tpu.matmul %24, %12, %cst_20 {dimension_numbers = #tpu.dot_dimension_numbers<[1], [0], [0], [1], [0, 0, 1, 1], [], []>} : vector<4x768xbf16>, vector<768x256xbf16>, vector<4x256xf32> -> vector<4x256xf32>
    %c0_21 = arith.constant 0 : index
    %c0_22 = arith.constant 0 : index
    %26 = vector.load %arg2[%c0_21, %c0_22] : memref<1x256xf32, #tpu.memory_space<vmem>>, vector<1x256xf32>
    %27 = vector.broadcast %26 : vector<1x256xf32> to vector<4x256xf32>
    %28 = arith.addf %25, %27 : vector<4x256xf32>
    %cst_23 = arith.constant 0.000000e+00 : f32
    %29 = vector.broadcast %cst_23 : f32 to vector<4x256xf32>
    %30 = arith.maximumf %28, %29 : vector<4x256xf32>
    %c1_24 = arith.constant 1 : index
    %c0_25 = arith.constant 0 : index
    %31 = vector.load %arg11[%c1_24, %c0_25] : memref<12x256xf32, #tpu.memory_space<vmem>>, vector<4x256xf32>
    tpu.vector_store %arg11[%c1_24, %c0_25], %30 {strides = array<i32>} : memref<12x256xf32, #tpu.memory_space<vmem>>, vector<4x256xf32>,
    %c0_26 = arith.constant 0 : index
    %c0_27 = arith.constant 0 : index
    %32 = vector.load %arg11[%c0_26, %c0_27] : memref<12x256xf32, #tpu.memory_space<vmem>>, vector<4x256xf32>
    %c1_28 = arith.constant 1 : index
    %c0_29 = arith.constant 0 : index
    %33 = vector.load %arg11[%c1_28, %c0_29] : memref<12x256xf32, #tpu.memory_space<vmem>>, vector<4x256xf32>
    %c2_30 = arith.constant 2 : index
    %c0_31 = arith.constant 0 : index
    %34 = vector.load %arg11[%c2_30, %c0_31] : memref<12x256xf32, #tpu.memory_space<vmem>>, vector<4x256xf32>
    %35 = tpu.concatenate %32, %33, %34 in 1 : vector<4x256xf32>, vector<4x256xf32>, vector<4x256xf32> -> vector<4x768xf32>
    %36 = arith.truncf %35 : vector<4x768xf32> to vector<4x768xbf16>
    %cst_32 = arith.constant dense<0.000000e+00> : vector<4x128xf32>
    %37 = tpu.matmul %36, %13, %cst_32 {dimension_numbers = #tpu.dot_dimension_numbers<[1], [0], [0], [1], [0, 0, 1, 1], [], []>} : vector<4x768xbf16>, vector<768x128xbf16>, vector<4x128xf32> -> vector<4x128xf32>
    %c0_33 = arith.constant 0 : index
    %c0_34 = arith.constant 0 : index
    %38 = vector.load %arg4[%c0_33, %c0_34] : memref<1x128xf32, #tpu.memory_space<vmem>>, vector<1x128xf32>
    %39 = vector.broadcast %38 : vector<1x128xf32> to vector<4x128xf32>
    %40 = arith.addf %37, %39 : vector<4x128xf32>
    %cst_35 = arith.constant 0.000000e+00 : f32
    %41 = vector.broadcast %cst_35 : f32 to vector<4x128xf32>
    %42 = arith.maximumf %40, %41 : vector<4x128xf32>
    %c1_36 = arith.constant 1 : index
    %c0_37 = arith.constant 0 : index
    %43 = vector.load %arg12[%c1_36, %c0_37] : memref<12x128xf32, #tpu.memory_space<vmem>>, vector<4x128xf32>
    tpu.vector_store %arg12[%c1_36, %c0_37], %42 {strides = array<i32>} : memref<12x128xf32, #tpu.memory_space<vmem>>, vector<4x128xf32>,
    %c0_38 = arith.constant 0 : index
    %c0_39 = arith.constant 0 : index
    %44 = vector.load %arg12[%c0_38, %c0_39] : memref<12x128xf32, #tpu.memory_space<vmem>>, vector<4x128xf32>
    %c1_40 = arith.constant 1 : index
    %c0_41 = arith.constant 0 : index
    %45 = vector.load %arg12[%c1_40, %c0_41] : memref<12x128xf32, #tpu.memory_space<vmem>>, vector<4x128xf32>
    %c2_42 = arith.constant 2 : index
    %c0_43 = arith.constant 0 : index
    %46 = vector.load %arg12[%c2_42, %c0_43] : memref<12x128xf32, #tpu.memory_space<vmem>>, vector<4x128xf32>
    %47 = tpu.concatenate %44, %45, %46 in 1 : vector<4x128xf32>, vector<4x128xf32>, vector<4x128xf32> -> vector<4x384xf32>
    %48 = arith.truncf %47 : vector<4x384xf32> to vector<4x384xbf16>
    %cst_44 = arith.constant dense<0.000000e+00> : vector<4x4xf32>
    %49 = tpu.matmul %48, %14, %cst_44 {dimension_numbers = #tpu.dot_dimension_numbers<[1], [0], [0], [1], [0, 0, 1, 1], [], []>} : vector<4x384xbf16>, vector<384x4xbf16>, vector<4x4xf32> -> vector<4x4xf32>
    %c0_45 = arith.constant 0 : index
    %c0_46 = arith.constant 0 : index
    %50 = vector.load %arg6[%c0_45, %c0_46] : memref<1x4xf32, #tpu.memory_space<vmem>>, vector<1x4xf32>
    %51 = vector.broadcast %50 : vector<1x4xf32> to vector<4x4xf32>
    %52 = arith.addf %49, %51 : vector<4x4xf32>
    %cst_47 = arith.constant dense<0.000000e+00> : vector<4x4xf32>
    %53 = tpu.matmul %48, %15, %cst_47 {dimension_numbers = #tpu.dot_dimension_numbers<[1], [0], [0], [1], [0, 0, 1, 1], [], []>} : vector<4x384xbf16>, vector<384x4xbf16>, vector<4x4xf32> -> vector<4x4xf32>
    %c0_48 = arith.constant 0 : index
    %c0_49 = arith.constant 0 : index
    %54 = vector.load %arg8[%c0_48, %c0_49] : memref<1x4xf32, #tpu.memory_space<vmem>>, vector<1x4xf32>
    %55 = vector.broadcast %54 : vector<1x4xf32> to vector<4x4xf32>
    %56 = arith.addf %53, %55 : vector<4x4xf32>
    %cst_50 = arith.constant dense<0xFF800000> : vector<4xf32>
    %57 = vector.multi_reduction <maximumf>, %52, %cst_50 [1] : vector<4x4xf32> to vector<4xf32>
    %58 = vector.shape_cast %57 : vector<4xf32> to vector<4x1xf32>
    %cst_51 = arith.constant dense<0xFF800000> : vector<1xf32>
    %59 = vector.multi_reduction <maximumf>, %58, %cst_51 [0] : vector<4x1xf32> to vector<1xf32>
    %60 = vector.shape_cast %59 : vector<1xf32> to vector<1x1xf32>
    %61 = vector.broadcast %60 : vector<1x1xf32> to vector<4x4xf32>
    %62 = arith.subf %52, %61 : vector<4x4xf32>
    %63 = math.exp %62 : vector<4x4xf32>
    %cst_52 = arith.constant dense<0.000000e+00> : vector<4xf32>
    %64 = vector.multi_reduction <add>, %63, %cst_52 [1] : vector<4x4xf32> to vector<4xf32>
    %65 = vector.shape_cast %64 : vector<4xf32> to vector<4x1xf32>
    %cst_53 = arith.constant dense<0.000000e+00> : vector<1xf32>
    %66 = vector.multi_reduction <add>, %65, %cst_53 [0] : vector<4x1xf32> to vector<1xf32>
    %67 = vector.shape_cast %66 : vector<1xf32> to vector<1x1xf32>
    %68 = tpu.reciprocal %67 {approx = true} : vector<1x1xf32> -> vector<1x1xf32>
    %69 = vector.broadcast %68 : vector<1x1xf32> to vector<4x4xf32>
    %70 = arith.mulf %63, %69 : vector<4x4xf32>
    %cst_54 = arith.constant dense<0xFF800000> : vector<4xf32>
    %71 = vector.multi_reduction <maximumf>, %56, %cst_54 [1] : vector<4x4xf32> to vector<4xf32>
    %72 = vector.shape_cast %71 : vector<4xf32> to vector<4x1xf32>
    %cst_55 = arith.constant dense<0xFF800000> : vector<1xf32>
    %73 = vector.multi_reduction <maximumf>, %72, %cst_55 [0] : vector<4x1xf32> to vector<1xf32>
    %74 = vector.shape_cast %73 : vector<1xf32> to vector<1x1xf32>
    %75 = vector.broadcast %74 : vector<1x1xf32> to vector<4x4xf32>
    %76 = arith.subf %56, %75 : vector<4x4xf32>
    %77 = math.exp %76 : vector<4x4xf32>
    %cst_56 = arith.constant dense<0.000000e+00> : vector<4xf32>
    %78 = vector.multi_reduction <add>, %77, %cst_56 [1] : vector<4x4xf32> to vector<4xf32>
    %79 = vector.shape_cast %78 : vector<4xf32> to vector<4x1xf32>
    %cst_57 = arith.constant dense<0.000000e+00> : vector<1xf32>
    %80 = vector.multi_reduction <add>, %79, %cst_57 [0] : vector<4x1xf32> to vector<1xf32>
    %81 = vector.shape_cast %80 : vector<1xf32> to vector<1x1xf32>
    %82 = tpu.reciprocal %81 {approx = true} : vector<1x1xf32> -> vector<1x1xf32>
    %83 = vector.broadcast %82 : vector<1x1xf32> to vector<4x4xf32>
    %84 = arith.mulf %77, %83 : vector<4x4xf32>
    %c0_58 = arith.constant 0 : index
    %c0_59 = arith.constant 0 : index
    %c0_60 = arith.constant 0 : index
    %c0_61 = arith.constant 0 : index
    %85 = vector.load %arg10[%c0_58, %c0_59, %c0_60, %c0_61] : memref<2x2x4x4xf32, #tpu.memory_space<vmem>>, vector<1x1x4x4xf32>
    %86 = vector.shape_cast %85 : vector<1x1x4x4xf32> to vector<4x4xf32>
    %87 = vector.shape_cast %70 : vector<4x4xf32> to vector<1x1x4x4xf32>
    tpu.vector_store %arg10[%c0_58, %c0_59, %c0_60, %c0_61], %87 {strides = array<i32>} : memref<2x2x4x4xf32, #tpu.memory_space<vmem>>, vector<1x1x4x4xf32>,
    %c0_62 = arith.constant 0 : index
    %c1_63 = arith.constant 1 : index
    %c0_64 = arith.constant 0 : index
    %c0_65 = arith.constant 0 : index
    %88 = vector.load %arg10[%c0_62, %c1_63, %c0_64, %c0_65] : memref<2x2x4x4xf32, #tpu.memory_space<vmem>>, vector<1x1x4x4xf32>
    %89 = vector.shape_cast %88 : vector<1x1x4x4xf32> to vector<4x4xf32>
    %90 = vector.shape_cast %84 : vector<4x4xf32> to vector<1x1x4x4xf32>
    tpu.vector_store %arg10[%c0_62, %c1_63, %c0_64, %c0_65], %90 {strides = array<i32>} : memref<2x2x4x4xf32, #tpu.memory_space<vmem>>, vector<1x1x4x4xf32>,
    %91 = arith.mulf %70, %7 : vector<4x4xf32>
    %cst_66 = arith.constant dense<0.000000e+00> : vector<4xf32>
    %92 = vector.multi_reduction <add>, %91, %cst_66 [1] : vector<4x4xf32> to vector<4xf32>
    %93 = vector.shape_cast %92 : vector<4xf32> to vector<4x1xf32>
    %cst_67 = arith.constant dense<0.000000e+00> : vector<1xf32>
    %94 = vector.multi_reduction <add>, %93, %cst_67 [0] : vector<4x1xf32> to vector<1xf32>
    %95 = vector.shape_cast %94 : vector<1xf32> to vector<1x1xf32>
    %96 = arith.mulf %70, %11 : vector<4x4xf32>
    %cst_68 = arith.constant dense<0.000000e+00> : vector<4xf32>
    %97 = vector.multi_reduction <add>, %96, %cst_68 [1] : vector<4x4xf32> to vector<4xf32>
    %98 = vector.shape_cast %97 : vector<4xf32> to vector<4x1xf32>
    %cst_69 = arith.constant dense<0.000000e+00> : vector<1xf32>
    %99 = vector.multi_reduction <add>, %98, %cst_69 [0] : vector<4x1xf32> to vector<1xf32>
    %100 = vector.shape_cast %99 : vector<1xf32> to vector<1x1xf32>
    %101 = arith.mulf %84, %7 : vector<4x4xf32>
    %cst_70 = arith.constant dense<0.000000e+00> : vector<4xf32>
    %102 = vector.multi_reduction <add>, %101, %cst_70 [1] : vector<4x4xf32> to vector<4xf32>
    %103 = vector.shape_cast %102 : vector<4xf32> to vector<4x1xf32>
    %cst_71 = arith.constant dense<0.000000e+00> : vector<1xf32>
    %104 = vector.multi_reduction <add>, %103, %cst_71 [0] : vector<4x1xf32> to vector<1xf32>
    %105 = vector.shape_cast %104 : vector<1xf32> to vector<1x1xf32>
    %106 = arith.mulf %84, %11 : vector<4x4xf32>
    %cst_72 = arith.constant dense<0.000000e+00> : vector<4xf32>
    %107 = vector.multi_reduction <add>, %106, %cst_72 [1] : vector<4x4xf32> to vector<4xf32>
    %108 = vector.shape_cast %107 : vector<4xf32> to vector<4x1xf32>
    %cst_73 = arith.constant dense<0.000000e+00> : vector<1xf32>
    %109 = vector.multi_reduction <add>, %108, %cst_73 [0] : vector<4x1xf32> to vector<1xf32>
    %110 = vector.shape_cast %109 : vector<1xf32> to vector<1x1xf32>
    %111 = arith.addf %95, %105 : vector<1x1xf32>
    %cst_74 = arith.constant 5.000000e-01 : f32
    %112 = vector.broadcast %cst_74 : f32 to vector<1x1xf32>
    %113 = arith.mulf %111, %112 : vector<1x1xf32>
    %114 = arith.addf %100, %110 : vector<1x1xf32>
    %cst_75 = arith.constant 5.000000e-01 : f32
    %115 = vector.broadcast %cst_75 : f32 to vector<1x1xf32>
    %116 = arith.mulf %114, %115 : vector<1x1xf32>
    %117 = arith.subf %105, %95 : vector<1x1xf32>
    %118 = arith.subf %110, %100 : vector<1x1xf32>
    %119 = tpu.concatenate %113, %116, %117, %118 in 1 : vector<1x1xf32>, vector<1x1xf32>, vector<1x1xf32>, vector<1x1xf32> -> vector<1x4xf32>
    %c0_76 = arith.constant 0 : index
    %c0_77 = arith.constant 0 : index
    %120 = vector.load %arg9[%c0_76, %c0_77] : memref<2x4xf32, #tpu.memory_space<vmem>>, vector<1x4xf32>
    tpu.vector_store %arg9[%c0_76, %c0_77], %119 {strides = array<i32>} : memref<2x4xf32, #tpu.memory_space<vmem>>, vector<1x4xf32>,
    %c6 = arith.constant 6 : index
    %c0_78 = arith.constant 0 : index
    %121 = vector.load %arg0[%c6, %c0_78] : memref<12x256xf32, #tpu.memory_space<vmem>>, vector<4x256xf32>
    %c7 = arith.constant 7 : index
    %c0_79 = arith.constant 0 : index
    %122 = vector.load %arg0[%c7, %c0_79] : memref<12x256xf32, #tpu.memory_space<vmem>>, vector<4x256xf32>
    %c8 = arith.constant 8 : index
    %c0_80 = arith.constant 0 : index
    %123 = vector.load %arg0[%c8, %c0_80] : memref<12x256xf32, #tpu.memory_space<vmem>>, vector<4x256xf32>
    %124 = tpu.concatenate %121, %122, %123 in 1 : vector<4x256xf32>, vector<4x256xf32>, vector<4x256xf32> -> vector<4x768xf32>
    %125 = arith.truncf %124 : vector<4x768xf32> to vector<4x768xbf16>
    %cst_81 = arith.constant dense<0.000000e+00> : vector<4x256xf32>
    %126 = tpu.matmul %125, %12, %cst_81 {dimension_numbers = #tpu.dot_dimension_numbers<[1], [0], [0], [1], [0, 0, 1, 1], [], []>} : vector<4x768xbf16>, vector<768x256xbf16>, vector<4x256xf32> -> vector<4x256xf32>
    %c0_82 = arith.constant 0 : index
    %c0_83 = arith.constant 0 : index
    %127 = vector.load %arg2[%c0_82, %c0_83] : memref<1x256xf32, #tpu.memory_space<vmem>>, vector<1x256xf32>
    %128 = vector.broadcast %127 : vector<1x256xf32> to vector<4x256xf32>
    %129 = arith.addf %126, %128 : vector<4x256xf32>
    %cst_84 = arith.constant 0.000000e+00 : f32
    %130 = vector.broadcast %cst_84 : f32 to vector<4x256xf32>
    %131 = arith.maximumf %129, %130 : vector<4x256xf32>
    %c7_85 = arith.constant 7 : index
    %c0_86 = arith.constant 0 : index
    %132 = vector.load %arg11[%c7_85, %c0_86] : memref<12x256xf32, #tpu.memory_space<vmem>>, vector<4x256xf32>
    tpu.vector_store %arg11[%c7_85, %c0_86], %131 {strides = array<i32>} : memref<12x256xf32, #tpu.memory_space<vmem>>, vector<4x256xf32>,
    %c6_87 = arith.constant 6 : index
    %c0_88 = arith.constant 0 : index
    %133 = vector.load %arg11[%c6_87, %c0_88] : memref<12x256xf32, #tpu.memory_space<vmem>>, vector<4x256xf32>
    %c7_89 = arith.constant 7 : index
    %c0_90 = arith.constant 0 : index
    %134 = vector.load %arg11[%c7_89, %c0_90] : memref<12x256xf32, #tpu.memory_space<vmem>>, vector<4x256xf32>
    %c8_91 = arith.constant 8 : index
    %c0_92 = arith.constant 0 : index
    %135 = vector.load %arg11[%c8_91, %c0_92] : memref<12x256xf32, #tpu.memory_space<vmem>>, vector<4x256xf32>
    %136 = tpu.concatenate %133, %134, %135 in 1 : vector<4x256xf32>, vector<4x256xf32>, vector<4x256xf32> -> vector<4x768xf32>
    %137 = arith.truncf %136 : vector<4x768xf32> to vector<4x768xbf16>
    %cst_93 = arith.constant dense<0.000000e+00> : vector<4x128xf32>
    %138 = tpu.matmul %137, %13, %cst_93 {dimension_numbers = #tpu.dot_dimension_numbers<[1], [0], [0], [1], [0, 0, 1, 1], [], []>} : vector<4x768xbf16>, vector<768x128xbf16>, vector<4x128xf32> -> vector<4x128xf32>
    %c0_94 = arith.constant 0 : index
    %c0_95 = arith.constant 0 : index
    %139 = vector.load %arg4[%c0_94, %c0_95] : memref<1x128xf32, #tpu.memory_space<vmem>>, vector<1x128xf32>
    %140 = vector.broadcast %139 : vector<1x128xf32> to vector<4x128xf32>
    %141 = arith.addf %138, %140 : vector<4x128xf32>
    %cst_96 = arith.constant 0.000000e+00 : f32
    %142 = vector.broadcast %cst_96 : f32 to vector<4x128xf32>
    %143 = arith.maximumf %141, %142 : vector<4x128xf32>
    %c7_97 = arith.constant 7 : index
    %c0_98 = arith.constant 0 : index
    %144 = vector.load %arg12[%c7_97, %c0_98] : memref<12x128xf32, #tpu.memory_space<vmem>>, vector<4x128xf32>
    tpu.vector_store %arg12[%c7_97, %c0_98], %143 {strides = array<i32>} : memref<12x128xf32, #tpu.memory_space<vmem>>, vector<4x128xf32>,
    %c6_99 = arith.constant 6 : index
    %c0_100 = arith.constant 0 : index
    %145 = vector.load %arg12[%c6_99, %c0_100] : memref<12x128xf32, #tpu.memory_space<vmem>>, vector<4x128xf32>
    %c7_101 = arith.constant 7 : index
    %c0_102 = arith.constant 0 : index
    %146 = vector.load %arg12[%c7_101, %c0_102] : memref<12x128xf32, #tpu.memory_space<vmem>>, vector<4x128xf32>
    %c8_103 = arith.constant 8 : index
    %c0_104 = arith.constant 0 : index
    %147 = vector.load %arg12[%c8_103, %c0_104] : memref<12x128xf32, #tpu.memory_space<vmem>>, vector<4x128xf32>
    %148 = tpu.concatenate %145, %146, %147 in 1 : vector<4x128xf32>, vector<4x128xf32>, vector<4x128xf32> -> vector<4x384xf32>
    %149 = arith.truncf %148 : vector<4x384xf32> to vector<4x384xbf16>
    %cst_105 = arith.constant dense<0.000000e+00> : vector<4x4xf32>
    %150 = tpu.matmul %149, %14, %cst_105 {dimension_numbers = #tpu.dot_dimension_numbers<[1], [0], [0], [1], [0, 0, 1, 1], [], []>} : vector<4x384xbf16>, vector<384x4xbf16>, vector<4x4xf32> -> vector<4x4xf32>
    %c0_106 = arith.constant 0 : index
    %c0_107 = arith.constant 0 : index
    %151 = vector.load %arg6[%c0_106, %c0_107] : memref<1x4xf32, #tpu.memory_space<vmem>>, vector<1x4xf32>
    %152 = vector.broadcast %151 : vector<1x4xf32> to vector<4x4xf32>
    %153 = arith.addf %150, %152 : vector<4x4xf32>
    %cst_108 = arith.constant dense<0.000000e+00> : vector<4x4xf32>
    %154 = tpu.matmul %149, %15, %cst_108 {dimension_numbers = #tpu.dot_dimension_numbers<[1], [0], [0], [1], [0, 0, 1, 1], [], []>} : vector<4x384xbf16>, vector<384x4xbf16>, vector<4x4xf32> -> vector<4x4xf32>
    %c0_109 = arith.constant 0 : index
    %c0_110 = arith.constant 0 : index
    %155 = vector.load %arg8[%c0_109, %c0_110] : memref<1x4xf32, #tpu.memory_space<vmem>>, vector<1x4xf32>
    %156 = vector.broadcast %155 : vector<1x4xf32> to vector<4x4xf32>
    %157 = arith.addf %154, %156 : vector<4x4xf32>
    %cst_111 = arith.constant dense<0xFF800000> : vector<4xf32>
    %158 = vector.multi_reduction <maximumf>, %153, %cst_111 [1] : vector<4x4xf32> to vector<4xf32>
    %159 = vector.shape_cast %158 : vector<4xf32> to vector<4x1xf32>
    %cst_112 = arith.constant dense<0xFF800000> : vector<1xf32>
    %160 = vector.multi_reduction <maximumf>, %159, %cst_112 [0] : vector<4x1xf32> to vector<1xf32>
    %161 = vector.shape_cast %160 : vector<1xf32> to vector<1x1xf32>
    %162 = vector.broadcast %161 : vector<1x1xf32> to vector<4x4xf32>
    %163 = arith.subf %153, %162 : vector<4x4xf32>
    %164 = math.exp %163 : vector<4x4xf32>
    %cst_113 = arith.constant dense<0.000000e+00> : vector<4xf32>
    %165 = vector.multi_reduction <add>, %164, %cst_113 [1] : vector<4x4xf32> to vector<4xf32>
    %166 = vector.shape_cast %165 : vector<4xf32> to vector<4x1xf32>
    %cst_114 = arith.constant dense<0.000000e+00> : vector<1xf32>
    %167 = vector.multi_reduction <add>, %166, %cst_114 [0] : vector<4x1xf32> to vector<1xf32>
    %168 = vector.shape_cast %167 : vector<1xf32> to vector<1x1xf32>
    %169 = tpu.reciprocal %168 {approx = true} : vector<1x1xf32> -> vector<1x1xf32>
    %170 = vector.broadcast %169 : vector<1x1xf32> to vector<4x4xf32>
    %171 = arith.mulf %164, %170 : vector<4x4xf32>
    %cst_115 = arith.constant dense<0xFF800000> : vector<4xf32>
    %172 = vector.multi_reduction <maximumf>, %157, %cst_115 [1] : vector<4x4xf32> to vector<4xf32>
    %173 = vector.shape_cast %172 : vector<4xf32> to vector<4x1xf32>
    %cst_116 = arith.constant dense<0xFF800000> : vector<1xf32>
    %174 = vector.multi_reduction <maximumf>, %173, %cst_116 [0] : vector<4x1xf32> to vector<1xf32>
    %175 = vector.shape_cast %174 : vector<1xf32> to vector<1x1xf32>
    %176 = vector.broadcast %175 : vector<1x1xf32> to vector<4x4xf32>
    %177 = arith.subf %157, %176 : vector<4x4xf32>
    %178 = math.exp %177 : vector<4x4xf32>
    %cst_117 = arith.constant dense<0.000000e+00> : vector<4xf32>
    %179 = vector.multi_reduction <add>, %178, %cst_117 [1] : vector<4x4xf32> to vector<4xf32>
    %180 = vector.shape_cast %179 : vector<4xf32> to vector<4x1xf32>
    %cst_118 = arith.constant dense<0.000000e+00> : vector<1xf32>
    %181 = vector.multi_reduction <add>, %180, %cst_118 [0] : vector<4x1xf32> to vector<1xf32>
    %182 = vector.shape_cast %181 : vector<1xf32> to vector<1x1xf32>
    %183 = tpu.reciprocal %182 {approx = true} : vector<1x1xf32> -> vector<1x1xf32>
    %184 = vector.broadcast %183 : vector<1x1xf32> to vector<4x4xf32>
    %185 = arith.mulf %178, %184 : vector<4x4xf32>
    %c1_119 = arith.constant 1 : index
    %c0_120 = arith.constant 0 : index
    %c0_121 = arith.constant 0 : index
    %c0_122 = arith.constant 0 : index
    %186 = vector.load %arg10[%c1_119, %c0_120, %c0_121, %c0_122] : memref<2x2x4x4xf32, #tpu.memory_space<vmem>>, vector<1x1x4x4xf32>
    %187 = vector.shape_cast %186 : vector<1x1x4x4xf32> to vector<4x4xf32>
    %188 = vector.shape_cast %171 : vector<4x4xf32> to vector<1x1x4x4xf32>
    tpu.vector_store %arg10[%c1_119, %c0_120, %c0_121, %c0_122], %188 {strides = array<i32>} : memref<2x2x4x4xf32, #tpu.memory_space<vmem>>, vector<1x1x4x4xf32>,
    %c1_123 = arith.constant 1 : index
    %c1_124 = arith.constant 1 : index
    %c0_125 = arith.constant 0 : index
    %c0_126 = arith.constant 0 : index
    %189 = vector.load %arg10[%c1_123, %c1_124, %c0_125, %c0_126] : memref<2x2x4x4xf32, #tpu.memory_space<vmem>>, vector<1x1x4x4xf32>
    %190 = vector.shape_cast %189 : vector<1x1x4x4xf32> to vector<4x4xf32>
    %191 = vector.shape_cast %185 : vector<4x4xf32> to vector<1x1x4x4xf32>
    tpu.vector_store %arg10[%c1_123, %c1_124, %c0_125, %c0_126], %191 {strides = array<i32>} : memref<2x2x4x4xf32, #tpu.memory_space<vmem>>, vector<1x1x4x4xf32>,
    %192 = arith.mulf %171, %7 : vector<4x4xf32>
    %cst_127 = arith.constant dense<0.000000e+00> : vector<4xf32>
    %193 = vector.multi_reduction <add>, %192, %cst_127 [1] : vector<4x4xf32> to vector<4xf32>
    %194 = vector.shape_cast %193 : vector<4xf32> to vector<4x1xf32>
    %cst_128 = arith.constant dense<0.000000e+00> : vector<1xf32>
    %195 = vector.multi_reduction <add>, %194, %cst_128 [0] : vector<4x1xf32> to vector<1xf32>
    %196 = vector.shape_cast %195 : vector<1xf32> to vector<1x1xf32>
    %197 = arith.mulf %171, %11 : vector<4x4xf32>
    %cst_129 = arith.constant dense<0.000000e+00> : vector<4xf32>
    %198 = vector.multi_reduction <add>, %197, %cst_129 [1] : vector<4x4xf32> to vector<4xf32>
    %199 = vector.shape_cast %198 : vector<4xf32> to vector<4x1xf32>
    %cst_130 = arith.constant dense<0.000000e+00> : vector<1xf32>
    %200 = vector.multi_reduction <add>, %199, %cst_130 [0] : vector<4x1xf32> to vector<1xf32>
    %201 = vector.shape_cast %200 : vector<1xf32> to vector<1x1xf32>
    %202 = arith.mulf %185, %7 : vector<4x4xf32>
    %cst_131 = arith.constant dense<0.000000e+00> : vector<4xf32>
    %203 = vector.multi_reduction <add>, %202, %cst_131 [1] : vector<4x4xf32> to vector<4xf32>
    %204 = vector.shape_cast %203 : vector<4xf32> to vector<4x1xf32>
    %cst_132 = arith.constant dense<0.000000e+00> : vector<1xf32>
    %205 = vector.multi_reduction <add>, %204, %cst_132 [0] : vector<4x1xf32> to vector<1xf32>
    %206 = vector.shape_cast %205 : vector<1xf32> to vector<1x1xf32>
    %207 = arith.mulf %185, %11 : vector<4x4xf32>
    %cst_133 = arith.constant dense<0.000000e+00> : vector<4xf32>
    %208 = vector.multi_reduction <add>, %207, %cst_133 [1] : vector<4x4xf32> to vector<4xf32>
    %209 = vector.shape_cast %208 : vector<4xf32> to vector<4x1xf32>
    %cst_134 = arith.constant dense<0.000000e+00> : vector<1xf32>
    %210 = vector.multi_reduction <add>, %209, %cst_134 [0] : vector<4x1xf32> to vector<1xf32>
    %211 = vector.shape_cast %210 : vector<1xf32> to vector<1x1xf32>
    %212 = arith.addf %196, %206 : vector<1x1xf32>
    %cst_135 = arith.constant 5.000000e-01 : f32
    %213 = vector.broadcast %cst_135 : f32 to vector<1x1xf32>
    %214 = arith.mulf %212, %213 : vector<1x1xf32>
    %215 = arith.addf %201, %211 : vector<1x1xf32>
    %cst_136 = arith.constant 5.000000e-01 : f32
    %216 = vector.broadcast %cst_136 : f32 to vector<1x1xf32>
    %217 = arith.mulf %215, %216 : vector<1x1xf32>
    %218 = arith.subf %206, %196 : vector<1x1xf32>
    %219 = arith.subf %211, %201 : vector<1x1xf32>
    %220 = tpu.concatenate %214, %217, %218, %219 in 1 : vector<1x1xf32>, vector<1x1xf32>, vector<1x1xf32>, vector<1x1xf32> -> vector<1x4xf32>
    %c1_137 = arith.constant 1 : index
    %c0_138 = arith.constant 0 : index
    %221 = vector.load %arg9[%c1_137, %c0_138] : memref<2x4xf32, #tpu.memory_space<vmem>>, vector<1x4xf32>
    tpu.vector_store %arg9[%c1_137, %c0_138], %220 {strides = array<i32>} : memref<2x4xf32, #tpu.memory_space<vmem>>, vector<1x4xf32>,
    return
  }
}

</mosaic_0001>

<llo_original>
// kernel: _ceutrack_forward_jit.2
$region0: #{_ceutrack_forward_jit.2}
  #allocation0 [shape = 'u32[]', space=smem, size = 0x4, offset = 0x4, fixed_abs, tag = 'smem constant byte address 0x4 - core index']
  #allocation1 [shape = 'u32[72,128]{1,0:T(1,128)}', space=vmem, size = 0x9000, scoped, tag = 'internal scratch']
  %s0 = inlined_call_operand.vmem [shape: f32[80,192], index: 0, kind: input, shape index: {}]
  %s1 = inlined_call_operand.vmem [shape: f32[80,32], index: 1, kind: input, shape index: {}]
  %s2 = inlined_call_operand.vmem [shape: bf16[192,32], index: 2, kind: input, shape index: {}]
  %s3 = inlined_call_operand.vmem [shape: f32[1,32], index: 3, kind: input, shape index: {}]
  %s4 = inlined_call_operand.vmem [shape: f32[1,32], index: 4, kind: input, shape index: {}]
  %s5 = inlined_call_operand.vmem [shape: f32[1,32], index: 5, kind: input, shape index: {}]
  %s6 = inlined_call_operand.vmem [shape: bf16[32,96], index: 6, kind: input, shape index: {}]
  %s7 = inlined_call_operand.vmem [shape: f32[1,96], index: 7, kind: input, shape index: {}]
  %s8 = inlined_call_operand.vmem [shape: bf16[32,32], index: 8, kind: input, shape index: {}]
  %s9 = inlined_call_operand.vmem [shape: f32[1,32], index: 9, kind: input, shape index: {}]
  %s10 = inlined_call_operand.vmem [shape: f32[1,32], index: 10, kind: input, shape index: {}]
  %s11 = inlined_call_operand.vmem [shape: f32[1,32], index: 11, kind: input, shape index: {}]
  %s12 = inlined_call_operand.vmem [shape: bf16[32,64], index: 12, kind: input, shape index: {}]
  %s13 = inlined_call_operand.vmem [shape: f32[1,64], index: 13, kind: input, shape index: {}]
  %s14 = inlined_call_operand.vmem [shape: bf16[64,32], index: 14, kind: input, shape index: {}]
  %s15 = inlined_call_operand.vmem [shape: f32[1,32], index: 15, kind: input, shape index: {}]
  %s16 = inlined_call_operand.vmem [shape: f32[2,32,32], index: 16, kind: output, shape index: {}]
  %s17 = sld [smem:[#allocation0]]
  $region74: #{_ceutrack_forward_jit.2} parent=0
    _
  %s19 = ssub.s32 1, %s17
  %s20 = scalar_select 0, %s19, %s17
  // Predicated region
  $region2: #{_ceutrack_forward_jit.2} parent=0 // pred_check
    _
  $region3: #{_ceutrack_forward_jit.2} parent=0 // pred_check_branch
    %22 = sbr.rel (0) target = $region5
  $region4: #{_ceutrack_forward_jit.2} parent=0 // pred_region
    _
  $region5: #{_ceutrack_forward_jit.2} parent=0 // pred_fallthru
    _
  // Predicated region
  $region6: #{_ceutrack_forward_jit.2} parent=0 // pred_check
    _
  $region7: #{_ceutrack_forward_jit.2} parent=0 // pred_check_branch
    %24 = sbr.rel (0) target = $region9
  $region8: #{_ceutrack_forward_jit.2} parent=0 // pred_region
    _
  $region9: #{_ceutrack_forward_jit.2} parent=0 // pred_fallthru
    _
  // Predicated region
  $region10: #{_ceutrack_forward_jit.2} parent=0 // pred_check
    _
  $region11: #{_ceutrack_forward_jit.2} parent=0 // pred_check_branch
    %26 = sbr.rel (0) target = $region13
  $region12: #{_ceutrack_forward_jit.2} parent=0 // pred_region
    _
  $region13: #{_ceutrack_forward_jit.2} parent=0 // pred_fallthru
    _
  // Predicated region
  $region14: #{_ceutrack_forward_jit.2} parent=0 // pred_check
    _
  $region15: #{_ceutrack_forward_jit.2} parent=0 // pred_check_branch
    %28 = sbr.rel (0) target = $region17
  $region16: #{_ceutrack_forward_jit.2} parent=0 // pred_region
    _
  $region17: #{_ceutrack_forward_jit.2} parent=0 // pred_fallthru
    _
  // Predicated region
  $region18: #{_ceutrack_forward_jit.2} parent=0 // pred_check
    _
  $region19: #{_ceutrack_forward_jit.2} parent=0 // pred_check_branch
    %30 = sbr.rel (0) target = $region21
  $region20: #{_ceutrack_forward_jit.2} parent=0 // pred_region
    _
  $region21: #{_ceutrack_forward_jit.2} parent=0 // pred_fallthru
    _
  // Predicated region
  $region22: #{_ceutrack_forward_jit.2} parent=0 // pred_check
    _
  $region23: #{_ceutrack_forward_jit.2} parent=0 // pred_check_branch
    %32 = sbr.rel (0) target = $region25
  $region24: #{_ceutrack_forward_jit.2} parent=0 // pred_region
    _
  $region25: #{_ceutrack_forward_jit.2} parent=0 // pred_fallthru
    _
  // Predicated region
  $region26: #{_ceutrack_forward_jit.2} parent=0 // pred_check
    _
  $region27: #{_ceutrack_forward_jit.2} parent=0 // pred_check_branch
    %34 = sbr.rel (0) target = $region29
  $region28: #{_ceutrack_forward_jit.2} parent=0 // pred_region
    _
  $region29: #{_ceutrack_forward_jit.2} parent=0 // pred_fallthru
    _
  // Predicated region
  $region30: #{_ceutrack_forward_jit.2} parent=0 // pred_check
    _
  $region31: #{_ceutrack_forward_jit.2} parent=0 // pred_check_branch
    %36 = sbr.rel (0) target = $region33
  $region32: #{_ceutrack_forward_jit.2} parent=0 // pred_region
    _
  $region33: #{_ceutrack_forward_jit.2} parent=0 // pred_fallthru
    _
  // Predicated region
  $region34: #{_ceutrack_forward_jit.2} parent=0 // pred_check
    _
  $region35: #{_ceutrack_forward_jit.2} parent=0 // pred_check_branch
    %38 = sbr.rel (0) target = $region37
  $region36: #{_ceutrack_forward_jit.2} parent=0 // pred_region
    _
  $region37: #{_ceutrack_forward_jit.2} parent=0 // pred_fallthru
    _
  // Predicated region
  $region38: #{_ceutrack_forward_jit.2} parent=0 // pred_check
    _
  $region39: #{_ceutrack_forward_jit.2} parent=0 // pred_check_branch
    %40 = sbr.rel (0) target = $region41
  $region40: #{_ceutrack_forward_jit.2} parent=0 // pred_region
    _
  $region41: #{_ceutrack_forward_jit.2} parent=0 // pred_fallthru
    _
  // Predicated region
  $region42: #{_ceutrack_forward_jit.2} parent=0 // pred_check
    _
  $region43: #{_ceutrack_forward_jit.2} parent=0 // pred_check_branch
    %42 = sbr.rel (0) target = $region45
  $region44: #{_ceutrack_forward_jit.2} parent=0 // pred_region
    _
  $region45: #{_ceutrack_forward_jit.2} parent=0 // pred_fallthru
    _
  // Predicated region
  $region46: #{_ceutrack_forward_jit.2} parent=0 // pred_check
    _
  $region47: #{_ceutrack_forward_jit.2} parent=0 // pred_check_branch
    %44 = sbr.rel (0) target = $region49
  $region48: #{_ceutrack_forward_jit.2} parent=0 // pred_region
    _
  $region49: #{_ceutrack_forward_jit.2} parent=0 // pred_fallthru
    _
  // Predicated region
  $region50: #{_ceutrack_forward_jit.2} parent=0 // pred_check
    _
  $region51: #{_ceutrack_forward_jit.2} parent=0 // pred_check_branch
    %46 = sbr.rel (0) target = $region53
  $region52: #{_ceutrack_forward_jit.2} parent=0 // pred_region
    _
  $region53: #{_ceutrack_forward_jit.2} parent=0 // pred_fallthru
    _
  // Predicated region
  $region54: #{_ceutrack_forward_jit.2} parent=0 // pred_check
    _
  $region55: #{_ceutrack_forward_jit.2} parent=0 // pred_check_branch
    %48 = sbr.rel (0) target = $region57
  $region56: #{_ceutrack_forward_jit.2} parent=0 // pred_region
    _
  $region57: #{_ceutrack_forward_jit.2} parent=0 // pred_fallthru
    _
  // Predicated region
  $region58: #{_ceutrack_forward_jit.2} parent=0 // pred_check
    _
  $region59: #{_ceutrack_forward_jit.2} parent=0 // pred_check_branch
    %50 = sbr.rel (0) target = $region61
  $region60: #{_ceutrack_forward_jit.2} parent=0 // pred_region
    _
  $region61: #{_ceutrack_forward_jit.2} parent=0 // pred_fallthru
    _
  // Predicated region
  $region62: #{_ceutrack_forward_jit.2} parent=0 // pred_check
    _
  $region63: #{_ceutrack_forward_jit.2} parent=0 // pred_check_branch
    %52 = sbr.rel (0) target = $region65
  $region64: #{_ceutrack_forward_jit.2} parent=0 // pred_region
    _
  $region65: #{_ceutrack_forward_jit.2} parent=0 // pred_fallthru
    _
  %v54 = vld [vmem:[%s0] sm:$0xff]
  %v55 = vld [vmem:[%s0 + $0x8] sm:$0xff]
  %v56 = vld [vmem:[%s0 + $0x10] sm:$0xff]
  %v57 = vld [vmem:[%s0 + $0x18] sm:$0xff]
  %v58 = vld [vmem:[%s0 + $0x20] sm:$0xff]
  %v59 = vld [vmem:[%s0 + $0x28] sm:$0xff]
  %v60 = vld [vmem:[%s0 + $0x30] sm:$0xff]
  %v61 = vld [vmem:[%s0 + $0x38] sm:$0xff]
  %v62 = vld [vmem:[%s0 + $0x40] sm:$0xff]
  %v63 = vld [vmem:[%s0 + $0x48] sm:$0xff]
  %v64 = vld [vmem:[%s0 + $0x50] sm:$0xff]
  %v65 = vld [vmem:[%s0 + $0x58] sm:$0xff]
  %v66 = vld [vmem:[%s0 + $0x60] sm:$0xff]
  %v67 = vld [vmem:[%s0 + $0x68] sm:$0xff]
  %v68 = vld [vmem:[%s0 + $0x70] sm:$0xff]
  %v69 = vld [vmem:[%s0 + $0x78] sm:$0xff]
  %v70 = vld [vmem:[%s0 + $0x80] sm:$0xff]
  %v71 = vld [vmem:[%s0 + $0x88] sm:$0xff]
  %v72 = vld [vmem:[%s0 + $0x90] sm:$0xff]
  %v73 = vld [vmem:[%s0 + $0x98] sm:$0xff]
  %v74 = vpack.c.bf16 %v56, %v54
  %v75 = vpack.c.bf16 %v57, %v55
  %v76 = vpack.c.bf16 %v60, %v58
  %v77 = vpack.c.bf16 %v61, %v59
  %v78 = vpack.c.bf16 %v64, %v62
  %v79 = vpack.c.bf16 %v65, %v63
  %v80 = vpack.c.bf16 %v68, %v66
  %v81 = vpack.c.bf16 %v69, %v67
  %v82 = vpack.c.bf16 %v72, %v70
  %v83 = vpack.c.bf16 %v73, %v71
  %v84 = vld [vmem:[%s2] sm:$0xf]
  %v85 = vld [vmem:[%s2 + $0x4] sm:$0xf]
  %v86 = vld [vmem:[%s2 + $0x8] sm:$0xf]
  %v87 = vld [vmem:[%s2 + $0xc] sm:$0xf]
  %v88 = vld [vmem:[%s2 + $0x10] sm:$0xf]
  %v89 = vld [vmem:[%s2 + $0x14] sm:$0xf]
  %v90 = vld [vmem:[%s2 + $0x18] sm:$0xf]
  %v91 = vld [vmem:[%s2 + $0x1c] sm:$0xf]
  %v92 = vld [vmem:[%s2 + $0x20] sm:$0xf]
  %v93 = vld [vmem:[%s2 + $0x24] sm:$0xf]
  %v94 = vld [vmem:[%s2 + $0x28] sm:$0xf]
  %v95 = vld [vmem:[%s2 + $0x2c] sm:$0xf]
  %v96 = vld [vmem:[%s2 + $0x30] sm:$0xf]
  %v97 = vld [vmem:[%s2 + $0x34] sm:$0xf]
  %v98 = vld [vmem:[%s2 + $0x38] sm:$0xf]
  %v99 = vld [vmem:[%s2 + $0x3c] sm:$0xf]
  %v100 = vld [vmem:[%s2 + $0x40] sm:$0xf]
  %v101 = vld [vmem:[%s2 + $0x44] sm:$0xf]
  %v102 = vld [vmem:[%s2 + $0x48] sm:$0xf]
  %v103 = vld [vmem:[%s2 + $0x4c] sm:$0xf]
  %v104 = vld [vmem:[%s2 + $0x50] sm:$0xf]
  %v105 = vld [vmem:[%s2 + $0x54] sm:$0xf]
  %v106 = vld [vmem:[%s2 + $0x58] sm:$0xf]
  %v107 = vld [vmem:[%s2 + $0x5c] sm:$0xf]
  %v108 = vld [vmem:[%s3] sm:$0x1]
  %v110 = vperm.slane %v108, 0
  %v136 = vunpack.c.l.b16 %v84
  %v137 = vunpack.c.l.b16 %v85
  %v138 = vunpack.c.l.b16 %v86
  %v139 = vunpack.c.l.b16 %v87
  %v140 = vunpack.c.l.b16 %v88
  %v141 = vunpack.c.l.b16 %v89
  %v142 = vunpack.c.l.b16 %v90
  %v143 = vunpack.c.l.b16 %v91
  %v144 = vunpack.c.l.b16 %v92
  %v145 = vunpack.c.l.b16 %v93
  %v146 = vunpack.c.l.b16 %v94
  %v147 = vunpack.c.l.b16 %v95
  %v148 = vunpack.c.l.b16 %v96
  %v149 = vunpack.c.l.b16 %v97
  %v150 = vunpack.c.l.b16 %v98
  %v151 = vunpack.c.l.b16 %v99
  %v152 = vunpack.c.l.b16 %v100
  %v153 = vunpack.c.l.b16 %v101
  %v154 = vunpack.c.l.b16 %v102
  %v155 = vunpack.c.l.b16 %v103
  %v156 = vunpack.c.l.b16 %v104
  %v157 = vunpack.c.l.b16 %v105
  %v158 = vunpack.c.l.b16 %v106
  %v159 = vunpack.c.l.b16 %v107
  %v160 = vpack.c.b16 %v137, %v136
  %v161 = vpack.c.b16 %v139, %v138
  %v162 = vpack.c.b16 %v141, %v140
  %v163 = vpack.c.b16 %v143, %v142
  %v164 = vpack.c.b16 %v145, %v144
  %v165 = vpack.c.b16 %v147, %v146
  %v166 = vpack.c.b16 %v149, %v148
  %v167 = vpack.c.b16 %v151, %v150
  %v168 = vpack.c.b16 %v153, %v152
  %v169 = vpack.c.b16 %v155, %v154
  %v170 = vpack.c.b16 %v157, %v156
  %v171 = vpack.c.b16 %v159, %v158
  %vm184 = vcmask 523264
  %v186 = vsel %vm184, %v75, 0
  %v189 = vsel %vm184, %v77, 0
  %v192 = vsel %vm184, %v79, 0
  %v195 = vsel %vm184, %v81, 0
  %v198 = vsel %vm184, %v83, 0
  %200 = vmatpush.bf16.msra.mxu0 %v167
  %201 = vmatpush.bf16.msra.mxu0 %v166
  %202 = vmatpush.bf16.msra.mxu0 %v165
  %203 = vmatpush.bf16.msra.mxu0 %v164
  %204 = vmatpush.bf16.msra.mxu0 %v163
  %205 = vmatpush.bf16.msra.mxu0 %v162
  %206 = vmatpush.bf16.msra.mxu0 %v161
  %207 = vmatpush.bf16.msra.mxu0 %v160
  %208 = vmatmul.bf16.gmra.mxu0 %v74
  %v209 = vpop.f32.mrf.mxu0
  %v210 = vadd.f32 %v110, %v209
  %v211 = vpop.f32.mrf.mxu0
  %v212 = vadd.f32 %v110, %v211
  %213 = vmatmul.bf16.gmra.mxu0 %v76
  %v214 = vpop.f32.mrf.mxu0
  %v215 = vadd.f32 %v110, %v214
  %v216 = vpop.f32.mrf.mxu0
  %v217 = vadd.f32 %v110, %v216
  %218 = vmatmul.bf16.gmra.mxu0 %v78
  %v219 = vpop.f32.mrf.mxu0
  %v220 = vadd.f32 %v110, %v219
  %v221 = vpop.f32.mrf.mxu0
  %v222 = vadd.f32 %v110, %v221
  %223 = vmatmul.bf16.gmra.mxu0 %v80
  %v224 = vpop.f32.mrf.mxu0
  %v225 = vadd.f32 %v110, %v224
  %v226 = vpop.f32.mrf.mxu0
  %v227 = vadd.f32 %v110, %v226
  %228 = vmatmul.bf16.gmra.mxu0 %v82
  %v229 = vpop.f32.mrf.mxu0
  %v230 = vadd.f32 %v110, %v229
  %v231 = vpop.f32.mrf.mxu0
  %v232 = vadd.f32 %v110, %v231
  %233 = vdwg.mxu0
  %234 = vmatpush.bf16.msra.mxu0 0
  %235 = vmatpush.bf16.msra.mxu0 0
  %236 = vmatpush.bf16.msra.mxu0 0
  %237 = vmatpush.bf16.msra.mxu0 0
  %238 = vmatpush.bf16.msra.mxu0 %v171
  %239 = vmatpush.bf16.msra.mxu0 %v170
  %240 = vmatpush.bf16.msra.mxu0 %v169
  %241 = vmatpush.bf16.msra.mxu0 %v168
  %242 = vmatmul.bf16.gmra.mxu0 %v186
  %v243 = vpop.f32.mrf.mxu0
  %v244 = vadd.f32 %v210, %v243
  %v245 = vpop.f32.mrf.mxu0
  %v246 = vadd.f32 %v212, %v245
  %247 = vmatmul.bf16.gmra.mxu0 %v189
  %v248 = vpop.f32.mrf.mxu0
  %v249 = vadd.f32 %v215, %v248
  %v250 = vpop.f32.mrf.mxu0
  %v251 = vadd.f32 %v217, %v250
  %252 = vmatmul.bf16.gmra.mxu0 %v192
  %v253 = vpop.f32.mrf.mxu0
  %v254 = vadd.f32 %v220, %v253
  %v255 = vpop.f32.mrf.mxu0
  %v256 = vadd.f32 %v222, %v255
  %257 = vmatmul.bf16.gmra.mxu0 %v195
  %v258 = vpop.f32.mrf.mxu0
  %v259 = vadd.f32 %v225, %v258
  %v260 = vpop.f32.mrf.mxu0
  %v261 = vadd.f32 %v227, %v260
  %262 = vmatmul.bf16.gmra.mxu0 %v198
  %v263 = vpop.f32.mrf.mxu0
  %v264 = vadd.f32 %v230, %v263
  %v265 = vpop.f32.mrf.mxu0
  %v266 = vadd.f32 %v232, %v265
  %267 = vdwg.mxu0
  %v268 = vld [vmem:[%s1] sm:$0xff]
  %v269 = vld [vmem:[%s1 + $0x8] sm:$0xff]
  %v270 = vld [vmem:[%s1 + $0x10] sm:$0xff]
  %v271 = vld [vmem:[%s1 + $0x18] sm:$0xff]
  %v272 = vld [vmem:[%s1 + $0x20] sm:$0xff]
  %v273 = vld [vmem:[%s1 + $0x28] sm:$0xff]
  %v274 = vld [vmem:[%s1 + $0x30] sm:$0xff]
  %v275 = vld [vmem:[%s1 + $0x38] sm:$0xff]
  %v276 = vld [vmem:[%s1 + $0x40] sm:$0xff]
  %v277 = vld [vmem:[%s1 + $0x48] sm:$0xff]
  %v278 = vadd.f32 %v244, %v268
  %v279 = vadd.f32 %v246, %v269
  %v280 = vadd.f32 %v249, %v270
  %v281 = vadd.f32 %v251, %v271
  %v282 = vadd.f32 %v254, %v272
  %v283 = vadd.f32 %v256, %v273
  %v284 = vadd.f32 %v259, %v274
  %v285 = vadd.f32 %v261, %v275
  %v286 = vadd.f32 %v264, %v276
  %v287 = vadd.f32 %v266, %v277
  %vm288 = vcmask 261120
  %v289 = vsel %vm288, %v278, 0.0
  %290 = vadd.xlane.f32.xlu0 %v289
  %v291 = vpop.xlane.xlu0 %290
  %v292 = vsel %vm288, %v279, 0.0
  %293 = vadd.xlane.f32.xlu0 %v292
  %v294 = vpop.xlane.xlu0 %293
  %v295 = vsel %vm288, %v280, 0.0
  %296 = vadd.xlane.f32.xlu0 %v295
  %v297 = vpop.xlane.xlu0 %296
  %v298 = vsel %vm288, %v281, 0.0
  %299 = vadd.xlane.f32.xlu0 %v298
  %v300 = vpop.xlane.xlu0 %299
  %v301 = vsel %vm288, %v282, 0.0
  %302 = vadd.xlane.f32.xlu0 %v301
  %v303 = vpop.xlane.xlu0 %302
  %v304 = vsel %vm288, %v283, 0.0
  %305 = vadd.xlane.f32.xlu0 %v304
  %v306 = vpop.xlane.xlu0 %305
  %v307 = vsel %vm288, %v284, 0.0
  %308 = vadd.xlane.f32.xlu0 %v307
  %v309 = vpop.xlane.xlu0 %308
  %v310 = vsel %vm288, %v285, 0.0
  %311 = vadd.xlane.f32.xlu0 %v310
  %v312 = vpop.xlane.xlu0 %311
  %v313 = vsel %vm288, %v286, 0.0
  %314 = vadd.xlane.f32.xlu0 %v313
  %v315 = vpop.xlane.xlu0 %314
  %v316 = vsel %vm288, %v287, 0.0
  %317 = vadd.xlane.f32.xlu0 %v316
  %v318 = vpop.xlane.xlu0 %317
  %v319 = vrcp.pop 32.0
  %v320 = vmul.f32 32.0, %v319
  %v321 = vsub.f32 1.0, %v320
  %v322 = vmul.f32 %v319, %v321
  %v323 = vadd.f32 %v319, %v322
  %vm324 = vweird.f32 %v319
  %v325 = vsel %vm324, %v319, %v323
  %v326 = vmul.f32 %v291, %v325
  %v327 = vmul.f32 %v294, %v325
  %v328 = vmul.f32 %v297, %v325
  %v329 = vmul.f32 %v300, %v325
  %v330 = vmul.f32 %v303, %v325
  %v331 = vmul.f32 %v306, %v325
  %v332 = vmul.f32 %v309, %v325
  %v333 = vmul.f32 %v312, %v325
  %v334 = vmul.f32 %v315, %v325
  %v335 = vmul.f32 %v318, %v325
  %v336 = vsub.f32 %v278, %v326
  %v337 = vsub.f32 %v279, %v327
  %v338 = vsub.f32 %v280, %v328
  %v339 = vsub.f32 %v281, %v329
  %v340 = vsub.f32 %v282, %v330
  %v341 = vsub.f32 %v283, %v331
  %v342 = vsub.f32 %v284, %v332
  %v343 = vsub.f32 %v285, %v333
  %v344 = vsub.f32 %v286, %v334
  %v345 = vsub.f32 %v287, %v335
  %v346 = vmul.f32 %v336, %v336
  %v347 = vmul.f32 %v337, %v337
  %v348 = vmul.f32 %v338, %v338
  %v349 = vmul.f32 %v339, %v339
  %v350 = vmul.f32 %v340, %v340
  %v351 = vmul.f32 %v341, %v341
  %v352 = vmul.f32 %v342, %v342
  %v353 = vmul.f32 %v343, %v343
  %v354 = vmul.f32 %v344, %v344
  %v355 = vmul.f32 %v345, %v345
  %v356 = vsel %vm288, %v346, 0.0
  %357 = vadd.xlane.f32.xlu0 %v356
  %v358 = vpop.xlane.xlu0 %357
  %v359 = vsel %vm288, %v347, 0.0
  %360 = vadd.xlane.f32.xlu0 %v359
  %v361 = vpop.xlane.xlu0 %360
  %v362 = vsel %vm288, %v348, 0.0
  %363 = vadd.xlane.f32.xlu0 %v362
  %v364 = vpop.xlane.xlu0 %363
  %v365 = vsel %vm288, %v349, 0.0
  %366 = vadd.xlane.f32.xlu0 %v365
  %v367 = vpop.xlane.xlu0 %366
  %v368 = vsel %vm288, %v350, 0.0
  %369 = vadd.xlane.f32.xlu0 %v368
  %v370 = vpop.xlane.xlu0 %369
  %v371 = vsel %vm288, %v351, 0.0
  %372 = vadd.xlane.f32.xlu0 %v371
  %v373 = vpop.xlane.xlu0 %372
  %v374 = vsel %vm288, %v352, 0.0
  %375 = vadd.xlane.f32.xlu0 %v374
  %v376 = vpop.xlane.xlu0 %375
  %v377 = vsel %vm288, %v353, 0.0
  %378 = vadd.xlane.f32.xlu0 %v377
  %v379 = vpop.xlane.xlu0 %378
  %v380 = vsel %vm288, %v354, 0.0
  %381 = vadd.xlane.f32.xlu0 %v380
  %v382 = vpop.xlane.xlu0 %381
  %v383 = vsel %vm288, %v355, 0.0
  %384 = vadd.xlane.f32.xlu0 %v383
  %v385 = vpop.xlane.xlu0 %384
  %v386 = vmul.f32 %v358, %v325
  %v387 = vmul.f32 %v361, %v325
  %v388 = vmul.f32 %v364, %v325
  %v389 = vmul.f32 %v367, %v325
  %v390 = vmul.f32 %v370, %v325
  %v391 = vmul.f32 %v373, %v325
  %v392 = vmul.f32 %v376, %v325
  %v393 = vmul.f32 %v379, %v325
  %v394 = vmul.f32 %v382, %v325
  %v395 = vmul.f32 %v385, %v325
  %v396 = vadd.f32 %v386, 1e-06
  %v397 = vadd.f32 %v387, 1e-06
  %v398 = vadd.f32 %v388, 1e-06
  %v399 = vadd.f32 %v389, 1e-06
  %v400 = vadd.f32 %v390, 1e-06
  %v401 = vadd.f32 %v391, 1e-06
  %v402 = vadd.f32 %v392, 1e-06
  %v403 = vadd.f32 %v393, 1e-06
  %v404 = vadd.f32 %v394, 1e-06
  %v405 = vadd.f32 %v395, 1e-06
  %v406 = vrsqrt.pop %v396
  %v407 = vmul.f32 %v406, %v396
  %v408 = vmul.f32 %v407, %v406
  %v409 = vmul.f32 0.5, %v408
  %v410 = vsub.f32 1.5, %v409
  %v411 = vmul.f32 %v406, %v410
  %vm412 = vweird.f32 %v396
  %vm413 = vweird.f32 %v406
  %vm414 = vmor %vm412, %vm413
  %v415 = vsel %vm414, %v406, %v411
  %v416 = vrsqrt.pop %v397
  %v417 = vmul.f32 %v416, %v397
  %v418 = vmul.f32 %v417, %v416
  %v419 = vmul.f32 0.5, %v418
  %v420 = vsub.f32 1.5, %v419
  %v421 = vmul.f32 %v416, %v420
  %vm422 = vweird.f32 %v397
  %vm423 = vweird.f32 %v416
  %vm424 = vmor %vm422, %vm423
  %v425 = vsel %vm424, %v416, %v421
  %v426 = vrsqrt.pop %v398
  %v427 = vmul.f32 %v426, %v398
  %v428 = vmul.f32 %v427, %v426
  %v429 = vmul.f32 0.5, %v428
  %v430 = vsub.f32 1.5, %v429
  %v431 = vmul.f32 %v426, %v430
  %vm432 = vweird.f32 %v398
  %vm433 = vweird.f32 %v426
  %vm434 = vmor %vm432, %vm433
  %v435 = vsel %vm434, %v426, %v431
  %v436 = vrsqrt.pop %v399
  %v437 = vmul.f32 %v436, %v399
  %v438 = vmul.f32 %v437, %v436
  %v439 = vmul.f32 0.5, %v438
  %v440 = vsub.f32 1.5, %v439
  %v441 = vmul.f32 %v436, %v440
  %vm442 = vweird.f32 %v399
  %vm443 = vweird.f32 %v436
  %vm444 = vmor %vm442, %vm443
  %v445 = vsel %vm444, %v436, %v441
  %v446 = vrsqrt.pop %v400
  %v447 = vmul.f32 %v446, %v400
  %v448 = vmul.f32 %v447, %v446
  %v449 = vmul.f32 0.5, %v448
  %v450 = vsub.f32 1.5, %v449
  %v451 = vmul.f32 %v446, %v450
  %vm452 = vweird.f32 %v400
  %vm453 = vweird.f32 %v446
  %vm454 = vmor %vm452, %vm453
  %v455 = vsel %vm454, %v446, %v451
  %v456 = vrsqrt.pop %v401
  %v457 = vmul.f32 %v456, %v401
  %v458 = vmul.f32 %v457, %v456
  %v459 = vmul.f32 0.5, %v458
  %v460 = vsub.f32 1.5, %v459
  %v461 = vmul.f32 %v456, %v460
  %vm462 = vweird.f32 %v401
  %vm463 = vweird.f32 %v456
  %vm464 = vmor %vm462, %vm463
  %v465 = vsel %vm464, %v456, %v461
  %v466 = vrsqrt.pop %v402
  %v467 = vmul.f32 %v466, %v402
  %v468 = vmul.f32 %v467, %v466
  %v469 = vmul.f32 0.5, %v468
  %v470 = vsub.f32 1.5, %v469
  %v471 = vmul.f32 %v466, %v470
  %vm472 = vweird.f32 %v402
  %vm473 = vweird.f32 %v466
  %vm474 = vmor %vm472, %vm473
  %v475 = vsel %vm474, %v466, %v471
  %v476 = vrsqrt.pop %v403
  %v477 = vmul.f32 %v476, %v403
  %v478 = vmul.f32 %v477, %v476
  %v479 = vmul.f32 0.5, %v478
  %v480 = vsub.f32 1.5, %v479
  %v481 = vmul.f32 %v476, %v480
  %vm482 = vweird.f32 %v403
  %vm483 = vweird.f32 %v476
  %vm484 = vmor %vm482, %vm483
  %v485 = vsel %vm484, %v476, %v481
  %v486 = vrsqrt.pop %v404
  %v487 = vmul.f32 %v486, %v404
  %v488 = vmul.f32 %v487, %v486
  %v489 = vmul.f32 0.5, %v488
  %v490 = vsub.f32 1.5, %v489
  %v491 = vmul.f32 %v486, %v490
  %vm492 = vweird.f32 %v404
  %vm493 = vweird.f32 %v486
  %vm494 = vmor %vm492, %vm493
  %v495 = vsel %vm494, %v486, %v491
  %v496 = vrsqrt.pop %v405
  %v497 = vmul.f32 %v496, %v405
  %v498 = vmul.f32 %v497, %v496
  %v499 = vmul.f32 0.5, %v498
  %v500 = vsub.f32 1.5, %v499
  %v501 = vmul.f32 %v496, %v500
  %vm502 = vweird.f32 %v405
  %vm503 = vweird.f32 %v496
  %vm504 = vmor %vm502, %vm503
  %v505 = vsel %vm504, %v496, %v501
  %v506 = vmul.f32 %v336, %v415
  %v507 = vmul.f32 %v337, %v425
  %v508 = vmul.f32 %v338, %v435
  %v509 = vmul.f32 %v339, %v445
  %v510 = vmul.f32 %v340, %v455
  %v511 = vmul.f32 %v341, %v465
  %v512 = vmul.f32 %v342, %v475
  %v513 = vmul.f32 %v343, %v485
  %v514 = vmul.f32 %v344, %v495
  %v515 = vmul.f32 %v345, %v505
  %v516 = vld [vmem:[%s4] sm:$0x1]
  %v518 = vperm.slane %v516, 0
  %v520 = vmul.f32 %v506, %v518
  %v521 = vmul.f32 %v507, %v518
  %v522 = vmul.f32 %v508, %v518
  %v523 = vmul.f32 %v509, %v518
  %v524 = vmul.f32 %v510, %v518
  %v525 = vmul.f32 %v511, %v518
  %v526 = vmul.f32 %v512, %v518
  %v527 = vmul.f32 %v513, %v518
  %v528 = vmul.f32 %v514, %v518
  %v529 = vmul.f32 %v515, %v518
  %v530 = vld [vmem:[%s5] sm:$0x1]
  %v532 = vperm.slane %v530, 0
  %v534 = vadd.f32 %v520, %v532
  %v535 = vadd.f32 %v521, %v532
  %v536 = vadd.f32 %v522, %v532
  %v537 = vadd.f32 %v523, %v532
  %v538 = vadd.f32 %v524, %v532
  %v539 = vadd.f32 %v525, %v532
  %v540 = vadd.f32 %v526, %v532
  %v541 = vadd.f32 %v527, %v532
  %v542 = vadd.f32 %v528, %v532
  %v543 = vadd.f32 %v529, %v532
  %v544 = vpack.c.bf16 %v535, %v534
  %v545 = vpack.c.bf16 %v537, %v536
  %v546 = vpack.c.bf16 %v539, %v538
  %v547 = vpack.c.bf16 %v541, %v540
  %v548 = vpack.c.bf16 %v543, %v542
  %v549 = vld [vmem:[%s6] sm:$0xf]
  %v550 = vld [vmem:[%s6 + $0x4] sm:$0xf]
  %v551 = vld [vmem:[%s6 + $0x8] sm:$0xf]
  %v552 = vld [vmem:[%s6 + $0xc] sm:$0xf]
  %v553 = vld [vmem:[%s7] sm:$0x1]
  %v555 = vperm.slane %v553, 0
  %v561 = vunpack.c.l.b16 %v549
  %v562 = vunpack.c.l.b16 %v550
  %v563 = vunpack.c.l.b16 %v551
  %v564 = vunpack.c.l.b16 %v552
  %v565 = vpack.c.b16 %v562, %v561
  %v566 = vpack.c.b16 %v564, %v563
  %v570 = vsel %vm288, %v544, 0
  %v573 = vsel %vm288, %v545, 0
  %v576 = vsel %vm288, %v546, 0
  %v579 = vsel %vm288, %v547, 0
  %v582 = vsel %vm288, %v548, 0
  %584 = vmatpush.bf16.msra.mxu0 0
  %585 = vmatpush.bf16.msra.mxu0 0
  %586 = vmatpush.bf16.msra.mxu0 0
  %587 = vmatpush.bf16.msra.mxu0 0
  %588 = vmatpush.bf16.msra.mxu0 0
  %589 = vmatpush.bf16.msra.mxu0 0
  %590 = vmatpush.bf16.msra.mxu0 %v566
  %591 = vmatpush.bf16.msra.mxu0 %v565
  %592 = vmatmul.bf16.gmra.mxu0 %v570
  %v593 = vpop.f32.mrf.mxu0
  %v594 = vadd.f32 %v555, %v593
  %v595 = vpop.f32.mrf.mxu0
  %v596 = vadd.f32 %v555, %v595
  %597 = vmatmul.bf16.gmra.mxu0 %v573
  %v598 = vpop.f32.mrf.mxu0
  %v599 = vadd.f32 %v555, %v598
  %v600 = vpop.f32.mrf.mxu0
  %v601 = vadd.f32 %v555, %v600
  %602 = vmatmul.bf16.gmra.mxu0 %v576
  %v603 = vpop.f32.mrf.mxu0
  %v604 = vadd.f32 %v555, %v603
  %v605 = vpop.f32.mrf.mxu0
  %v606 = vadd.f32 %v555, %v605
  %607 = vmatmul.bf16.gmra.mxu0 %v579
  %v608 = vpop.f32.mrf.mxu0
  %v609 = vadd.f32 %v555, %v608
  %v610 = vpop.f32.mrf.mxu0
  %v611 = vadd.f32 %v555, %v610
  %612 = vmatmul.bf16.gmra.mxu0 %v582
  %v613 = vpop.f32.mrf.mxu0
  %v614 = vadd.f32 %v555, %v613
  %v615 = vpop.f32.mrf.mxu0
  %v616 = vadd.f32 %v555, %v615
  %617 = vdwg.mxu0
  %v618 = vmul.f32 %v594, 0.17677669
  %v619 = vmul.f32 %v596, 0.17677669
  %v620 = vmul.f32 %v599, 0.17677669
  %v621 = vmul.f32 %v601, 0.17677669
  %v622 = vmul.f32 %v604, 0.17677669
  %v623 = vmul.f32 %v606, 0.17677669
  %v624 = vmul.f32 %v609, 0.17677669
  %v625 = vmul.f32 %v611, 0.17677669
  %v626 = vmul.f32 %v614, 0.17677669
  %v627 = vmul.f32 %v616, 0.17677669
  %v628 = vpack.c.bf16 %v619, %v618
  %v629 = vpack.c.bf16 %v621, %v620
  %v630 = vpack.c.bf16 %v622, %v622
  %v631 = vpack.c.bf16 %v596, %v594
  %v632 = vpack.c.bf16 %v601, %v599
  %v633 = vpack.c.bf16 %v604, %v604
  %637 = vrot.lane.b32.xlu0 %v631, 96
  %v638 = vpop.permute.xlu0 %637
  %639 = vrot.lane.b32.xlu0 %v632, 96
  %v640 = vpop.permute.xlu0 %639
  %641 = vrot.lane.b32.xlu0 %v633, 96
  %v642 = vpop.permute.xlu0 %641
  %v644 = vsel %vm288, %v628, 0
  %v647 = vsel %vm288, %v629, 0
  %v650 = vsel %vm288, %v630, 0
  %v653 = vsel %vm288, %v638, 0
  %v656 = vsel %vm288, %v640, 0
  %v659 = vsel %vm288, %v642, 0
  %661 = vmatpush.bf16.xpose.msra.mxu0 0
  %662 = vmatpush.bf16.xpose.msra.mxu0 0
  %663 = vmatpush.bf16.xpose.msra.mxu0 0
  %664 = vmatpush.bf16.xpose.msra.mxu0 0
  %665 = vmatpush.bf16.xpose.msra.mxu0 0
  %666 = vmatpush.bf16.xpose.msra.mxu0 %v659
  %667 = vmatpush.bf16.xpose.msra.mxu0 %v656
  %668 = vmatpush.bf16.xpose.msra.mxu0 %v653
  %669 = vmatmul.bf16.gmra.mxu0 %v644
  %v670 = vpop.f32.mrf.mxu0
  %v671 = vadd.f32 0.0, %v670
  %v672 = vpop.f32.mrf.mxu0
  %v673 = vadd.f32 0.0, %v672
  %674 = vmatmul.bf16.gmra.mxu0 %v647
  %v675 = vpop.f32.mrf.mxu0
  %v676 = vadd.f32 0.0, %v675
  %v677 = vpop.f32.mrf.mxu0
  %v678 = vadd.f32 0.0, %v677
  %679 = vmatmul.bf16.gmra.mxu0 %v650
  %v680 = vpop.f32.mrf.mxu0
  %v681 = vadd.f32 0.0, %v680
  %v682 = vpop.f32.mrf.mxu0
  %683 = vdwg.mxu0
  %vm684 = vcmask 326656
  %v685 = vsel %vm684, %v671, -inf
  %686 = vmax.xlane.f32.xlu0 %v685
  %v687 = vpop.xlane.xlu0 %686
  %v688 = vsel %vm684, %v673, -inf
  %689 = vmax.xlane.f32.xlu0 %v688
  %v690 = vpop.xlane.xlu0 %689
  %v691 = vsel %vm684, %v676, -inf
  %692 = vmax.xlane.f32.xlu0 %v691
  %v693 = vpop.xlane.xlu0 %692
  %v694 = vsel %vm684, %v678, -inf
  %695 = vmax.xlane.f32.xlu0 %v694
  %v696 = vpop.xlane.xlu0 %695
  %v697 = vsel %vm684, %v681, -inf
  %698 = vmax.xlane.f32.xlu0 %v697
  %v699 = vpop.xlane.xlu0 %698
  %v700 = vsub.f32 %v671, %v687
  %v701 = vsub.f32 %v673, %v690
  %v702 = vsub.f32 %v676, %v693
  %v703 = vsub.f32 %v678, %v696
  %v704 = vsub.f32 %v681, %v699
  %v705 = vmul.f32 %v700, 1.442695
  %v706 = vpow.pop %v705
  %v707 = vmul.f32 %v701, 1.442695
  %v708 = vpow.pop %v707
  %v709 = vmul.f32 %v702, 1.442695
  %v710 = vpow.pop %v709
  %v711 = vmul.f32 %v703, 1.442695
  %v712 = vpow.pop %v711
  %v713 = vmul.f32 %v704, 1.442695
  %v714 = vpow.pop %v713
  %v715 = vsel %vm684, %v706, 0.0
  %716 = vadd.xlane.f32.xlu0 %v715
  %v717 = vpop.xlane.xlu0 %716
  %v718 = vsel %vm684, %v708, 0.0
  %719 = vadd.xlane.f32.xlu0 %v718
  %v720 = vpop.xlane.xlu0 %719
  %v721 = vsel %vm684, %v710, 0.0
  %722 = vadd.xlane.f32.xlu0 %v721
  %v723 = vpop.xlane.xlu0 %722
  %v724 = vsel %vm684, %v712, 0.0
  %725 = vadd.xlane.f32.xlu0 %v724
  %v726 = vpop.xlane.xlu0 %725
  %v727 = vsel %vm684, %v714, 0.0
  %728 = vadd.xlane.f32.xlu0 %v727
  %v729 = vpop.xlane.xlu0 %728
  %v730 = vrcp.pop %v717
  %v731 = vrcp.pop %v720
  %v732 = vrcp.pop %v723
  %v733 = vrcp.pop %v726
  %v734 = vrcp.pop %v729
  %v735 = vmul.f32 %v706, %v730
  %v736 = vmul.f32 %v708, %v731
  %v737 = vmul.f32 %v710, %v732
  %v738 = vmul.f32 %v712, %v733
  %v739 = vmul.f32 %v714, %v734
  %v740 = vpack.c.bf16 %v736, %v735
  %v741 = vpack.c.bf16 %v738, %v737
  %v742 = vpack.c.bf16 %v739, %v739
  %743 = vrot.lane.b32.xlu0 %v631, 64
  %v744 = vpop.permute.xlu0 %743
  %745 = vrot.lane.b32.xlu0 %v632, 64
  %v746 = vpop.permute.xlu0 %745
  %747 = vrot.lane.b32.xlu0 %v633, 64
  %v748 = vpop.permute.xlu0 %747
  %v752 = vsel %vm684, %v740, 0
  %v755 = vsel %vm684, %v741, 0
  %v758 = vsel %vm684, %v742, 0
  %vm760 = vcmask 1043456
  %v762 = vsel %vm760, %v748, 0
  %764 = vmatpush.bf16.msra.mxu0 0
  %765 = vmatpush.bf16.msra.mxu0 0
  %766 = vmatpush.bf16.msra.mxu0 0
  %767 = vmatpush.bf16.msra.mxu0 0
  %768 = vmatpush.bf16.msra.mxu0 0
  %769 = vmatpush.bf16.msra.mxu0 %v762
  %770 = vmatpush.bf16.msra.mxu0 %v746
  %771 = vmatpush.bf16.msra.mxu0 %v744
  %772 = vmatmul.bf16.gmra.mxu0 %v752
  %v773 = vpop.f32.mrf.mxu0
  %v774 = vadd.f32 0.0, %v773
  %v775 = vpop.f32.mrf.mxu0
  %v776 = vadd.f32 0.0, %v775
  %777 = vmatmul.bf16.gmra.mxu0 %v755
  %v778 = vpop.f32.mrf.mxu0
  %v779 = vadd.f32 0.0, %v778
  %v780 = vpop.f32.mrf.mxu0
  %v781 = vadd.f32 0.0, %v780
  %782 = vmatmul.bf16.gmra.mxu0 %v758
  %v783 = vpop.f32.mrf.mxu0
  %v784 = vadd.f32 0.0, %v783
  %v785 = vpop.f32.mrf.mxu0
  %786 = vdwg.mxu0
  %v787 = vpack.c.bf16 %v624, %v623
  %v788 = vpack.c.bf16 %v626, %v625
  %v789 = vpack.c.bf16 %v627, %v627
  %v790 = vpack.c.bf16 %v609, %v606
  %v791 = vpack.c.bf16 %v614, %v611
  %v792 = vpack.c.bf16 %v616, %v616
  %796 = vrot.lane.b32.xlu0 %v790, 96
  %v797 = vpop.permute.xlu0 %796
  %798 = vrot.lane.b32.xlu0 %v791, 96
  %v799 = vpop.permute.xlu0 %798
  %800 = vrot.lane.b32.xlu0 %v792, 96
  %v801 = vpop.permute.xlu0 %800
  %v803 = vsel %vm288, %v787, 0
  %v806 = vsel %vm288, %v788, 0
  %v809 = vsel %vm288, %v789, 0
  %v812 = vsel %vm288, %v797, 0
  %v815 = vsel %vm288, %v799, 0
  %v818 = vsel %vm288, %v801, 0
  %820 = vmatpush.bf16.xpose.msra.mxu0 0
  %821 = vmatpush.bf16.xpose.msra.mxu0 0
  %822 = vmatpush.bf16.xpose.msra.mxu0 0
  %823 = vmatpush.bf16.xpose.msra.mxu0 0
  %824 = vmatpush.bf16.xpose.msra.mxu0 0
  %825 = vmatpush.bf16.xpose.msra.mxu0 %v818
  %826 = vmatpush.bf16.xpose.msra.mxu0 %v815
  %827 = vmatpush.bf16.xpose.msra.mxu0 %v812
  %828 = vmatmul.bf16.gmra.mxu0 %v803
  %v829 = vpop.f32.mrf.mxu0
  %v830 = vadd.f32 0.0, %v829
  %v831 = vpop.f32.mrf.mxu0
  %v832 = vadd.f32 0.0, %v831
  %833 = vmatmul.bf16.gmra.mxu0 %v806
  %v834 = vpop.f32.mrf.mxu0
  %v835 = vadd.f32 0.0, %v834
  %v836 = vpop.f32.mrf.mxu0
  %v837 = vadd.f32 0.0, %v836
  %838 = vmatmul.bf16.gmra.mxu0 %v809
  %v839 = vpop.f32.mrf.mxu0
  %v840 = vadd.f32 0.0, %v839
  %v841 = vpop.f32.mrf.mxu0
  %842 = vdwg.mxu0
  %v843 = vsel %vm684, %v830, -inf
  %844 = vmax.xlane.f32.xlu0 %v843
  %v845 = vpop.xlane.xlu0 %844
  %v846 = vsel %vm684, %v832, -inf
  %847 = vmax.xlane.f32.xlu0 %v846
  %v848 = vpop.xlane.xlu0 %847
  %v849 = vsel %vm684, %v835, -inf
  %850 = vmax.xlane.f32.xlu0 %v849
  %v851 = vpop.xlane.xlu0 %850
  %v852 = vsel %vm684, %v837, -inf
  %853 = vmax.xlane.f32.xlu0 %v852
  %v854 = vpop.xlane.xlu0 %853
  %v855 = vsel %vm684, %v840, -inf
  %856 = vmax.xlane.f32.xlu0 %v855
  %v857 = vpop.xlane.xlu0 %856
  %v858 = vsub.f32 %v830, %v845
  %v859 = vsub.f32 %v832, %v848
  %v860 = vsub.f32 %v835, %v851
  %v861 = vsub.f32 %v837, %v854
  %v862 = vsub.f32 %v840, %v857
  %v863 = vmul.f32 %v858, 1.442695
  %v864 = vpow.pop %v863
  %v865 = vmul.f32 %v859, 1.442695
  %v866 = vpow.pop %v865
  %v867 = vmul.f32 %v860, 1.442695
  %v868 = vpow.pop %v867
  %v869 = vmul.f32 %v861, 1.442695
  %v870 = vpow.pop %v869
  %v871 = vmul.f32 %v862, 1.442695
  %v872 = vpow.pop %v871
  %v873 = vsel %vm684, %v864, 0.0
  %874 = vadd.xlane.f32.xlu0 %v873
  %v875 = vpop.xlane.xlu0 %874
  %v876 = vsel %vm684, %v866, 0.0
  %877 = vadd.xlane.f32.xlu0 %v876
  %v878 = vpop.xlane.xlu0 %877
  %v879 = vsel %vm684, %v868, 0.0
  %880 = vadd.xlane.f32.xlu0 %v879
  %v881 = vpop.xlane.xlu0 %880
  %v882 = vsel %vm684, %v870, 0.0
  %883 = vadd.xlane.f32.xlu0 %v882
  %v884 = vpop.xlane.xlu0 %883
  %v885 = vsel %vm684, %v872, 0.0
  %886 = vadd.xlane.f32.xlu0 %v885
  %v887 = vpop.xlane.xlu0 %886
  %v888 = vrcp.pop %v875
  %v889 = vrcp.pop %v878
  %v890 = vrcp.pop %v881
  %v891 = vrcp.pop %v884
  %v892 = vrcp.pop %v887
  %v893 = vmul.f32 %v864, %v888
  %v894 = vmul.f32 %v866, %v889
  %v895 = vmul.f32 %v868, %v890
  %v896 = vmul.f32 %v870, %v891
  %v897 = vmul.f32 %v872, %v892
  %v898 = vpack.c.bf16 %v894, %v893
  %v899 = vpack.c.bf16 %v896, %v895
  %v900 = vpack.c.bf16 %v897, %v897
  %901 = vrot.lane.b32.xlu0 %v790, 64
  %v902 = vpop.permute.xlu0 %901
  %903 = vrot.lane.b32.xlu0 %v791, 64
  %v904 = vpop.permute.xlu0 %903
  %905 = vrot.lane.b32.xlu0 %v792, 64
  %v906 = vpop.permute.xlu0 %905
  %v910 = vsel %vm684, %v898, 0
  %v913 = vsel %vm684, %v899, 0
  %v916 = vsel %vm684, %v900, 0
  %v919 = vsel %vm760, %v906, 0
  %921 = vmatpush.bf16.msra.mxu0 0
  %922 = vmatpush.bf16.msra.mxu0 0
  %923 = vmatpush.bf16.msra.mxu0 0
  %924 = vmatpush.bf16.msra.mxu0 0
  %925 = vmatpush.bf16.msra.mxu0 0
  %926 = vmatpush.bf16.msra.mxu0 %v919
  %927 = vmatpush.bf16.msra.mxu0 %v904
  %928 = vmatpush.bf16.msra.mxu0 %v902
  %929 = vmatmul.bf16.gmra.mxu0 %v910
  %v930 = vpop.f32.mrf.mxu0
  %v931 = vadd.f32 0.0, %v930
  %v932 = vpop.f32.mrf.mxu0
  %v933 = vadd.f32 0.0, %v932
  %934 = vmatmul.bf16.gmra.mxu0 %v913
  %v935 = vpop.f32.mrf.mxu0
  %v936 = vadd.f32 0.0, %v935
  %v937 = vpop.f32.mrf.mxu0
  %v938 = vadd.f32 0.0, %v937
  %939 = vmatmul.bf16.gmra.mxu0 %v916
  %v940 = vpop.f32.mrf.mxu0
  %v941 = vadd.f32 0.0, %v940
  %v942 = vpop.f32.mrf.mxu0
  %943 = vdwg.mxu0
  %v944 = vpack.c.bf16 %v776, %v774
  %v945 = vpack.c.bf16 %v781, %v779
  %v946 = vpack.c.bf16 %v931, %v784
  %v947 = vpack.c.bf16 %v936, %v933
  %v948 = vpack.c.bf16 %v941, %v938
  %v949 = vld [vmem:[%s8] sm:$0xf]
  %v950 = vld [vmem:[%s8 + $0x4] sm:$0xf]
  %v951 = vld [vmem:[%s8 + $0x8] sm:$0xf]
  %v952 = vld [vmem:[%s8 + $0xc] sm:$0xf]
  %v953 = vld [vmem:[%s9] sm:$0x1]
  %v955 = vperm.slane %v953, 0
  %v961 = vunpack.c.l.b16 %v949
  %v962 = vunpack.c.l.b16 %v950
  %v963 = vunpack.c.l.b16 %v951
  %v964 = vunpack.c.l.b16 %v952
  %v965 = vpack.c.b16 %v962, %v961
  %v966 = vpack.c.b16 %v964, %v963
  %v970 = vsel %vm288, %v944, 0
  %v973 = vsel %vm288, %v945, 0
  %v976 = vsel %vm288, %v946, 0
  %v979 = vsel %vm288, %v947, 0
  %v982 = vsel %vm288, %v948, 0
  %984 = vmatpush.bf16.msra.mxu0 0
  %985 = vmatpush.bf16.msra.mxu0 0
  %986 = vmatpush.bf16.msra.mxu0 0
  %987 = vmatpush.bf16.msra.mxu0 0
  %988 = vmatpush.bf16.msra.mxu0 0
  %989 = vmatpush.bf16.msra.mxu0 0
  %990 = vmatpush.bf16.msra.mxu0 %v966
  %991 = vmatpush.bf16.msra.mxu0 %v965
  %992 = vmatmul.bf16.gmra.mxu0 %v970
  %v993 = vpop.f32.mrf.mxu0
  %v994 = vadd.f32 %v955, %v993
  %v995 = vpop.f32.mrf.mxu0
  %v996 = vadd.f32 %v955, %v995
  %997 = vmatmul.bf16.gmra.mxu0 %v973
  %v998 = vpop.f32.mrf.mxu0
  %v999 = vadd.f32 %v955, %v998
  %v1000 = vpop.f32.mrf.mxu0
  %v1001 = vadd.f32 %v955, %v1000
  %1002 = vmatmul.bf16.gmra.mxu0 %v976
  %v1003 = vpop.f32.mrf.mxu0
  %v1004 = vadd.f32 %v955, %v1003
  %v1005 = vpop.f32.mrf.mxu0
  %v1006 = vadd.f32 %v955, %v1005
  %1007 = vmatmul.bf16.gmra.mxu0 %v979
  %v1008 = vpop.f32.mrf.mxu0
  %v1009 = vadd.f32 %v955, %v1008
  %v1010 = vpop.f32.mrf.mxu0
  %v1011 = vadd.f32 %v955, %v1010
  %1012 = vmatmul.bf16.gmra.mxu0 %v982
  %v1013 = vpop.f32.mrf.mxu0
  %v1014 = vadd.f32 %v955, %v1013
  %v1015 = vpop.f32.mrf.mxu0
  %v1016 = vadd.f32 %v955, %v1015
  %1017 = vdwg.mxu0
  %v1018 = vadd.f32 %v278, %v994
  %v1019 = vadd.f32 %v279, %v996
  %v1020 = vadd.f32 %v280, %v999
  %v1021 = vadd.f32 %v281, %v1001
  %v1022 = vadd.f32 %v282, %v1004
  %v1023 = vadd.f32 %v283, %v1006
  %v1024 = vadd.f32 %v284, %v1009
  %v1025 = vadd.f32 %v285, %v1011
  %v1026 = vadd.f32 %v286, %v1014
  %v1027 = vadd.f32 %v287, %v1016
  %v1028 = vsel %vm288, %v1018, 0.0
  %1029 = vadd.xlane.f32.xlu0 %v1028
  %v1030 = vpop.xlane.xlu0 %1029
  %v1031 = vsel %vm288, %v1019, 0.0
  %1032 = vadd.xlane.f32.xlu0 %v1031
  %v1033 = vpop.xlane.xlu0 %1032
  %v1034 = vsel %vm288, %v1020, 0.0
  %1035 = vadd.xlane.f32.xlu0 %v1034
  %v1036 = vpop.xlane.xlu0 %1035
  %v1037 = vsel %vm288, %v1021, 0.0
  %1038 = vadd.xlane.f32.xlu0 %v1037
  %v1039 = vpop.xlane.xlu0 %1038
  %v1040 = vsel %vm288, %v1022, 0.0
  %1041 = vadd.xlane.f32.xlu0 %v1040
  %v1042 = vpop.xlane.xlu0 %1041
  %v1043 = vsel %vm288, %v1023, 0.0
  %1044 = vadd.xlane.f32.xlu0 %v1043
  %v1045 = vpop.xlane.xlu0 %1044
  %v1046 = vsel %vm288, %v1024, 0.0
  %1047 = vadd.xlane.f32.xlu0 %v1046
  %v1048 = vpop.xlane.xlu0 %1047
  %v1049 = vsel %vm288, %v1025, 0.0
  %1050 = vadd.xlane.f32.xlu0 %v1049
  %v1051 = vpop.xlane.xlu0 %1050
  %v1052 = vsel %vm288, %v1026, 0.0
  %1053 = vadd.xlane.f32.xlu0 %v1052
  %v1054 = vpop.xlane.xlu0 %1053
  %v1055 = vsel %vm288, %v1027, 0.0
  %1056 = vadd.xlane.f32.xlu0 %v1055
  %v1057 = vpop.xlane.xlu0 %1056
  %v1058 = vmul.f32 %v1030, %v325
  %v1059 = vmul.f32 %v1033, %v325
  %v1060 = vmul.f32 %v1036, %v325
  %v1061 = vmul.f32 %v1039, %v325
  %v1062 = vmul.f32 %v1042, %v325
  %v1063 = vmul.f32 %v1045, %v325
  %v1064 = vmul.f32 %v1048, %v325
  %v1065 = vmul.f32 %v1051, %v325
  %v1066 = vmul.f32 %v1054, %v325
  %v1067 = vmul.f32 %v1057, %v325
  %v1068 = vsub.f32 %v1018, %v1058
  %v1069 = vsub.f32 %v1019, %v1059
  %v1070 = vsub.f32 %v1020, %v1060
  %v1071 = vsub.f32 %v1021, %v1061
  %v1072 = vsub.f32 %v1022, %v1062
  %v1073 = vsub.f32 %v1023, %v1063
  %v1074 = vsub.f32 %v1024, %v1064
  %v1075 = vsub.f32 %v1025, %v1065
  %v1076 = vsub.f32 %v1026, %v1066
  %v1077 = vsub.f32 %v1027, %v1067
  %v1078 = vmul.f32 %v1068, %v1068
  %v1079 = vmul.f32 %v1069, %v1069
  %v1080 = vmul.f32 %v1070, %v1070
  %v1081 = vmul.f32 %v1071, %v1071
  %v1082 = vmul.f32 %v1072, %v1072
  %v1083 = vmul.f32 %v1073, %v1073
  %v1084 = vmul.f32 %v1074, %v1074
  %v1085 = vmul.f32 %v1075, %v1075
  %v1086 = vmul.f32 %v1076, %v1076
  %v1087 = vmul.f32 %v1077, %v1077
  %v1088 = vsel %vm288, %v1078, 0.0
  %1089 = vadd.xlane.f32.xlu0 %v1088
  %v1090 = vpop.xlane.xlu0 %1089
  %v1091 = vsel %vm288, %v1079, 0.0
  %1092 = vadd.xlane.f32.xlu0 %v1091
  %v1093 = vpop.xlane.xlu0 %1092
  %v1094 = vsel %vm288, %v1080, 0.0
  %1095 = vadd.xlane.f32.xlu0 %v1094
  %v1096 = vpop.xlane.xlu0 %1095
  %v1097 = vsel %vm288, %v1081, 0.0
  %1098 = vadd.xlane.f32.xlu0 %v1097
  %v1099 = vpop.xlane.xlu0 %1098
  %v1100 = vsel %vm288, %v1082, 0.0
  %1101 = vadd.xlane.f32.xlu0 %v1100
  %v1102 = vpop.xlane.xlu0 %1101
  %v1103 = vsel %vm288, %v1083, 0.0
  %1104 = vadd.xlane.f32.xlu0 %v1103
  %v1105 = vpop.xlane.xlu0 %1104
  %v1106 = vsel %vm288, %v1084, 0.0
  %1107 = vadd.xlane.f32.xlu0 %v1106
  %v1108 = vpop.xlane.xlu0 %1107
  %v1109 = vsel %vm288, %v1085, 0.0
  %1110 = vadd.xlane.f32.xlu0 %v1109
  %v1111 = vpop.xlane.xlu0 %1110
  %v1112 = vsel %vm288, %v1086, 0.0
  %1113 = vadd.xlane.f32.xlu0 %v1112
  %v1114 = vpop.xlane.xlu0 %1113
  %v1115 = vsel %vm288, %v1087, 0.0
  %1116 = vadd.xlane.f32.xlu0 %v1115
  %v1117 = vpop.xlane.xlu0 %1116
  %v1118 = vmul.f32 %v1090, %v325
  %v1119 = vmul.f32 %v1093, %v325
  %v1120 = vmul.f32 %v1096, %v325
  %v1121 = vmul.f32 %v1099, %v325
  %v1122 = vmul.f32 %v1102, %v325
  %v1123 = vmul.f32 %v1105, %v325
  %v1124 = vmul.f32 %v1108, %v325
  %v1125 = vmul.f32 %v1111, %v325
  %v1126 = vmul.f32 %v1114, %v325
  %v1127 = vmul.f32 %v1117, %v325
  %v1128 = vadd.f32 %v1118, 1e-06
  %v1129 = vadd.f32 %v1119, 1e-06
  %v1130 = vadd.f32 %v1120, 1e-06
  %v1131 = vadd.f32 %v1121, 1e-06
  %v1132 = vadd.f32 %v1122, 1e-06
  %v1133 = vadd.f32 %v1123, 1e-06
  %v1134 = vadd.f32 %v1124, 1e-06
  %v1135 = vadd.f32 %v1125, 1e-06
  %v1136 = vadd.f32 %v1126, 1e-06
  %v1137 = vadd.f32 %v1127, 1e-06
  %v1138 = vrsqrt.pop %v1128
  %v1139 = vmul.f32 %v1138, %v1128
  %v1140 = vmul.f32 %v1139, %v1138
  %v1141 = vmul.f32 0.5, %v1140
  %v1142 = vsub.f32 1.5, %v1141
  %v1143 = vmul.f32 %v1138, %v1142
  %vm1144 = vweird.f32 %v1128
  %vm1145 = vweird.f32 %v1138
  %vm1146 = vmor %vm1144, %vm1145
  %v1147 = vsel %vm1146, %v1138, %v1143
  %v1148 = vrsqrt.pop %v1129
  %v1149 = vmul.f32 %v1148, %v1129
  %v1150 = vmul.f32 %v1149, %v1148
  %v1151 = vmul.f32 0.5, %v1150
  %v1152 = vsub.f32 1.5, %v1151
  %v1153 = vmul.f32 %v1148, %v1152
  %vm1154 = vweird.f32 %v1129
  %vm1155 = vweird.f32 %v1148
  %vm1156 = vmor %vm1154, %vm1155
  %v1157 = vsel %vm1156, %v1148, %v1153
  %v1158 = vrsqrt.pop %v1130
  %v1159 = vmul.f32 %v1158, %v1130
  %v1160 = vmul.f32 %v1159, %v1158
  %v1161 = vmul.f32 0.5, %v1160
  %v1162 = vsub.f32 1.5, %v1161
  %v1163 = vmul.f32 %v1158, %v1162
  %vm1164 = vweird.f32 %v1130
  %vm1165 = vweird.f32 %v1158
  %vm1166 = vmor %vm1164, %vm1165
  %v1167 = vsel %vm1166, %v1158, %v1163
  %v1168 = vrsqrt.pop %v1131
  %v1169 = vmul.f32 %v1168, %v1131
  %v1170 = vmul.f32 %v1169, %v1168
  %v1171 = vmul.f32 0.5, %v1170
  %v1172 = vsub.f32 1.5, %v1171
  %v1173 = vmul.f32 %v1168, %v1172
  %vm1174 = vweird.f32 %v1131
  %vm1175 = vweird.f32 %v1168
  %vm1176 = vmor %vm1174, %vm1175
  %v1177 = vsel %vm1176, %v1168, %v1173
  %v1178 = vrsqrt.pop %v1132
  %v1179 = vmul.f32 %v1178, %v1132
  %v1180 = vmul.f32 %v1179, %v1178
  %v1181 = vmul.f32 0.5, %v1180
  %v1182 = vsub.f32 1.5, %v1181
  %v1183 = vmul.f32 %v1178, %v1182
  %vm1184 = vweird.f32 %v1132
  %vm1185 = vweird.f32 %v1178
  %vm1186 = vmor %vm1184, %vm1185
  %v1187 = vsel %vm1186, %v1178, %v1183
  %v1188 = vrsqrt.pop %v1133
  %v1189 = vmul.f32 %v1188, %v1133
  %v1190 = vmul.f32 %v1189, %v1188
  %v1191 = vmul.f32 0.5, %v1190
  %v1192 = vsub.f32 1.5, %v1191
  %v1193 = vmul.f32 %v1188, %v1192
  %vm1194 = vweird.f32 %v1133
  %vm1195 = vweird.f32 %v1188
  %vm1196 = vmor %vm1194, %vm1195
  %v1197 = vsel %vm1196, %v1188, %v1193
  %v1198 = vrsqrt.pop %v1134
  %v1199 = vmul.f32 %v1198, %v1134
  %v1200 = vmul.f32 %v1199, %v1198
  %v1201 = vmul.f32 0.5, %v1200
  %v1202 = vsub.f32 1.5, %v1201
  %v1203 = vmul.f32 %v1198, %v1202
  %vm1204 = vweird.f32 %v1134
  %vm1205 = vweird.f32 %v1198
  %vm1206 = vmor %vm1204, %vm1205
  %v1207 = vsel %vm1206, %v1198, %v1203
  %v1208 = vrsqrt.pop %v1135
  %v1209 = vmul.f32 %v1208, %v1135
  %v1210 = vmul.f32 %v1209, %v1208
  %v1211 = vmul.f32 0.5, %v1210
  %v1212 = vsub.f32 1.5, %v1211
  %v1213 = vmul.f32 %v1208, %v1212
  %vm1214 = vweird.f32 %v1135
  %vm1215 = vweird.f32 %v1208
  %vm1216 = vmor %vm1214, %vm1215
  %v1217 = vsel %vm1216, %v1208, %v1213
  %v1218 = vrsqrt.pop %v1136
  %v1219 = vmul.f32 %v1218, %v1136
  %v1220 = vmul.f32 %v1219, %v1218
  %v1221 = vmul.f32 0.5, %v1220
  %v1222 = vsub.f32 1.5, %v1221
  %v1223 = vmul.f32 %v1218, %v1222
  %vm1224 = vweird.f32 %v1136
  %vm1225 = vweird.f32 %v1218
  %vm1226 = vmor %vm1224, %vm1225
  %v1227 = vsel %vm1226, %v1218, %v1223
  %v1228 = vrsqrt.pop %v1137
  %v1229 = vmul.f32 %v1228, %v1137
  %v1230 = vmul.f32 %v1229, %v1228
  %v1231 = vmul.f32 0.5, %v1230
  %v1232 = vsub.f32 1.5, %v1231
  %v1233 = vmul.f32 %v1228, %v1232
  %vm1234 = vweird.f32 %v1137
  %vm1235 = vweird.f32 %v1228
  %vm1236 = vmor %vm1234, %vm1235
  %v1237 = vsel %vm1236, %v1228, %v1233
  %v1238 = vmul.f32 %v1068, %v1147
  %v1239 = vmul.f32 %v1069, %v1157
  %v1240 = vmul.f32 %v1070, %v1167
  %v1241 = vmul.f32 %v1071, %v1177
  %v1242 = vmul.f32 %v1072, %v1187
  %v1243 = vmul.f32 %v1073, %v1197
  %v1244 = vmul.f32 %v1074, %v1207
  %v1245 = vmul.f32 %v1075, %v1217
  %v1246 = vmul.f32 %v1076, %v1227
  %v1247 = vmul.f32 %v1077, %v1237
  %v1248 = vld [vmem:[%s10] sm:$0x1]
  %v1250 = vperm.slane %v1248, 0
  %v1252 = vmul.f32 %v1238, %v1250
  %v1253 = vmul.f32 %v1239, %v1250
  %v1254 = vmul.f32 %v1240, %v1250
  %v1255 = vmul.f32 %v1241, %v1250
  %v1256 = vmul.f32 %v1242, %v1250
  %v1257 = vmul.f32 %v1243, %v1250
  %v1258 = vmul.f32 %v1244, %v1250
  %v1259 = vmul.f32 %v1245, %v1250
  %v1260 = vmul.f32 %v1246, %v1250
  %v1261 = vmul.f32 %v1247, %v1250
  %v1262 = vld [vmem:[%s11] sm:$0x1]
  %v1264 = vperm.slane %v1262, 0
  %v1266 = vadd.f32 %v1252, %v1264
  %v1267 = vadd.f32 %v1253, %v1264
  %v1268 = vadd.f32 %v1254, %v1264
  %v1269 = vadd.f32 %v1255, %v1264
  %v1270 = vadd.f32 %v1256, %v1264
  %v1271 = vadd.f32 %v1257, %v1264
  %v1272 = vadd.f32 %v1258, %v1264
  %v1273 = vadd.f32 %v1259, %v1264
  %v1274 = vadd.f32 %v1260, %v1264
  %v1275 = vadd.f32 %v1261, %v1264
  %v1276 = vpack.c.bf16 %v1267, %v1266
  %v1277 = vpack.c.bf16 %v1269, %v1268
  %v1278 = vpack.c.bf16 %v1271, %v1270
  %v1279 = vpack.c.bf16 %v1273, %v1272
  %v1280 = vpack.c.bf16 %v1275, %v1274
  %v1281 = vld [vmem:[%s12] sm:$0xf]
  %v1282 = vld [vmem:[%s12 + $0x4] sm:$0xf]
  %v1283 = vld [vmem:[%s12 + $0x8] sm:$0xf]
  %v1284 = vld [vmem:[%s12 + $0xc] sm:$0xf]
  %v1285 = vld [vmem:[%s13] sm:$0x1]
  %v1287 = vperm.slane %v1285, 0
  %v1293 = vunpack.c.l.b16 %v1281
  %v1294 = vunpack.c.l.b16 %v1282
  %v1295 = vunpack.c.l.b16 %v1283
  %v1296 = vunpack.c.l.b16 %v1284
  %v1297 = vpack.c.b16 %v1294, %v1293
  %v1298 = vpack.c.b16 %v1296, %v1295
  %v1302 = vsel %vm288, %v1276, 0
  %v1305 = vsel %vm288, %v1277, 0
  %v1308 = vsel %vm288, %v1278, 0
  %v1311 = vsel %vm288, %v1279, 0
  %v1314 = vsel %vm288, %v1280, 0
  %1316 = vmatpush.bf16.msra.mxu0 0
  %1317 = vmatpush.bf16.msra.mxu0 0
  %1318 = vmatpush.bf16.msra.mxu0 0
  %1319 = vmatpush.bf16.msra.mxu0 0
  %1320 = vmatpush.bf16.msra.mxu0 0
  %1321 = vmatpush.bf16.msra.mxu0 0
  %1322 = vmatpush.bf16.msra.mxu0 %v1298
  %1323 = vmatpush.bf16.msra.mxu0 %v1297
  %1324 = vmatmul.bf16.gmra.mxu0 %v1302
  %v1325 = vpop.f32.mrf.mxu0
  %v1326 = vadd.f32 %v1287, %v1325
  %v1327 = vpop.f32.mrf.mxu0
  %v1328 = vadd.f32 %v1287, %v1327
  %1329 = vmatmul.bf16.gmra.mxu0 %v1305
  %v1330 = vpop.f32.mrf.mxu0
  %v1331 = vadd.f32 %v1287, %v1330
  %v1332 = vpop.f32.mrf.mxu0
  %v1333 = vadd.f32 %v1287, %v1332
  %1334 = vmatmul.bf16.gmra.mxu0 %v1308
  %v1335 = vpop.f32.mrf.mxu0
  %v1336 = vadd.f32 %v1287, %v1335
  %v1337 = vpop.f32.mrf.mxu0
  %v1338 = vadd.f32 %v1287, %v1337
  %1339 = vmatmul.bf16.gmra.mxu0 %v1311
  %v1340 = vpop.f32.mrf.mxu0
  %v1341 = vadd.f32 %v1287, %v1340
  %v1342 = vpop.f32.mrf.mxu0
  %v1343 = vadd.f32 %v1287, %v1342
  %1344 = vmatmul.bf16.gmra.mxu0 %v1314
  %v1345 = vpop.f32.mrf.mxu0
  %v1346 = vadd.f32 %v1287, %v1345
  %v1347 = vpop.f32.mrf.mxu0
  %v1348 = vadd.f32 %v1287, %v1347
  %1349 = vdwg.mxu0
  %v1350 = vmax.f32 %v1326, 0.0
  %v1351 = vmax.f32 %v1328, 0.0
  %v1352 = vmax.f32 %v1331, 0.0
  %v1353 = vmax.f32 %v1333, 0.0
  %v1354 = vmax.f32 %v1336, 0.0
  %v1355 = vmax.f32 %v1338, 0.0
  %v1356 = vmax.f32 %v1341, 0.0
  %v1357 = vmax.f32 %v1343, 0.0
  %v1358 = vmax.f32 %v1346, 0.0
  %v1359 = vmax.f32 %v1348, 0.0
  %v1360 = vpack.c.bf16 %v1351, %v1350
  %v1361 = vpack.c.bf16 %v1353, %v1352
  %v1362 = vpack.c.bf16 %v1355, %v1354
  %v1363 = vpack.c.bf16 %v1357, %v1356
  %v1364 = vpack.c.bf16 %v1359, %v1358
  %v1365 = vld [vmem:[%s14] sm:$0xf]
  %v1366 = vld [vmem:[%s14 + $0x4] sm:$0xf]
  %v1367 = vld [vmem:[%s14 + $0x8] sm:$0xf]
  %v1368 = vld [vmem:[%s14 + $0xc] sm:$0xf]
  %v1369 = vld [vmem:[%s14 + $0x10] sm:$0xf]
  %v1370 = vld [vmem:[%s14 + $0x14] sm:$0xf]
  %v1371 = vld [vmem:[%s14 + $0x18] sm:$0xf]
  %v1372 = vld [vmem:[%s14 + $0x1c] sm:$0xf]
  %v1373 = vld [vmem:[%s15] sm:$0x1]
  %v1375 = vperm.slane %v1373, 0
  %v1385 = vunpack.c.l.b16 %v1365
  %v1386 = vunpack.c.l.b16 %v1366
  %v1387 = vunpack.c.l.b16 %v1367
  %v1388 = vunpack.c.l.b16 %v1368
  %v1389 = vunpack.c.l.b16 %v1369
  %v1390 = vunpack.c.l.b16 %v1370
  %v1391 = vunpack.c.l.b16 %v1371
  %v1392 = vunpack.c.l.b16 %v1372
  %v1393 = vpack.c.b16 %v1386, %v1385
  %v1394 = vpack.c.b16 %v1388, %v1387
  %v1395 = vpack.c.b16 %v1390, %v1389
  %v1396 = vpack.c.b16 %v1392, %v1391
  %v1402 = vsel %vm184, %v1360, 0
  %v1405 = vsel %vm184, %v1361, 0
  %v1408 = vsel %vm184, %v1362, 0
  %v1411 = vsel %vm184, %v1363, 0
  %v1414 = vsel %vm184, %v1364, 0
  %1416 = vmatpush.bf16.msra.mxu0 0
  %1417 = vmatpush.bf16.msra.mxu0 0
  %1418 = vmatpush.bf16.msra.mxu0 0
  %1419 = vmatpush.bf16.msra.mxu0 0
  %1420 = vmatpush.bf16.msra.mxu0 %v1396
  %1421 = vmatpush.bf16.msra.mxu0 %v1395
  %1422 = vmatpush.bf16.msra.mxu0 %v1394
  %1423 = vmatpush.bf16.msra.mxu0 %v1393
  %1424 = vmatmul.bf16.gmra.mxu0 %v1402
  %v1425 = vpop.f32.mrf.mxu0
  %v1426 = vpop.f32.mrf.mxu0
  %v1427 = vadd.f32 %v1375, %v1426
  %1428 = vmatmul.bf16.gmra.mxu0 %v1405
  %v1429 = vpop.f32.mrf.mxu0
  %v1430 = vadd.f32 %v1375, %v1429
  %v1431 = vpop.f32.mrf.mxu0
  %v1432 = vadd.f32 %v1375, %v1431
  %1433 = vmatmul.bf16.gmra.mxu0 %v1408
  %v1434 = vpop.f32.mrf.mxu0
  %v1435 = vadd.f32 %v1375, %v1434
  %v1436 = vpop.f32.mrf.mxu0
  %1437 = vmatmul.bf16.gmra.mxu0 %v1411
  %v1438 = vpop.f32.mrf.mxu0
  %v1439 = vadd.f32 %v1375, %v1438
  %v1440 = vpop.f32.mrf.mxu0
  %v1441 = vadd.f32 %v1375, %v1440
  %1442 = vmatmul.bf16.gmra.mxu0 %v1414
  %v1443 = vpop.f32.mrf.mxu0
  %v1444 = vadd.f32 %v1375, %v1443
  %v1445 = vpop.f32.mrf.mxu0
  %v1446 = vadd.f32 %v1375, %v1445
  %1447 = vdwg.mxu0
  %v1448 = vadd.f32 %v1019, %v1427
  %v1449 = vadd.f32 %v1020, %v1430
  %v1450 = vadd.f32 %v1021, %v1432
  %v1451 = vadd.f32 %v1022, %v1435
  %v1452 = vadd.f32 %v1024, %v1439
  %v1453 = vadd.f32 %v1025, %v1441
  %v1454 = vadd.f32 %v1026, %v1444
  %v1455 = vadd.f32 %v1027, %v1446
  %1456 = vst.msk [vmem:[%s16] sm:$0xff] %vm288, %v1448
  %1457 = vst.msk [vmem:[%s16 + $0x8] sm:$0xff] %vm288, %v1449
  %1458 = vst.msk [vmem:[%s16 + $0x10] sm:$0xff] %vm288, %v1450
  %1459 = vst.msk [vmem:[%s16 + $0x18] sm:$0xff] %vm288, %v1451
  %s1460 = scalar_lea.vmem %s16, 32
  %1461 = vst.msk [vmem:[%s1460] sm:$0xff] %vm288, %v1452
  %1462 = vst.msk [vmem:[%s1460 + $0x8] sm:$0xff] %vm288, %v1453
  %1463 = vst.msk [vmem:[%s1460 + $0x10] sm:$0xff] %vm288, %v1454
  %1464 = vst.msk [vmem:[%s1460 + $0x18] sm:$0xff] %vm288, %v1455
  // Predicated region
  $region66: #{_ceutrack_forward_jit.2} parent=0 // pred_check
    _
  $region67: #{_ceutrack_forward_jit.2} parent=0 // pred_check_branch
    %1466 = sbr.rel (0) target = $region69
  $region68: #{_ceutrack_forward_jit.2} parent=0 // pred_region
    _
  $region69: #{_ceutrack_forward_jit.2} parent=0 // pred_fallthru
    _
  // Predicated region
  $region70: #{_ceutrack_forward_jit.2} parent=0 // pred_check
    _
  $region71: #{_ceutrack_forward_jit.2} parent=0 // pred_check_branch
    %1468 = sbr.rel (0) target = $region73
  $region72: #{_ceutrack_forward_jit.2} parent=0 // pred_region
    _
  $region73: #{_ceutrack_forward_jit.2} parent=0 // pred_fallthru
    _

// kernel: _ceutrack_forward_jit.3
$region0: #{_ceutrack_forward_jit.3}
  #allocation0 [shape = 'u32[]', space=smem, size = 0x4, offset = 0x4, fixed_abs, tag = 'smem constant byte address 0x4 - core index']
  #allocation1 [shape = 'u32[72,128]{1,0:T(1,128)}', space=vmem, size = 0x9000, scoped, tag = 'internal scratch']
  #allocation2 [shape = 'f32[12,256]{1,0:T(8,128)}', space=vmem, size = 0x4000, scoped, tag = 'scratch operand']
  #allocation3 [shape = 'f32[12,128]{1,0:T(8,128)}', space=vmem, size = 0x2000, scoped, tag = 'scratch operand']
  %s0 = inlined_call_operand.vmem [shape: f32[12,256], index: 0, kind: input, shape index: {}]
  %s1 = inlined_call_operand.vmem [shape: bf16[768,256], index: 1, kind: input, shape index: {}]
  %s2 = inlined_call_operand.vmem [shape: f32[1,256], index: 2, kind: input, shape index: {}]
  %s3 = inlined_call_operand.vmem [shape: bf16[768,128], index: 3, kind: input, shape index: {}]
  %s4 = inlined_call_operand.vmem [shape: f32[1,128], index: 4, kind: input, shape index: {}]
  %s5 = inlined_call_operand.vmem [shape: bf16[384,4], index: 5, kind: input, shape index: {}]
  %s6 = inlined_call_operand.vmem [shape: f32[1,4], index: 6, kind: input, shape index: {}]
  %s7 = inlined_call_operand.vmem [shape: bf16[384,4], index: 7, kind: input, shape index: {}]
  %s8 = inlined_call_operand.vmem [shape: f32[1,4], index: 8, kind: input, shape index: {}]
  %s9 = inlined_call_operand.hbm [shape: f32[2,4], index: 9, kind: output, shape index: {0}]
  %s10 = inlined_call_operand.hbm [shape: f32[2,2,4,4], index: 10, kind: output, shape index: {1}]
  %11 = xla_tuple %s9, %s10
  %s12 = sld [smem:[#allocation0]]
  $region54: #{_ceutrack_forward_jit.3} parent=0
    _
  %s14 = ssub.s32 1, %s12
  %s15 = scalar_select 0, %s14, %s12
  $region1: #{_ceutrack_forward_jit.3} parent=0
    #allocation4 [shape = 'u8[1024]{0}', space=vmem, size = 0x400, scoped, tag = 'output window, operand 0, single buffered']
    #allocation5 [shape = 's32[1]{0}', space=sflag, size = 0x4, scoped, tag = 'scoped memory for _ceutrack_forward_jit.3']
    #allocation6 [shape = 'u8[8192]{0}', space=vmem, size = 0x2000, scoped, tag = 'output window, operand 1, single buffered']
    #allocation7 [shape = 's32[1]{0}', space=sflag, size = 0x4, scoped, tag = 'scoped memory for _ceutrack_forward_jit.3']
    %16 = vsyncpa [#allocation5], 0
    %17 = vsyncpa [#allocation7], 0
    // Predicated region
    $region2: #{_ceutrack_forward_jit.3} parent=1 // pred_check
      _
    $region3: #{_ceutrack_forward_jit.3} parent=1 // pred_check_branch
      %19 = sbr.rel (0) target = $region5
    $region4: #{_ceutrack_forward_jit.3} parent=1 // pred_region
      _
    $region5: #{_ceutrack_forward_jit.3} parent=1 // pred_fallthru
      _
    // Predicated region
    $region6: #{_ceutrack_forward_jit.3} parent=1 // pred_check
      _
    $region7: #{_ceutrack_forward_jit.3} parent=1 // pred_check_branch
      %21 = sbr.rel (0) target = $region9
    $region8: #{_ceutrack_forward_jit.3} parent=1 // pred_region
      _
    $region9: #{_ceutrack_forward_jit.3} parent=1 // pred_fallthru
      _
    // Predicated region
    $region10: #{_ceutrack_forward_jit.3} parent=1 // pred_check
      _
    $region11: #{_ceutrack_forward_jit.3} parent=1 // pred_check_branch
      %23 = sbr.rel (0) target = $region13
    $region12: #{_ceutrack_forward_jit.3} parent=1 // pred_region
      _
    $region13: #{_ceutrack_forward_jit.3} parent=1 // pred_fallthru
      _
    // Predicated region
    $region14: #{_ceutrack_forward_jit.3} parent=1 // pred_check
      _
    $region15: #{_ceutrack_forward_jit.3} parent=1 // pred_check_branch
      %25 = sbr.rel (0) target = $region17
    $region16: #{_ceutrack_forward_jit.3} parent=1 // pred_region
      _
    $region17: #{_ceutrack_forward_jit.3} parent=1 // pred_fallthru
      _
    // Predicated region
    $region18: #{_ceutrack_forward_jit.3} parent=1 // pred_check
      _
    $region19: #{_ceutrack_forward_jit.3} parent=1 // pred_check_branch
      %27 = sbr.rel (0) target = $region21
    $region20: #{_ceutrack_forward_jit.3} parent=1 // pred_region
      _
    $region21: #{_ceutrack_forward_jit.3} parent=1 // pred_fallthru
      _
    // Predicated region
    $region22: #{_ceutrack_forward_jit.3} parent=1 // pred_check
      _
    $region23: #{_ceutrack_forward_jit.3} parent=1 // pred_check_branch
      %29 = sbr.rel (0) target = $region25
    $region24: #{_ceutrack_forward_jit.3} parent=1 // pred_region
      _
    $region25: #{_ceutrack_forward_jit.3} parent=1 // pred_fallthru
      _
    // Predicated region
    $region26: #{_ceutrack_forward_jit.3} parent=1 // pred_check
      _
    $region27: #{_ceutrack_forward_jit.3} parent=1 // pred_check_branch
      %31 = sbr.rel (0) target = $region29
    $region28: #{_ceutrack_forward_jit.3} parent=1 // pred_region
      _
    $region29: #{_ceutrack_forward_jit.3} parent=1 // pred_fallthru
      _
    // Predicated region
    $region30: #{_ceutrack_forward_jit.3} parent=1 // pred_check
      _
    $region31: #{_ceutrack_forward_jit.3} parent=1 // pred_check_branch
      %33 = sbr.rel (0) target = $region33
    $region32: #{_ceutrack_forward_jit.3} parent=1 // pred_region
      _
    $region33: #{_ceutrack_forward_jit.3} parent=1 // pred_fallthru
      _
    // Predicated region
    $region34: #{_ceutrack_forward_jit.3} parent=1 // pred_check
      _
    $region35: #{_ceutrack_forward_jit.3} parent=1 // pred_check_branch
      %35 = sbr.rel (0) target = $region37
    $region36: #{_ceutrack_forward_jit.3} parent=1 // pred_region
      _
    $region37: #{_ceutrack_forward_jit.3} parent=1 // pred_fallthru
      _
    %v36 = vlaneseq
    %v37 = vand.u32 %v36, 127
    %v38 = vcvt.s32.f32 %v37
    %v39 = vlaneseq
    %v40 = vshrl.u32 %v39, 7
    %v41 = vcvt.s32.f32 %v40
    %v42 = vadd.f32 %v38, 0.5
    %v43 = vmul.f32 %v42, 0.25
    %v44 = vadd.f32 %v41, 0.5
    %v45 = vmul.f32 %v44, 0.25
    %v46 = vld [vmem:[%s1] sm:$0xff]
    %v47 = vld [vmem:[%s1 + $0x8] sm:$0xff]
    %v48 = vld [vmem:[%s1 + $0x10] sm:$0xff]
    %v49 = vld [vmem:[%s1 + $0x18] sm:$0xff]
    %v50 = vld [vmem:[%s1 + $0x20] sm:$0xff]
    %v51 = vld [vmem:[%s1 + $0x28] sm:$0xff]
    %v52 = vld [vmem:[%s1 + $0x30] sm:$0xff]
    %v53 = vld [vmem:[%s1 + $0x38] sm:$0xff]
    %v54 = vld [vmem:[%s1 + $0x40] sm:$0xff]
    %v55 = vld [vmem:[%s1 + $0x48] sm:$0xff]
    %v56 = vld [vmem:[%s1 + $0x50] sm:$0xff]
    %v57 = vld [vmem:[%s1 + $0x58] sm:$0xff]
    %v58 = vld [vmem:[%s1 + $0x60] sm:$0xff]
    %v59 = vld [vmem:[%s1 + $0x68] sm:$0xff]
    %v60 = vld [vmem:[%s1 + $0x70] sm:$0xff]
    %v61 = vld [vmem:[%s1 + $0x78] sm:$0xff]
    %v62 = vld [vmem:[%s1 + $0x80] sm:$0xff]
    %v63 = vld [vmem:[%s1 + $0x88] sm:$0xff]
    %v64 = vld [vmem:[%s1 + $0x90] sm:$0xff]
    %v65 = vld [vmem:[%s1 + $0x98] sm:$0xff]
    %v66 = vld [vmem:[%s1 + $0xa0] sm:$0xff]
    %v67 = vld [vmem:[%s1 + $0xa8] sm:$0xff]
    %v68 = vld [vmem:[%s1 + $0xb0] sm:$0xff]
    %v69 = vld [vmem:[%s1 + $0xb8] sm:$0xff]
    %v70 = vld [vmem:[%s1 + $0xc0] sm:$0xff]
    %v71 = vld [vmem:[%s1 + $0xc8] sm:$0xff]
    %v72 = vld [vmem:[%s1 + $0xd0] sm:$0xff]
    %v73 = vld [vmem:[%s1 + $0xd8] sm:$0xff]
    %v74 = vld [vmem:[%s1 + $0xe0] sm:$0xff]
    %v75 = vld [vmem:[%s1 + $0xe8] sm:$0xff]
    %v76 = vld [vmem:[%s1 + $0xf0] sm:$0xff]
    %v77 = vld [vmem:[%s1 + $0xf8] sm:$0xff]
    %v78 = vld [vmem:[%s1 + $0x100] sm:$0xff]
    %v79 = vld [vmem:[%s1 + $0x108] sm:$0xff]
    %v80 = vld [vmem:[%s1 + $0x110] sm:$0xff]
    %v81 = vld [vmem:[%s1 + $0x118] sm:$0xff]
    %v82 = vld [vmem:[%s1 + $0x120] sm:$0xff]
    %v83 = vld [vmem:[%s1 + $0x128] sm:$0xff]
    %v84 = vld [vmem:[%s1 + $0x130] sm:$0xff]
    %v85 = vld [vmem:[%s1 + $0x138] sm:$0xff]
    %v86 = vld [vmem:[%s1 + $0x140] sm:$0xff]
    %v87 = vld [vmem:[%s1 + $0x148] sm:$0xff]
    %v88 = vld [vmem:[%s1 + $0x150] sm:$0xff]
    %v89 = vld [vmem:[%s1 + $0x158] sm:$0xff]
    %v90 = vld [vmem:[%s1 + $0x160] sm:$0xff]
    %v91 = vld [vmem:[%s1 + $0x168] sm:$0xff]
    %v92 = vld [vmem:[%s1 + $0x170] sm:$0xff]
    %v93 = vld [vmem:[%s1 + $0x178] sm:$0xff]
    %v94 = vld [vmem:[%s1 + $0x180] sm:$0xff]
    %v95 = vld [vmem:[%s1 + $0x188] sm:$0xff]
    %v96 = vld [vmem:[%s1 + $0x190] sm:$0xff]
    %v97 = vld [vmem:[%s1 + $0x198] sm:$0xff]
    %v98 = vld [vmem:[%s1 + $0x1a0] sm:$0xff]
    %v99 = vld [vmem:[%s1 + $0x1a8] sm:$0xff]
    %v100 = vld [vmem:[%s1 + $0x1b0] sm:$0xff]
    %v101 = vld [vmem:[%s1 + $0x1b8] sm:$0xff]
    %v102 = vld [vmem:[%s1 + $0x1c0] sm:$0xff]
    %v103 = vld [vmem:[%s1 + $0x1c8] sm:$0xff]
    %v104 = vld [vmem:[%s1 + $0x1d0] sm:$0xff]
    %v105 = vld [vmem:[%s1 + $0x1d8] sm:$0xff]
    %v106 = vld [vmem:[%s1 + $0x1e0] sm:$0xff]
    %v107 = vld [vmem:[%s1 + $0x1e8] sm:$0xff]
    %v108 = vld [vmem:[%s1 + $0x1f0] sm:$0xff]
    %v109 = vld [vmem:[%s1 + $0x1f8] sm:$0xff]
    %v110 = vld [vmem:[%s1 + $0x200] sm:$0xff]
    %v111 = vld [vmem:[%s1 + $0x208] sm:$0xff]
    %v112 = vld [vmem:[%s1 + $0x210] sm:$0xff]
    %v113 = vld [vmem:[%s1 + $0x218] sm:$0xff]
    %v114 = vld [vmem:[%s1 + $0x220] sm:$0xff]
    %v115 = vld [vmem:[%s1 + $0x228] sm:$0xff]
    %v116 = vld [vmem:[%s1 + $0x230] sm:$0xff]
    %v117 = vld [vmem:[%s1 + $0x238] sm:$0xff]
    %v118 = vld [vmem:[%s1 + $0x240] sm:$0xff]
    %v119 = vld [vmem:[%s1 + $0x248] sm:$0xff]
    %v120 = vld [vmem:[%s1 + $0x250] sm:$0xff]
    %v121 = vld [vmem:[%s1 + $0x258] sm:$0xff]
    %v122 = vld [vmem:[%s1 + $0x260] sm:$0xff]
    %v123 = vld [vmem:[%s1 + $0x268] sm:$0xff]
    %v124 = vld [vmem:[%s1 + $0x270] sm:$0xff]
    %v125 = vld [vmem:[%s1 + $0x278] sm:$0xff]
    %v126 = vld [vmem:[%s1 + $0x280] sm:$0xff]
    %v127 = vld [vmem:[%s1 + $0x288] sm:$0xff]
    %v128 = vld [vmem:[%s1 + $0x290] sm:$0xff]
    %v129 = vld [vmem:[%s1 + $0x298] sm:$0xff]
    %v130 = vld [vmem:[%s1 + $0x2a0] sm:$0xff]
    %v131 = vld [vmem:[%s1 + $0x2a8] sm:$0xff]
    %v132 = vld [vmem:[%s1 + $0x2b0] sm:$0xff]
    %v133 = vld [vmem:[%s1 + $0x2b8] sm:$0xff]
    %v134 = vld [vmem:[%s1 + $0x2c0] sm:$0xff]
    %v135 = vld [vmem:[%s1 + $0x2c8] sm:$0xff]
    %v136 = vld [vmem:[%s1 + $0x2d0] sm:$0xff]
    %v137 = vld [vmem:[%s1 + $0x2d8] sm:$0xff]
    %v138 = vld [vmem:[%s1 + $0x2e0] sm:$0xff]
    %v139 = vld [vmem:[%s1 + $0x2e8] sm:$0xff]
    %v140 = vld [vmem:[%s1 + $0x2f0] sm:$0xff]
    %v141 = vld [vmem:[%s1 + $0x2f8] sm:$0xff]
    %v142 = vld [vmem:[%s3] sm:$0xf]
    %v143 = vld [vmem:[%s3 + $0x4] sm:$0xf]
    %v144 = vld [vmem:[%s3 + $0x8] sm:$0xf]
    %v145 = vld [vmem:[%s3 + $0xc] sm:$0xf]
    %v146 = vld [vmem:[%s3 + $0x10] sm:$0xf]
    %v147 = vld [vmem:[%s3 + $0x14] sm:$0xf]
    %v148 = vld [vmem:[%s3 + $0x18] sm:$0xf]
    %v149 = vld [vmem:[%s3 + $0x1c] sm:$0xf]
    %v150 = vld [vmem:[%s3 + $0x20] sm:$0xf]
    %v151 = vld [vmem:[%s3 + $0x24] sm:$0xf]
    %v152 = vld [vmem:[%s3 + $0x28] sm:$0xf]
    %v153 = vld [vmem:[%s3 + $0x2c] sm:$0xf]
    %v154 = vld [vmem:[%s3 + $0x30] sm:$0xf]
    %v155 = vld [vmem:[%s3 + $0x34] sm:$0xf]
    %v156 = vld [vmem:[%s3 + $0x38] sm:$0xf]
    %v157 = vld [vmem:[%s3 + $0x3c] sm:$0xf]
    %v158 = vld [vmem:[%s3 + $0x40] sm:$0xf]
    %v159 = vld [vmem:[%s3 + $0x44] sm:$0xf]
    %v160 = vld [vmem:[%s3 + $0x48] sm:$0xf]
    %v161 = vld [vmem:[%s3 + $0x4c] sm:$0xf]
    %v162 = vld [vmem:[%s3 + $0x50] sm:$0xf]
    %v163 = vld [vmem:[%s3 + $0x54] sm:$0xf]
    %v164 = vld [vmem:[%s3 + $0x58] sm:$0xf]
    %v165 = vld [vmem:[%s3 + $0x5c] sm:$0xf]
    %v166 = vld [vmem:[%s3 + $0x60] sm:$0xf]
    %v167 = vld [vmem:[%s3 + $0x64] sm:$0xf]
    %v168 = vld [vmem:[%s3 + $0x68] sm:$0xf]
    %v169 = vld [vmem:[%s3 + $0x6c] sm:$0xf]
    %v170 = vld [vmem:[%s3 + $0x70] sm:$0xf]
    %v171 = vld [vmem:[%s3 + $0x74] sm:$0xf]
    %v172 = vld [vmem:[%s3 + $0x78] sm:$0xf]
    %v173 = vld [vmem:[%s3 + $0x7c] sm:$0xf]
    %v174 = vld [vmem:[%s3 + $0x80] sm:$0xf]
    %v175 = vld [vmem:[%s3 + $0x84] sm:$0xf]
    %v176 = vld [vmem:[%s3 + $0x88] sm:$0xf]
    %v177 = vld [vmem:[%s3 + $0x8c] sm:$0xf]
    %v178 = vld [vmem:[%s3 + $0x90] sm:$0xf]
    %v179 = vld [vmem:[%s3 + $0x94] sm:$0xf]
    %v180 = vld [vmem:[%s3 + $0x98] sm:$0xf]
    %v181 = vld [vmem:[%s3 + $0x9c] sm:$0xf]
    %v182 = vld [vmem:[%s3 + $0xa0] sm:$0xf]
    %v183 = vld [vmem:[%s3 + $0xa4] sm:$0xf]
    %v184 = vld [vmem:[%s3 + $0xa8] sm:$0xf]
    %v185 = vld [vmem:[%s3 + $0xac] sm:$0xf]
    %v186 = vld [vmem:[%s3 + $0xb0] sm:$0xf]
    %v187 = vld [vmem:[%s3 + $0xb4] sm:$0xf]
    %v188 = vld [vmem:[%s3 + $0xb8] sm:$0xf]
    %v189 = vld [vmem:[%s3 + $0xbc] sm:$0xf]
    %v190 = vld [vmem:[%s3 + $0xc0] sm:$0xf]
    %v191 = vld [vmem:[%s3 + $0xc4] sm:$0xf]
    %v192 = vld [vmem:[%s3 + $0xc8] sm:$0xf]
    %v193 = vld [vmem:[%s3 + $0xcc] sm:$0xf]
    %v194 = vld [vmem:[%s3 + $0xd0] sm:$0xf]
    %v195 = vld [vmem:[%s3 + $0xd4] sm:$0xf]
    %v196 = vld [vmem:[%s3 + $0xd8] sm:$0xf]
    %v197 = vld [vmem:[%s3 + $0xdc] sm:$0xf]
    %v198 = vld [vmem:[%s3 + $0xe0] sm:$0xf]
    %v199 = vld [vmem:[%s3 + $0xe4] sm:$0xf]
    %v200 = vld [vmem:[%s3 + $0xe8] sm:$0xf]
    %v201 = vld [vmem:[%s3 + $0xec] sm:$0xf]
    %v202 = vld [vmem:[%s3 + $0xf0] sm:$0xf]
    %v203 = vld [vmem:[%s3 + $0xf4] sm:$0xf]
    %v204 = vld [vmem:[%s3 + $0xf8] sm:$0xf]
    %v205 = vld [vmem:[%s3 + $0xfc] sm:$0xf]
    %v206 = vld [vmem:[%s3 + $0x100] sm:$0xf]
    %v207 = vld [vmem:[%s3 + $0x104] sm:$0xf]
    %v208 = vld [vmem:[%s3 + $0x108] sm:$0xf]
    %v209 = vld [vmem:[%s3 + $0x10c] sm:$0xf]
    %v210 = vld [vmem:[%s3 + $0x110] sm:$0xf]
    %v211 = vld [vmem:[%s3 + $0x114] sm:$0xf]
    %v212 = vld [vmem:[%s3 + $0x118] sm:$0xf]
    %v213 = vld [vmem:[%s3 + $0x11c] sm:$0xf]
    %v214 = vld [vmem:[%s3 + $0x120] sm:$0xf]
    %v215 = vld [vmem:[%s3 + $0x124] sm:$0xf]
    %v216 = vld [vmem:[%s3 + $0x128] sm:$0xf]
    %v217 = vld [vmem:[%s3 + $0x12c] sm:$0xf]
    %v218 = vld [vmem:[%s3 + $0x130] sm:$0xf]
    %v219 = vld [vmem:[%s3 + $0x134] sm:$0xf]
    %v220 = vld [vmem:[%s3 + $0x138] sm:$0xf]
    %v221 = vld [vmem:[%s3 + $0x13c] sm:$0xf]
    %v222 = vld [vmem:[%s3 + $0x140] sm:$0xf]
    %v223 = vld [vmem:[%s3 + $0x144] sm:$0xf]
    %v224 = vld [vmem:[%s3 + $0x148] sm:$0xf]
    %v225 = vld [vmem:[%s3 + $0x14c] sm:$0xf]
    %v226 = vld [vmem:[%s3 + $0x150] sm:$0xf]
    %v227 = vld [vmem:[%s3 + $0x154] sm:$0xf]
    %v228 = vld [vmem:[%s3 + $0x158] sm:$0xf]
    %v229 = vld [vmem:[%s3 + $0x15c] sm:$0xf]
    %v230 = vld [vmem:[%s3 + $0x160] sm:$0xf]
    %v231 = vld [vmem:[%s3 + $0x164] sm:$0xf]
    %v232 = vld [vmem:[%s3 + $0x168] sm:$0xf]
    %v233 = vld [vmem:[%s3 + $0x16c] sm:$0xf]
    %v234 = vld [vmem:[%s3 + $0x170] sm:$0xf]
    %v235 = vld [vmem:[%s3 + $0x174] sm:$0xf]
    %v236 = vld [vmem:[%s3 + $0x178] sm:$0xf]
    %v237 = vld [vmem:[%s3 + $0x17c] sm:$0xf]
    %v238 = vld [vmem:[%s5] sm:$0xf]
    %v239 = vld [vmem:[%s5 + $0x4] sm:$0xf]
    %v240 = vld [vmem:[%s5 + $0x8] sm:$0xf]
    %v241 = vld [vmem:[%s5 + $0xc] sm:$0xf]
    %v242 = vld [vmem:[%s5 + $0x10] sm:$0xf]
    %v243 = vld [vmem:[%s5 + $0x14] sm:$0xf]
    %v244 = vld [vmem:[%s5 + $0x18] sm:$0xf]
    %v245 = vld [vmem:[%s5 + $0x1c] sm:$0xf]
    %v246 = vld [vmem:[%s5 + $0x20] sm:$0xf]
    %v247 = vld [vmem:[%s5 + $0x24] sm:$0xf]
    %v248 = vld [vmem:[%s5 + $0x28] sm:$0xf]
    %v249 = vld [vmem:[%s5 + $0x2c] sm:$0xf]
    %v250 = vld [vmem:[%s5 + $0x30] sm:$0xf]
    %v251 = vld [vmem:[%s5 + $0x34] sm:$0xf]
    %v252 = vld [vmem:[%s5 + $0x38] sm:$0xf]
    %v253 = vld [vmem:[%s5 + $0x3c] sm:$0xf]
    %v254 = vld [vmem:[%s5 + $0x40] sm:$0xf]
    %v255 = vld [vmem:[%s5 + $0x44] sm:$0xf]
    %v256 = vld [vmem:[%s5 + $0x48] sm:$0xf]
    %v257 = vld [vmem:[%s5 + $0x4c] sm:$0xf]
    %v258 = vld [vmem:[%s5 + $0x50] sm:$0xf]
    %v259 = vld [vmem:[%s5 + $0x54] sm:$0xf]
    %v260 = vld [vmem:[%s5 + $0x58] sm:$0xf]
    %v261 = vld [vmem:[%s5 + $0x5c] sm:$0xf]
    %v262 = vld [vmem:[%s5 + $0x60] sm:$0xf]
    %v263 = vld [vmem:[%s5 + $0x64] sm:$0xf]
    %v264 = vld [vmem:[%s5 + $0x68] sm:$0xf]
    %v265 = vld [vmem:[%s5 + $0x6c] sm:$0xf]
    %v266 = vld [vmem:[%s5 + $0x70] sm:$0xf]
    %v267 = vld [vmem:[%s5 + $0x74] sm:$0xf]
    %v268 = vld [vmem:[%s5 + $0x78] sm:$0xf]
    %v269 = vld [vmem:[%s5 + $0x7c] sm:$0xf]
    %v270 = vld [vmem:[%s5 + $0x80] sm:$0xf]
    %v271 = vld [vmem:[%s5 + $0x84] sm:$0xf]
    %v272 = vld [vmem:[%s5 + $0x88] sm:$0xf]
    %v273 = vld [vmem:[%s5 + $0x8c] sm:$0xf]
    %v274 = vld [vmem:[%s5 + $0x90] sm:$0xf]
    %v275 = vld [vmem:[%s5 + $0x94] sm:$0xf]
    %v276 = vld [vmem:[%s5 + $0x98] sm:$0xf]
    %v277 = vld [vmem:[%s5 + $0x9c] sm:$0xf]
    %v278 = vld [vmem:[%s5 + $0xa0] sm:$0xf]
    %v279 = vld [vmem:[%s5 + $0xa4] sm:$0xf]
    %v280 = vld [vmem:[%s5 + $0xa8] sm:$0xf]
    %v281 = vld [vmem:[%s5 + $0xac] sm:$0xf]
    %v282 = vld [vmem:[%s5 + $0xb0] sm:$0xf]
    %v283 = vld [vmem:[%s5 + $0xb4] sm:$0xf]
    %v284 = vld [vmem:[%s5 + $0xb8] sm:$0xf]
    %v285 = vld [vmem:[%s5 + $0xbc] sm:$0xf]
    %v286 = vld [vmem:[%s7] sm:$0xf]
    %v287 = vld [vmem:[%s7 + $0x4] sm:$0xf]
    %v288 = vld [vmem:[%s7 + $0x8] sm:$0xf]
    %v289 = vld [vmem:[%s7 + $0xc] sm:$0xf]
    %v290 = vld [vmem:[%s7 + $0x10] sm:$0xf]
    %v291 = vld [vmem:[%s7 + $0x14] sm:$0xf]
    %v292 = vld [vmem:[%s7 + $0x18] sm:$0xf]
    %v293 = vld [vmem:[%s7 + $0x1c] sm:$0xf]
    %v294 = vld [vmem:[%s7 + $0x20] sm:$0xf]
    %v295 = vld [vmem:[%s7 + $0x24] sm:$0xf]
    %v296 = vld [vmem:[%s7 + $0x28] sm:$0xf]
    %v297 = vld [vmem:[%s7 + $0x2c] sm:$0xf]
    %v298 = vld [vmem:[%s7 + $0x30] sm:$0xf]
    %v299 = vld [vmem:[%s7 + $0x34] sm:$0xf]
    %v300 = vld [vmem:[%s7 + $0x38] sm:$0xf]
    %v301 = vld [vmem:[%s7 + $0x3c] sm:$0xf]
    %v302 = vld [vmem:[%s7 + $0x40] sm:$0xf]
    %v303 = vld [vmem:[%s7 + $0x44] sm:$0xf]
    %v304 = vld [vmem:[%s7 + $0x48] sm:$0xf]
    %v305 = vld [vmem:[%s7 + $0x4c] sm:$0xf]
    %v306 = vld [vmem:[%s7 + $0x50] sm:$0xf]
    %v307 = vld [vmem:[%s7 + $0x54] sm:$0xf]
    %v308 = vld [vmem:[%s7 + $0x58] sm:$0xf]
    %v309 = vld [vmem:[%s7 + $0x5c] sm:$0xf]
    %v310 = vld [vmem:[%s7 + $0x60] sm:$0xf]
    %v311 = vld [vmem:[%s7 + $0x64] sm:$0xf]
    %v312 = vld [vmem:[%s7 + $0x68] sm:$0xf]
    %v313 = vld [vmem:[%s7 + $0x6c] sm:$0xf]
    %v314 = vld [vmem:[%s7 + $0x70] sm:$0xf]
    %v315 = vld [vmem:[%s7 + $0x74] sm:$0xf]
    %v316 = vld [vmem:[%s7 + $0x78] sm:$0xf]
    %v317 = vld [vmem:[%s7 + $0x7c] sm:$0xf]
    %v318 = vld [vmem:[%s7 + $0x80] sm:$0xf]
    %v319 = vld [vmem:[%s7 + $0x84] sm:$0xf]
    %v320 = vld [vmem:[%s7 + $0x88] sm:$0xf]
    %v321 = vld [vmem:[%s7 + $0x8c] sm:$0xf]
    %v322 = vld [vmem:[%s7 + $0x90] sm:$0xf]
    %v323 = vld [vmem:[%s7 + $0x94] sm:$0xf]
    %v324 = vld [vmem:[%s7 + $0x98] sm:$0xf]
    %v325 = vld [vmem:[%s7 + $0x9c] sm:$0xf]
    %v326 = vld [vmem:[%s7 + $0xa0] sm:$0xf]
    %v327 = vld [vmem:[%s7 + $0xa4] sm:$0xf]
    %v328 = vld [vmem:[%s7 + $0xa8] sm:$0xf]
    %v329 = vld [vmem:[%s7 + $0xac] sm:$0xf]
    %v330 = vld [vmem:[%s7 + $0xb0] sm:$0xf]
    %v331 = vld [vmem:[%s7 + $0xb4] sm:$0xf]
    %v332 = vld [vmem:[%s7 + $0xb8] sm:$0xf]
    %v333 = vld [vmem:[%s7 + $0xbc] sm:$0xf]
    %334 = vst [vmem:[#allocation2] sm:$0xff] 0.0
    %335 = vst [vmem:[#allocation2 + $0x8] sm:$0xff] 0.0
    %336 = vst [vmem:[#allocation2 + $0x10] sm:$0xf] 0.0
    %337 = vst [vmem:[#allocation2 + $0x18] sm:$0xf] 0.0
    %338 = vst [vmem:[#allocation3] sm:$0xff] 0.0
    %339 = vst [vmem:[#allocation3 + $0x8] sm:$0xf] 0.0
    %v340 = vld [vmem:[%s0] sm:$0xf]
    %v341 = vld [vmem:[%s0 + $0x8] sm:$0xf]
    %v342 = vld [vmem:[%s0] sm:$0x1e]
    %v343 = vld [vmem:[%s0 + $0x8] sm:$0x1e]
    %v344 = vld [vmem:[%s0] sm:$0x3c]
    %v345 = vld [vmem:[%s0 + $0x8] sm:$0x3c]
    %v348 = vrot.slane %v342, 1
    %v349 = vrot.slane %v343, 1
    %v354 = vrot.slane %v344, 2
    %v355 = vrot.slane %v345, 2
    %v358 = vpack.c.bf16 %v340, %v340
    %v359 = vpack.c.bf16 %v341, %v341
    %v360 = vpack.c.bf16 %v348, %v348
    %v361 = vpack.c.bf16 %v349, %v349
    %v362 = vpack.c.bf16 %v354, %v354
    %v363 = vpack.c.bf16 %v355, %v355
    %v364 = vld [vmem:[%s2] sm:$0x3]
    %v366 = vperm.slane %v364, 0
    %v367 = vperm.slane %v364, 1
    %v466 = vunpack.c.l.b16 %v46
    %v467 = vunpack.c.h.b16 %v46
    %v468 = vunpack.c.l.b16 %v47
    %v469 = vunpack.c.h.b16 %v47
    %v470 = vunpack.c.l.b16 %v48
    %v471 = vunpack.c.h.b16 %v48
    %v472 = vunpack.c.l.b16 %v49
    %v473 = vunpack.c.h.b16 %v49
    %v474 = vunpack.c.l.b16 %v50
    %v475 = vunpack.c.h.b16 %v50
    %v476 = vunpack.c.l.b16 %v51
    %v477 = vunpack.c.h.b16 %v51
    %v478 = vunpack.c.l.b16 %v52
    %v479 = vunpack.c.h.b16 %v52
    %v480 = vunpack.c.l.b16 %v53
    %v481 = vunpack.c.h.b16 %v53
    %v482 = vunpack.c.l.b16 %v54
    %v483 = vunpack.c.h.b16 %v54
    %v484 = vunpack.c.l.b16 %v55
    %v485 = vunpack.c.h.b16 %v55
    %v486 = vunpack.c.l.b16 %v56
    %v487 = vunpack.c.h.b16 %v56
    %v488 = vunpack.c.l.b16 %v57
    %v489 = vunpack.c.h.b16 %v57
    %v490 = vunpack.c.l.b16 %v58
    %v491 = vunpack.c.h.b16 %v58
    %v492 = vunpack.c.l.b16 %v59
    %v493 = vunpack.c.h.b16 %v59
    %v494 = vunpack.c.l.b16 %v60
    %v495 = vunpack.c.h.b16 %v60
    %v496 = vunpack.c.l.b16 %v61
    %v497 = vunpack.c.h.b16 %v61
    %v498 = vunpack.c.l.b16 %v62
    %v499 = vunpack.c.h.b16 %v62
    %v500 = vunpack.c.l.b16 %v63
    %v501 = vunpack.c.h.b16 %v63
    %v502 = vunpack.c.l.b16 %v64
    %v503 = vunpack.c.h.b16 %v64
    %v504 = vunpack.c.l.b16 %v65
    %v505 = vunpack.c.h.b16 %v65
    %v506 = vunpack.c.l.b16 %v66
    %v507 = vunpack.c.h.b16 %v66
    %v508 = vunpack.c.l.b16 %v67
    %v509 = vunpack.c.h.b16 %v67
    %v510 = vunpack.c.l.b16 %v68
    %v511 = vunpack.c.h.b16 %v68
    %v512 = vunpack.c.l.b16 %v69
    %v513 = vunpack.c.h.b16 %v69
    %v514 = vunpack.c.l.b16 %v70
    %v515 = vunpack.c.h.b16 %v70
    %v516 = vunpack.c.l.b16 %v71
    %v517 = vunpack.c.h.b16 %v71
    %v518 = vunpack.c.l.b16 %v72
    %v519 = vunpack.c.h.b16 %v72
    %v520 = vunpack.c.l.b16 %v73
    %v521 = vunpack.c.h.b16 %v73
    %v522 = vunpack.c.l.b16 %v74
    %v523 = vunpack.c.h.b16 %v74
    %v524 = vunpack.c.l.b16 %v75
    %v525 = vunpack.c.h.b16 %v75
    %v526 = vunpack.c.l.b16 %v76
    %v527 = vunpack.c.h.b16 %v76
    %v528 = vunpack.c.l.b16 %v77
    %v529 = vunpack.c.h.b16 %v77
    %v530 = vunpack.c.l.b16 %v78
    %v531 = vunpack.c.h.b16 %v78
    %v532 = vunpack.c.l.b16 %v79
    %v533 = vunpack.c.h.b16 %v79
    %v534 = vunpack.c.l.b16 %v80
    %v535 = vunpack.c.h.b16 %v80
    %v536 = vunpack.c.l.b16 %v81
    %v537 = vunpack.c.h.b16 %v81
    %v538 = vunpack.c.l.b16 %v82
    %v539 = vunpack.c.h.b16 %v82
    %v540 = vunpack.c.l.b16 %v83
    %v541 = vunpack.c.h.b16 %v83
    %v542 = vunpack.c.l.b16 %v84
    %v543 = vunpack.c.h.b16 %v84
    %v544 = vunpack.c.l.b16 %v85
    %v545 = vunpack.c.h.b16 %v85
    %v546 = vunpack.c.l.b16 %v86
    %v547 = vunpack.c.h.b16 %v86
    %v548 = vunpack.c.l.b16 %v87
    %v549 = vunpack.c.h.b16 %v87
    %v550 = vunpack.c.l.b16 %v88
    %v551 = vunpack.c.h.b16 %v88
    %v552 = vunpack.c.l.b16 %v89
    %v553 = vunpack.c.h.b16 %v89
    %v554 = vunpack.c.l.b16 %v90
    %v555 = vunpack.c.h.b16 %v90
    %v556 = vunpack.c.l.b16 %v91
    %v557 = vunpack.c.h.b16 %v91
    %v558 = vunpack.c.l.b16 %v92
    %v559 = vunpack.c.h.b16 %v92
    %v560 = vunpack.c.l.b16 %v93
    %v561 = vunpack.c.h.b16 %v93
    %v562 = vunpack.c.l.b16 %v94
    %v563 = vunpack.c.h.b16 %v94
    %v564 = vunpack.c.l.b16 %v95
    %v565 = vunpack.c.h.b16 %v95
    %v566 = vunpack.c.l.b16 %v96
    %v567 = vunpack.c.h.b16 %v96
    %v568 = vunpack.c.l.b16 %v97
    %v569 = vunpack.c.h.b16 %v97
    %v570 = vunpack.c.l.b16 %v98
    %v571 = vunpack.c.h.b16 %v98
    %v572 = vunpack.c.l.b16 %v99
    %v573 = vunpack.c.h.b16 %v99
    %v574 = vunpack.c.l.b16 %v100
    %v575 = vunpack.c.h.b16 %v100
    %v576 = vunpack.c.l.b16 %v101
    %v577 = vunpack.c.h.b16 %v101
    %v578 = vunpack.c.l.b16 %v102
    %v579 = vunpack.c.h.b16 %v102
    %v580 = vunpack.c.l.b16 %v103
    %v581 = vunpack.c.h.b16 %v103
    %v582 = vunpack.c.l.b16 %v104
    %v583 = vunpack.c.h.b16 %v104
    %v584 = vunpack.c.l.b16 %v105
    %v585 = vunpack.c.h.b16 %v105
    %v586 = vunpack.c.l.b16 %v106
    %v587 = vunpack.c.h.b16 %v106
    %v588 = vunpack.c.l.b16 %v107
    %v589 = vunpack.c.h.b16 %v107
    %v590 = vunpack.c.l.b16 %v108
    %v591 = vunpack.c.h.b16 %v108
    %v592 = vunpack.c.l.b16 %v109
    %v593 = vunpack.c.h.b16 %v109
    %v594 = vunpack.c.l.b16 %v110
    %v595 = vunpack.c.h.b16 %v110
    %v596 = vunpack.c.l.b16 %v111
    %v597 = vunpack.c.h.b16 %v111
    %v598 = vunpack.c.l.b16 %v112
    %v599 = vunpack.c.h.b16 %v112
    %v600 = vunpack.c.l.b16 %v113
    %v601 = vunpack.c.h.b16 %v113
    %v602 = vunpack.c.l.b16 %v114
    %v603 = vunpack.c.h.b16 %v114
    %v604 = vunpack.c.l.b16 %v115
    %v605 = vunpack.c.h.b16 %v115
    %v606 = vunpack.c.l.b16 %v116
    %v607 = vunpack.c.h.b16 %v116
    %v608 = vunpack.c.l.b16 %v117
    %v609 = vunpack.c.h.b16 %v117
    %v610 = vunpack.c.l.b16 %v118
    %v611 = vunpack.c.h.b16 %v118
    %v612 = vunpack.c.l.b16 %v119
    %v613 = vunpack.c.h.b16 %v119
    %v614 = vunpack.c.l.b16 %v120
    %v615 = vunpack.c.h.b16 %v120
    %v616 = vunpack.c.l.b16 %v121
    %v617 = vunpack.c.h.b16 %v121
    %v618 = vunpack.c.l.b16 %v122
    %v619 = vunpack.c.h.b16 %v122
    %v620 = vunpack.c.l.b16 %v123
    %v621 = vunpack.c.h.b16 %v123
    %v622 = vunpack.c.l.b16 %v124
    %v623 = vunpack.c.h.b16 %v124
    %v624 = vunpack.c.l.b16 %v125
    %v625 = vunpack.c.h.b16 %v125
    %v626 = vunpack.c.l.b16 %v126
    %v627 = vunpack.c.h.b16 %v126
    %v628 = vunpack.c.l.b16 %v127
    %v629 = vunpack.c.h.b16 %v127
    %v630 = vunpack.c.l.b16 %v128
    %v631 = vunpack.c.h.b16 %v128
    %v632 = vunpack.c.l.b16 %v129
    %v633 = vunpack.c.h.b16 %v129
    %v634 = vunpack.c.l.b16 %v130
    %v635 = vunpack.c.h.b16 %v130
    %v636 = vunpack.c.l.b16 %v131
    %v637 = vunpack.c.h.b16 %v131
    %v638 = vunpack.c.l.b16 %v132
    %v639 = vunpack.c.h.b16 %v132
    %v640 = vunpack.c.l.b16 %v133
    %v641 = vunpack.c.h.b16 %v133
    %v642 = vunpack.c.l.b16 %v134
    %v643 = vunpack.c.h.b16 %v134
    %v644 = vunpack.c.l.b16 %v135
    %v645 = vunpack.c.h.b16 %v135
    %v646 = vunpack.c.l.b16 %v136
    %v647 = vunpack.c.h.b16 %v136
    %v648 = vunpack.c.l.b16 %v137
    %v649 = vunpack.c.h.b16 %v137
    %v650 = vunpack.c.l.b16 %v138
    %v651 = vunpack.c.h.b16 %v138
    %v652 = vunpack.c.l.b16 %v139
    %v653 = vunpack.c.h.b16 %v139
    %v654 = vunpack.c.l.b16 %v140
    %v655 = vunpack.c.h.b16 %v140
    %v656 = vunpack.c.l.b16 %v141
    %v657 = vunpack.c.h.b16 %v141
    %v658 = vpack.c.b16 %v468, %v466
    %v659 = vpack.c.b16 %v469, %v467
    %v660 = vpack.c.b16 %v472, %v470
    %v661 = vpack.c.b16 %v473, %v471
    %v662 = vpack.c.b16 %v476, %v474
    %v663 = vpack.c.b16 %v477, %v475
    %v664 = vpack.c.b16 %v480, %v478
    %v665 = vpack.c.b16 %v481, %v479
    %v666 = vpack.c.b16 %v484, %v482
    %v667 = vpack.c.b16 %v485, %v483
    %v668 = vpack.c.b16 %v488, %v486
    %v669 = vpack.c.b16 %v489, %v487
    %v670 = vpack.c.b16 %v492, %v490
    %v671 = vpack.c.b16 %v493, %v491
    %v672 = vpack.c.b16 %v496, %v494
    %v673 = vpack.c.b16 %v497, %v495
    %v674 = vpack.c.b16 %v500, %v498
    %v675 = vpack.c.b16 %v501, %v499
    %v676 = vpack.c.b16 %v504, %v502
    %v677 = vpack.c.b16 %v505, %v503
    %v678 = vpack.c.b16 %v508, %v506
    %v679 = vpack.c.b16 %v509, %v507
    %v680 = vpack.c.b16 %v512, %v510
    %v681 = vpack.c.b16 %v513, %v511
    %v682 = vpack.c.b16 %v516, %v514
    %v683 = vpack.c.b16 %v517, %v515
    %v684 = vpack.c.b16 %v520, %v518
    %v685 = vpack.c.b16 %v521, %v519
    %v686 = vpack.c.b16 %v524, %v522
    %v687 = vpack.c.b16 %v525, %v523
    %v688 = vpack.c.b16 %v528, %v526
    %v689 = vpack.c.b16 %v529, %v527
    %v690 = vpack.c.b16 %v532, %v530
    %v691 = vpack.c.b16 %v533, %v531
    %v692 = vpack.c.b16 %v536, %v534
    %v693 = vpack.c.b16 %v537, %v535
    %v694 = vpack.c.b16 %v540, %v538
    %v695 = vpack.c.b16 %v541, %v539
    %v696 = vpack.c.b16 %v544, %v542
    %v697 = vpack.c.b16 %v545, %v543
    %v698 = vpack.c.b16 %v548, %v546
    %v699 = vpack.c.b16 %v549, %v547
    %v700 = vpack.c.b16 %v552, %v550
    %v701 = vpack.c.b16 %v553, %v551
    %v702 = vpack.c.b16 %v556, %v554
    %v703 = vpack.c.b16 %v557, %v555
    %v704 = vpack.c.b16 %v560, %v558
    %v705 = vpack.c.b16 %v561, %v559
    %v706 = vpack.c.b16 %v564, %v562
    %v707 = vpack.c.b16 %v565, %v563
    %v708 = vpack.c.b16 %v568, %v566
    %v709 = vpack.c.b16 %v569, %v567
    %v710 = vpack.c.b16 %v572, %v570
    %v711 = vpack.c.b16 %v573, %v571
    %v712 = vpack.c.b16 %v576, %v574
    %v713 = vpack.c.b16 %v577, %v575
    %v714 = vpack.c.b16 %v580, %v578
    %v715 = vpack.c.b16 %v581, %v579
    %v716 = vpack.c.b16 %v584, %v582
    %v717 = vpack.c.b16 %v585, %v583
    %v718 = vpack.c.b16 %v588, %v586
    %v719 = vpack.c.b16 %v589, %v587
    %v720 = vpack.c.b16 %v592, %v590
    %v721 = vpack.c.b16 %v593, %v591
    %v722 = vpack.c.b16 %v596, %v594
    %v723 = vpack.c.b16 %v597, %v595
    %v724 = vpack.c.b16 %v600, %v598
    %v725 = vpack.c.b16 %v601, %v599
    %v726 = vpack.c.b16 %v604, %v602
    %v727 = vpack.c.b16 %v605, %v603
    %v728 = vpack.c.b16 %v608, %v606
    %v729 = vpack.c.b16 %v609, %v607
    %v730 = vpack.c.b16 %v612, %v610
    %v731 = vpack.c.b16 %v613, %v611
    %v732 = vpack.c.b16 %v616, %v614
    %v733 = vpack.c.b16 %v617, %v615
    %v734 = vpack.c.b16 %v620, %v618
    %v735 = vpack.c.b16 %v621, %v619
    %v736 = vpack.c.b16 %v624, %v622
    %v737 = vpack.c.b16 %v625, %v623
    %v738 = vpack.c.b16 %v628, %v626
    %v739 = vpack.c.b16 %v629, %v627
    %v740 = vpack.c.b16 %v632, %v630
    %v741 = vpack.c.b16 %v633, %v631
    %v742 = vpack.c.b16 %v636, %v634
    %v743 = vpack.c.b16 %v637, %v635
    %v744 = vpack.c.b16 %v640, %v638
    %v745 = vpack.c.b16 %v641, %v639
    %v746 = vpack.c.b16 %v644, %v642
    %v747 = vpack.c.b16 %v645, %v643
    %v748 = vpack.c.b16 %v648, %v646
    %v749 = vpack.c.b16 %v649, %v647
    %v750 = vpack.c.b16 %v652, %v650
    %v751 = vpack.c.b16 %v653, %v651
    %v752 = vpack.c.b16 %v656, %v654
    %v753 = vpack.c.b16 %v657, %v655
    %850 = vmatpush.bf16.msra.mxu0 %v672
    %851 = vmatpush.bf16.msra.mxu0 %v670
    %852 = vmatpush.bf16.msra.mxu0 %v668
    %853 = vmatpush.bf16.msra.mxu0 %v666
    %854 = vmatpush.bf16.msra.mxu0 %v664
    %855 = vmatpush.bf16.msra.mxu0 %v662
    %856 = vmatpush.bf16.msra.mxu0 %v660
    %857 = vmatpush.bf16.msra.mxu0 %v658
    %858 = vmatmul.bf16.gmra.mxu0 %v358
    %v859 = vpop.f32.mrf.mxu0
    %v860 = vadd.f32 %v366, %v859
    %v861 = vpop.f32.mrf.mxu0
    %862 = vdwg.mxu0
    %863 = vmatpush.bf16.msra.mxu0 %v688
    %864 = vmatpush.bf16.msra.mxu0 %v686
    %865 = vmatpush.bf16.msra.mxu0 %v684
    %866 = vmatpush.bf16.msra.mxu0 %v682
    %867 = vmatpush.bf16.msra.mxu0 %v680
    %868 = vmatpush.bf16.msra.mxu0 %v678
    %869 = vmatpush.bf16.msra.mxu0 %v676
    %870 = vmatpush.bf16.msra.mxu0 %v674
    %871 = vmatmul.bf16.gmra.mxu0 %v359
    %v872 = vpop.f32.mrf.mxu0
    %v873 = vadd.f32 %v860, %v872
    %v874 = vpop.f32.mrf.mxu0
    %875 = vdwg.mxu0
    %876 = vmatpush.bf16.msra.mxu0 %v704
    %877 = vmatpush.bf16.msra.mxu0 %v702
    %878 = vmatpush.bf16.msra.mxu0 %v700
    %879 = vmatpush.bf16.msra.mxu0 %v698
    %880 = vmatpush.bf16.msra.mxu0 %v696
    %881 = vmatpush.bf16.msra.mxu0 %v694
    %882 = vmatpush.bf16.msra.mxu0 %v692
    %883 = vmatpush.bf16.msra.mxu0 %v690
    %884 = vmatmul.bf16.gmra.mxu0 %v360
    %v885 = vpop.f32.mrf.mxu0
    %v886 = vadd.f32 %v873, %v885
    %v887 = vpop.f32.mrf.mxu0
    %888 = vdwg.mxu0
    %889 = vmatpush.bf16.msra.mxu0 %v720
    %890 = vmatpush.bf16.msra.mxu0 %v718
    %891 = vmatpush.bf16.msra.mxu0 %v716
    %892 = vmatpush.bf16.msra.mxu0 %v714
    %893 = vmatpush.bf16.msra.mxu0 %v712
    %894 = vmatpush.bf16.msra.mxu0 %v710
    %895 = vmatpush.bf16.msra.mxu0 %v708
    %896 = vmatpush.bf16.msra.mxu0 %v706
    %897 = vmatmul.bf16.gmra.mxu0 %v361
    %v898 = vpop.f32.mrf.mxu0
    %v899 = vadd.f32 %v886, %v898
    %v900 = vpop.f32.mrf.mxu0
    %901 = vdwg.mxu0
    %902 = vmatpush.bf16.msra.mxu0 %v736
    %903 = vmatpush.bf16.msra.mxu0 %v734
    %904 = vmatpush.bf16.msra.mxu0 %v732
    %905 = vmatpush.bf16.msra.mxu0 %v730
    %906 = vmatpush.bf16.msra.mxu0 %v728
    %907 = vmatpush.bf16.msra.mxu0 %v726
    %908 = vmatpush.bf16.msra.mxu0 %v724
    %909 = vmatpush.bf16.msra.mxu0 %v722
    %910 = vmatmul.bf16.gmra.mxu0 %v362
    %v911 = vpop.f32.mrf.mxu0
    %v912 = vadd.f32 %v899, %v911
    %v913 = vpop.f32.mrf.mxu0
    %914 = vdwg.mxu0
    %915 = vmatpush.bf16.msra.mxu0 %v752
    %916 = vmatpush.bf16.msra.mxu0 %v750
    %917 = vmatpush.bf16.msra.mxu0 %v748
    %918 = vmatpush.bf16.msra.mxu0 %v746
    %919 = vmatpush.bf16.msra.mxu0 %v744
    %920 = vmatpush.bf16.msra.mxu0 %v742
    %921 = vmatpush.bf16.msra.mxu0 %v740
    %922 = vmatpush.bf16.msra.mxu0 %v738
    %923 = vmatmul.bf16.gmra.mxu0 %v363
    %v924 = vpop.f32.mrf.mxu0
    %v925 = vadd.f32 %v912, %v924
    %v926 = vpop.f32.mrf.mxu0
    %927 = vdwg.mxu0
    %928 = vmatpush.bf16.msra.mxu0 %v673
    %929 = vmatpush.bf16.msra.mxu0 %v671
    %930 = vmatpush.bf16.msra.mxu0 %v669
    %931 = vmatpush.bf16.msra.mxu0 %v667
    %932 = vmatpush.bf16.msra.mxu0 %v665
    %933 = vmatpush.bf16.msra.mxu0 %v663
    %934 = vmatpush.bf16.msra.mxu0 %v661
    %935 = vmatpush.bf16.msra.mxu0 %v659
    %936 = vmatmul.bf16.gmra.mxu0 %v358
    %v937 = vpop.f32.mrf.mxu0
    %v938 = vadd.f32 %v367, %v937
    %v939 = vpop.f32.mrf.mxu0
    %940 = vdwg.mxu0
    %941 = vmatpush.bf16.msra.mxu0 %v689
    %942 = vmatpush.bf16.msra.mxu0 %v687
    %943 = vmatpush.bf16.msra.mxu0 %v685
    %944 = vmatpush.bf16.msra.mxu0 %v683
    %945 = vmatpush.bf16.msra.mxu0 %v681
    %946 = vmatpush.bf16.msra.mxu0 %v679
    %947 = vmatpush.bf16.msra.mxu0 %v677
    %948 = vmatpush.bf16.msra.mxu0 %v675
    %949 = vmatmul.bf16.gmra.mxu0 %v359
    %v950 = vpop.f32.mrf.mxu0
    %v951 = vadd.f32 %v938, %v950
    %v952 = vpop.f32.mrf.mxu0
    %953 = vdwg.mxu0
    %954 = vmatpush.bf16.msra.mxu0 %v705
    %955 = vmatpush.bf16.msra.mxu0 %v703
    %956 = vmatpush.bf16.msra.mxu0 %v701
    %957 = vmatpush.bf16.msra.mxu0 %v699
    %958 = vmatpush.bf16.msra.mxu0 %v697
    %959 = vmatpush.bf16.msra.mxu0 %v695
    %960 = vmatpush.bf16.msra.mxu0 %v693
    %961 = vmatpush.bf16.msra.mxu0 %v691
    %962 = vmatmul.bf16.gmra.mxu0 %v360
    %v963 = vpop.f32.mrf.mxu0
    %v964 = vadd.f32 %v951, %v963
    %v965 = vpop.f32.mrf.mxu0
    %966 = vdwg.mxu0
    %967 = vmatpush.bf16.msra.mxu0 %v721
    %968 = vmatpush.bf16.msra.mxu0 %v719
    %969 = vmatpush.bf16.msra.mxu0 %v717
    %970 = vmatpush.bf16.msra.mxu0 %v715
    %971 = vmatpush.bf16.msra.mxu0 %v713
    %972 = vmatpush.bf16.msra.mxu0 %v711
    %973 = vmatpush.bf16.msra.mxu0 %v709
    %974 = vmatpush.bf16.msra.mxu0 %v707
    %975 = vmatmul.bf16.gmra.mxu0 %v361
    %v976 = vpop.f32.mrf.mxu0
    %v977 = vadd.f32 %v964, %v976
    %v978 = vpop.f32.mrf.mxu0
    %979 = vdwg.mxu0
    %980 = vmatpush.bf16.msra.mxu0 %v737
    %981 = vmatpush.bf16.msra.mxu0 %v735
    %982 = vmatpush.bf16.msra.mxu0 %v733
    %983 = vmatpush.bf16.msra.mxu0 %v731
    %984 = vmatpush.bf16.msra.mxu0 %v729
    %985 = vmatpush.bf16.msra.mxu0 %v727
    %986 = vmatpush.bf16.msra.mxu0 %v725
    %987 = vmatpush.bf16.msra.mxu0 %v723
    %988 = vmatmul.bf16.gmra.mxu0 %v362
    %v989 = vpop.f32.mrf.mxu0
    %v990 = vadd.f32 %v977, %v989
    %v991 = vpop.f32.mrf.mxu0
    %992 = vdwg.mxu0
    %993 = vmatpush.bf16.msra.mxu0 %v753
    %994 = vmatpush.bf16.msra.mxu0 %v751
    %995 = vmatpush.bf16.msra.mxu0 %v749
    %996 = vmatpush.bf16.msra.mxu0 %v747
    %997 = vmatpush.bf16.msra.mxu0 %v745
    %998 = vmatpush.bf16.msra.mxu0 %v743
    %999 = vmatpush.bf16.msra.mxu0 %v741
    %1000 = vmatpush.bf16.msra.mxu0 %v739
    %1001 = vmatmul.bf16.gmra.mxu0 %v363
    %v1002 = vpop.f32.mrf.mxu0
    %v1003 = vadd.f32 %v990, %v1002
    %v1004 = vpop.f32.mrf.mxu0
    %1005 = vdwg.mxu0
    %v1006 = vmax.f32 %v925, 0.0
    %v1007 = vmax.f32 %v1003, 0.0
    %v1010 = vrot.slane %v1006, 7
    %v1011 = vrot.slane %v1007, 7
    %1014 = vst [vmem:[#allocation2] sm:$0x1e] %v1010
    %1015 = vst [vmem:[#allocation2 + $0x8] sm:$0x1e] %v1011
    %v1016 = vld [vmem:[#allocation2] sm:$0xf]
    %v1017 = vld [vmem:[#allocation2 + $0x8] sm:$0xf]
    %v1018 = vld [vmem:[#allocation2] sm:$0x1e]
    %v1019 = vld [vmem:[#allocation2 + $0x8] sm:$0x1e]
    %v1020 = vld [vmem:[#allocation2] sm:$0x3c]
    %v1021 = vld [vmem:[#allocation2 + $0x8] sm:$0x3c]
    %v1024 = vrot.slane %v1018, 1
    %v1025 = vrot.slane %v1019, 1
    %v1030 = vrot.slane %v1020, 2
    %v1031 = vrot.slane %v1021, 2
    %v1034 = vpack.c.bf16 %v1016, %v1016
    %v1035 = vpack.c.bf16 %v1017, %v1017
    %v1036 = vpack.c.bf16 %v1024, %v1024
    %v1037 = vpack.c.bf16 %v1025, %v1025
    %v1038 = vpack.c.bf16 %v1030, %v1030
    %v1039 = vpack.c.bf16 %v1031, %v1031
    %v1040 = vld [vmem:[%s4] sm:$0x1]
    %v1042 = vperm.slane %v1040, 0
    %v1140 = vunpack.c.l.b16 %v142
    %v1141 = vunpack.c.l.b16 %v143
    %v1142 = vunpack.c.l.b16 %v144
    %v1143 = vunpack.c.l.b16 %v145
    %v1144 = vunpack.c.l.b16 %v146
    %v1145 = vunpack.c.l.b16 %v147
    %v1146 = vunpack.c.l.b16 %v148
    %v1147 = vunpack.c.l.b16 %v149
    %v1148 = vunpack.c.l.b16 %v150
    %v1149 = vunpack.c.l.b16 %v151
    %v1150 = vunpack.c.l.b16 %v152
    %v1151 = vunpack.c.l.b16 %v153
    %v1152 = vunpack.c.l.b16 %v154
    %v1153 = vunpack.c.l.b16 %v155
    %v1154 = vunpack.c.l.b16 %v156
    %v1155 = vunpack.c.l.b16 %v157
    %v1156 = vunpack.c.l.b16 %v158
    %v1157 = vunpack.c.l.b16 %v159
    %v1158 = vunpack.c.l.b16 %v160
    %v1159 = vunpack.c.l.b16 %v161
    %v1160 = vunpack.c.l.b16 %v162
    %v1161 = vunpack.c.l.b16 %v163
    %v1162 = vunpack.c.l.b16 %v164
    %v1163 = vunpack.c.l.b16 %v165
    %v1164 = vunpack.c.l.b16 %v166
    %v1165 = vunpack.c.l.b16 %v167
    %v1166 = vunpack.c.l.b16 %v168
    %v1167 = vunpack.c.l.b16 %v169
    %v1168 = vunpack.c.l.b16 %v170
    %v1169 = vunpack.c.l.b16 %v171
    %v1170 = vunpack.c.l.b16 %v172
    %v1171 = vunpack.c.l.b16 %v173
    %v1172 = vunpack.c.l.b16 %v174
    %v1173 = vunpack.c.l.b16 %v175
    %v1174 = vunpack.c.l.b16 %v176
    %v1175 = vunpack.c.l.b16 %v177
    %v1176 = vunpack.c.l.b16 %v178
    %v1177 = vunpack.c.l.b16 %v179
    %v1178 = vunpack.c.l.b16 %v180
    %v1179 = vunpack.c.l.b16 %v181
    %v1180 = vunpack.c.l.b16 %v182
    %v1181 = vunpack.c.l.b16 %v183
    %v1182 = vunpack.c.l.b16 %v184
    %v1183 = vunpack.c.l.b16 %v185
    %v1184 = vunpack.c.l.b16 %v186
    %v1185 = vunpack.c.l.b16 %v187
    %v1186 = vunpack.c.l.b16 %v188
    %v1187 = vunpack.c.l.b16 %v189
    %v1188 = vunpack.c.l.b16 %v190
    %v1189 = vunpack.c.l.b16 %v191
    %v1190 = vunpack.c.l.b16 %v192
    %v1191 = vunpack.c.l.b16 %v193
    %v1192 = vunpack.c.l.b16 %v194
    %v1193 = vunpack.c.l.b16 %v195
    %v1194 = vunpack.c.l.b16 %v196
    %v1195 = vunpack.c.l.b16 %v197
    %v1196 = vunpack.c.l.b16 %v198
    %v1197 = vunpack.c.l.b16 %v199
    %v1198 = vunpack.c.l.b16 %v200
    %v1199 = vunpack.c.l.b16 %v201
    %v1200 = vunpack.c.l.b16 %v202
    %v1201 = vunpack.c.l.b16 %v203
    %v1202 = vunpack.c.l.b16 %v204
    %v1203 = vunpack.c.l.b16 %v205
    %v1204 = vunpack.c.l.b16 %v206
    %v1205 = vunpack.c.l.b16 %v207
    %v1206 = vunpack.c.l.b16 %v208
    %v1207 = vunpack.c.l.b16 %v209
    %v1208 = vunpack.c.l.b16 %v210
    %v1209 = vunpack.c.l.b16 %v211
    %v1210 = vunpack.c.l.b16 %v212
    %v1211 = vunpack.c.l.b16 %v213
    %v1212 = vunpack.c.l.b16 %v214
    %v1213 = vunpack.c.l.b16 %v215
    %v1214 = vunpack.c.l.b16 %v216
    %v1215 = vunpack.c.l.b16 %v217
    %v1216 = vunpack.c.l.b16 %v218
    %v1217 = vunpack.c.l.b16 %v219
    %v1218 = vunpack.c.l.b16 %v220
    %v1219 = vunpack.c.l.b16 %v221
    %v1220 = vunpack.c.l.b16 %v222
    %v1221 = vunpack.c.l.b16 %v223
    %v1222 = vunpack.c.l.b16 %v224
    %v1223 = vunpack.c.l.b16 %v225
    %v1224 = vunpack.c.l.b16 %v226
    %v1225 = vunpack.c.l.b16 %v227
    %v1226 = vunpack.c.l.b16 %v228
    %v1227 = vunpack.c.l.b16 %v229
    %v1228 = vunpack.c.l.b16 %v230
    %v1229 = vunpack.c.l.b16 %v231
    %v1230 = vunpack.c.l.b16 %v232
    %v1231 = vunpack.c.l.b16 %v233
    %v1232 = vunpack.c.l.b16 %v234
    %v1233 = vunpack.c.l.b16 %v235
    %v1234 = vunpack.c.l.b16 %v236
    %v1235 = vunpack.c.l.b16 %v237
    %v1236 = vpack.c.b16 %v1141, %v1140
    %v1237 = vpack.c.b16 %v1143, %v1142
    %v1238 = vpack.c.b16 %v1145, %v1144
    %v1239 = vpack.c.b16 %v1147, %v1146
    %v1240 = vpack.c.b16 %v1149, %v1148
    %v1241 = vpack.c.b16 %v1151, %v1150
    %v1242 = vpack.c.b16 %v1153, %v1152
    %v1243 = vpack.c.b16 %v1155, %v1154
    %v1244 = vpack.c.b16 %v1157, %v1156
    %v1245 = vpack.c.b16 %v1159, %v1158
    %v1246 = vpack.c.b16 %v1161, %v1160
    %v1247 = vpack.c.b16 %v1163, %v1162
    %v1248 = vpack.c.b16 %v1165, %v1164
    %v1249 = vpack.c.b16 %v1167, %v1166
    %v1250 = vpack.c.b16 %v1169, %v1168
    %v1251 = vpack.c.b16 %v1171, %v1170
    %v1252 = vpack.c.b16 %v1173, %v1172
    %v1253 = vpack.c.b16 %v1175, %v1174
    %v1254 = vpack.c.b16 %v1177, %v1176
    %v1255 = vpack.c.b16 %v1179, %v1178
    %v1256 = vpack.c.b16 %v1181, %v1180
    %v1257 = vpack.c.b16 %v1183, %v1182
    %v1258 = vpack.c.b16 %v1185, %v1184
    %v1259 = vpack.c.b16 %v1187, %v1186
    %v1260 = vpack.c.b16 %v1189, %v1188
    %v1261 = vpack.c.b16 %v1191, %v1190
    %v1262 = vpack.c.b16 %v1193, %v1192
    %v1263 = vpack.c.b16 %v1195, %v1194
    %v1264 = vpack.c.b16 %v1197, %v1196
    %v1265 = vpack.c.b16 %v1199, %v1198
    %v1266 = vpack.c.b16 %v1201, %v1200
    %v1267 = vpack.c.b16 %v1203, %v1202
    %v1268 = vpack.c.b16 %v1205, %v1204
    %v1269 = vpack.c.b16 %v1207, %v1206
    %v1270 = vpack.c.b16 %v1209, %v1208
    %v1271 = vpack.c.b16 %v1211, %v1210
    %v1272 = vpack.c.b16 %v1213, %v1212
    %v1273 = vpack.c.b16 %v1215, %v1214
    %v1274 = vpack.c.b16 %v1217, %v1216
    %v1275 = vpack.c.b16 %v1219, %v1218
    %v1276 = vpack.c.b16 %v1221, %v1220
    %v1277 = vpack.c.b16 %v1223, %v1222
    %v1278 = vpack.c.b16 %v1225, %v1224
    %v1279 = vpack.c.b16 %v1227, %v1226
    %v1280 = vpack.c.b16 %v1229, %v1228
    %v1281 = vpack.c.b16 %v1231, %v1230
    %v1282 = vpack.c.b16 %v1233, %v1232
    %v1283 = vpack.c.b16 %v1235, %v1234
    %1332 = vmatpush.bf16.msra.mxu0 %v1243
    %1333 = vmatpush.bf16.msra.mxu0 %v1242
    %1334 = vmatpush.bf16.msra.mxu0 %v1241
    %1335 = vmatpush.bf16.msra.mxu0 %v1240
    %1336 = vmatpush.bf16.msra.mxu0 %v1239
    %1337 = vmatpush.bf16.msra.mxu0 %v1238
    %1338 = vmatpush.bf16.msra.mxu0 %v1237
    %1339 = vmatpush.bf16.msra.mxu0 %v1236
    %1340 = vmatmul.bf16.gmra.mxu0 %v1034
    %v1341 = vpop.f32.mrf.mxu0
    %v1342 = vadd.f32 %v1042, %v1341
    %v1343 = vpop.f32.mrf.mxu0
    %1344 = vdwg.mxu0
    %1345 = vmatpush.bf16.msra.mxu0 %v1251
    %1346 = vmatpush.bf16.msra.mxu0 %v1250
    %1347 = vmatpush.bf16.msra.mxu0 %v1249
    %1348 = vmatpush.bf16.msra.mxu0 %v1248
    %1349 = vmatpush.bf16.msra.mxu0 %v1247
    %1350 = vmatpush.bf16.msra.mxu0 %v1246
    %1351 = vmatpush.bf16.msra.mxu0 %v1245
    %1352 = vmatpush.bf16.msra.mxu0 %v1244
    %1353 = vmatmul.bf16.gmra.mxu0 %v1035
    %v1354 = vpop.f32.mrf.mxu0
    %v1355 = vadd.f32 %v1342, %v1354
    %v1356 = vpop.f32.mrf.mxu0
    %1357 = vdwg.mxu0
    %1358 = vmatpush.bf16.msra.mxu0 %v1259
    %1359 = vmatpush.bf16.msra.mxu0 %v1258
    %1360 = vmatpush.bf16.msra.mxu0 %v1257
    %1361 = vmatpush.bf16.msra.mxu0 %v1256
    %1362 = vmatpush.bf16.msra.mxu0 %v1255
    %1363 = vmatpush.bf16.msra.mxu0 %v1254
    %1364 = vmatpush.bf16.msra.mxu0 %v1253
    %1365 = vmatpush.bf16.msra.mxu0 %v1252
    %1366 = vmatmul.bf16.gmra.mxu0 %v1036
    %v1367 = vpop.f32.mrf.mxu0
    %v1368 = vadd.f32 %v1355, %v1367
    %v1369 = vpop.f32.mrf.mxu0
    %1370 = vdwg.mxu0
    %1371 = vmatpush.bf16.msra.mxu0 %v1267
    %1372 = vmatpush.bf16.msra.mxu0 %v1266
    %1373 = vmatpush.bf16.msra.mxu0 %v1265
    %1374 = vmatpush.bf16.msra.mxu0 %v1264
    %1375 = vmatpush.bf16.msra.mxu0 %v1263
    %1376 = vmatpush.bf16.msra.mxu0 %v1262
    %1377 = vmatpush.bf16.msra.mxu0 %v1261
    %1378 = vmatpush.bf16.msra.mxu0 %v1260
    %1379 = vmatmul.bf16.gmra.mxu0 %v1037
    %v1380 = vpop.f32.mrf.mxu0
    %v1381 = vadd.f32 %v1368, %v1380
    %v1382 = vpop.f32.mrf.mxu0
    %1383 = vdwg.mxu0
    %1384 = vmatpush.bf16.msra.mxu0 %v1275
    %1385 = vmatpush.bf16.msra.mxu0 %v1274
    %1386 = vmatpush.bf16.msra.mxu0 %v1273
    %1387 = vmatpush.bf16.msra.mxu0 %v1272
    %1388 = vmatpush.bf16.msra.mxu0 %v1271
    %1389 = vmatpush.bf16.msra.mxu0 %v1270
    %1390 = vmatpush.bf16.msra.mxu0 %v1269
    %1391 = vmatpush.bf16.msra.mxu0 %v1268
    %1392 = vmatmul.bf16.gmra.mxu0 %v1038
    %v1393 = vpop.f32.mrf.mxu0
    %v1394 = vadd.f32 %v1381, %v1393
    %v1395 = vpop.f32.mrf.mxu0
    %1396 = vdwg.mxu0
    %1397 = vmatpush.bf16.msra.mxu0 %v1283
    %1398 = vmatpush.bf16.msra.mxu0 %v1282
    %1399 = vmatpush.bf16.msra.mxu0 %v1281
    %1400 = vmatpush.bf16.msra.mxu0 %v1280
    %1401 = vmatpush.bf16.msra.mxu0 %v1279
    %1402 = vmatpush.bf16.msra.mxu0 %v1278
    %1403 = vmatpush.bf16.msra.mxu0 %v1277
    %1404 = vmatpush.bf16.msra.mxu0 %v1276
    %1405 = vmatmul.bf16.gmra.mxu0 %v1039
    %v1406 = vpop.f32.mrf.mxu0
    %v1407 = vadd.f32 %v1394, %v1406
    %v1408 = vpop.f32.mrf.mxu0
    %1409 = vdwg.mxu0
    %v1410 = vmax.f32 %v1407, 0.0
    %1411 = vst [vmem:[#allocation3 + $0x1] sm:$0xf] %v1410
    %v1412 = vld [vmem:[#allocation3] sm:$0xf]
    %v1413 = vld [vmem:[#allocation3 + $0x1] sm:$0xf]
    %v1414 = vld [vmem:[#allocation3 + $0x2] sm:$0xf]
    %v1415 = vpack.c.bf16 %v1412, %v1412
    %v1416 = vpack.c.bf16 %v1413, %v1413
    %v1417 = vpack.c.bf16 %v1414, %v1414
    %v1418 = vld [vmem:[%s6] sm:$0x1]
    %v1420 = vperm.slane %v1418, 0
    %v1470 = vunpack.c.l.b16 %v238
    %v1471 = vunpack.c.l.b16 %v239
    %v1472 = vunpack.c.l.b16 %v240
    %v1473 = vunpack.c.l.b16 %v241
    %v1474 = vunpack.c.l.b16 %v242
    %v1475 = vunpack.c.l.b16 %v243
    %v1476 = vunpack.c.l.b16 %v244
    %v1477 = vunpack.c.l.b16 %v245
    %v1478 = vunpack.c.l.b16 %v246
    %v1479 = vunpack.c.l.b16 %v247
    %v1480 = vunpack.c.l.b16 %v248
    %v1481 = vunpack.c.l.b16 %v249
    %v1482 = vunpack.c.l.b16 %v250
    %v1483 = vunpack.c.l.b16 %v251
    %v1484 = vunpack.c.l.b16 %v252
    %v1485 = vunpack.c.l.b16 %v253
    %v1486 = vunpack.c.l.b16 %v254
    %v1487 = vunpack.c.l.b16 %v255
    %v1488 = vunpack.c.l.b16 %v256
    %v1489 = vunpack.c.l.b16 %v257
    %v1490 = vunpack.c.l.b16 %v258
    %v1491 = vunpack.c.l.b16 %v259
    %v1492 = vunpack.c.l.b16 %v260
    %v1493 = vunpack.c.l.b16 %v261
    %v1494 = vunpack.c.l.b16 %v262
    %v1495 = vunpack.c.l.b16 %v263
    %v1496 = vunpack.c.l.b16 %v264
    %v1497 = vunpack.c.l.b16 %v265
    %v1498 = vunpack.c.l.b16 %v266
    %v1499 = vunpack.c.l.b16 %v267
    %v1500 = vunpack.c.l.b16 %v268
    %v1501 = vunpack.c.l.b16 %v269
    %v1502 = vunpack.c.l.b16 %v270
    %v1503 = vunpack.c.l.b16 %v271
    %v1504 = vunpack.c.l.b16 %v272
    %v1505 = vunpack.c.l.b16 %v273
    %v1506 = vunpack.c.l.b16 %v274
    %v1507 = vunpack.c.l.b16 %v275
    %v1508 = vunpack.c.l.b16 %v276
    %v1509 = vunpack.c.l.b16 %v277
    %v1510 = vunpack.c.l.b16 %v278
    %v1511 = vunpack.c.l.b16 %v279
    %v1512 = vunpack.c.l.b16 %v280
    %v1513 = vunpack.c.l.b16 %v281
    %v1514 = vunpack.c.l.b16 %v282
    %v1515 = vunpack.c.l.b16 %v283
    %v1516 = vunpack.c.l.b16 %v284
    %v1517 = vunpack.c.l.b16 %v285
    %v1518 = vpack.c.b16 %v1471, %v1470
    %v1519 = vpack.c.b16 %v1473, %v1472
    %v1520 = vpack.c.b16 %v1475, %v1474
    %v1521 = vpack.c.b16 %v1477, %v1476
    %v1522 = vpack.c.b16 %v1479, %v1478
    %v1523 = vpack.c.b16 %v1481, %v1480
    %v1524 = vpack.c.b16 %v1483, %v1482
    %v1525 = vpack.c.b16 %v1485, %v1484
    %v1526 = vpack.c.b16 %v1487, %v1486
    %v1527 = vpack.c.b16 %v1489, %v1488
    %v1528 = vpack.c.b16 %v1491, %v1490
    %v1529 = vpack.c.b16 %v1493, %v1492
    %v1530 = vpack.c.b16 %v1495, %v1494
    %v1531 = vpack.c.b16 %v1497, %v1496
    %v1532 = vpack.c.b16 %v1499, %v1498
    %v1533 = vpack.c.b16 %v1501, %v1500
    %v1534 = vpack.c.b16 %v1503, %v1502
    %v1535 = vpack.c.b16 %v1505, %v1504
    %v1536 = vpack.c.b16 %v1507, %v1506
    %v1537 = vpack.c.b16 %v1509, %v1508
    %v1538 = vpack.c.b16 %v1511, %v1510
    %v1539 = vpack.c.b16 %v1513, %v1512
    %v1540 = vpack.c.b16 %v1515, %v1514
    %v1541 = vpack.c.b16 %v1517, %v1516
    %1566 = vmatpush.bf16.msra.mxu0 %v1525
    %1567 = vmatpush.bf16.msra.mxu0 %v1524
    %1568 = vmatpush.bf16.msra.mxu0 %v1523
    %1569 = vmatpush.bf16.msra.mxu0 %v1522
    %1570 = vmatpush.bf16.msra.mxu0 %v1521
    %1571 = vmatpush.bf16.msra.mxu0 %v1520
    %1572 = vmatpush.bf16.msra.mxu0 %v1519
    %1573 = vmatpush.bf16.msra.mxu0 %v1518
    %1574 = vmatmul.bf16.gmra.mxu0 %v1415
    %v1575 = vpop.f32.mrf.mxu0
    %v1576 = vadd.f32 %v1420, %v1575
    %v1577 = vpop.f32.mrf.mxu0
    %1578 = vdwg.mxu0
    %1579 = vmatpush.bf16.msra.mxu0 %v1533
    %1580 = vmatpush.bf16.msra.mxu0 %v1532
    %1581 = vmatpush.bf16.msra.mxu0 %v1531
    %1582 = vmatpush.bf16.msra.mxu0 %v1530
    %1583 = vmatpush.bf16.msra.mxu0 %v1529
    %1584 = vmatpush.bf16.msra.mxu0 %v1528
    %1585 = vmatpush.bf16.msra.mxu0 %v1527
    %1586 = vmatpush.bf16.msra.mxu0 %v1526
    %1587 = vmatmul.bf16.gmra.mxu0 %v1416
    %v1588 = vpop.f32.mrf.mxu0
    %v1589 = vadd.f32 %v1576, %v1588
    %v1590 = vpop.f32.mrf.mxu0
    %1591 = vdwg.mxu0
    %1592 = vmatpush.bf16.msra.mxu0 %v1541
    %1593 = vmatpush.bf16.msra.mxu0 %v1540
    %1594 = vmatpush.bf16.msra.mxu0 %v1539
    %1595 = vmatpush.bf16.msra.mxu0 %v1538
    %1596 = vmatpush.bf16.msra.mxu0 %v1537
    %1597 = vmatpush.bf16.msra.mxu0 %v1536
    %1598 = vmatpush.bf16.msra.mxu0 %v1535
    %1599 = vmatpush.bf16.msra.mxu0 %v1534
    %1600 = vmatmul.bf16.gmra.mxu0 %v1417
    %v1601 = vpop.f32.mrf.mxu0
    %v1602 = vadd.f32 %v1589, %v1601
    %v1603 = vpop.f32.mrf.mxu0
    %1604 = vdwg.mxu0
    %v1605 = vld [vmem:[%s8] sm:$0x1]
    %v1607 = vperm.slane %v1605, 0
    %v1657 = vunpack.c.l.b16 %v286
    %v1658 = vunpack.c.l.b16 %v287
    %v1659 = vunpack.c.l.b16 %v288
    %v1660 = vunpack.c.l.b16 %v289
    %v1661 = vunpack.c.l.b16 %v290
    %v1662 = vunpack.c.l.b16 %v291
    %v1663 = vunpack.c.l.b16 %v292
    %v1664 = vunpack.c.l.b16 %v293
    %v1665 = vunpack.c.l.b16 %v294
    %v1666 = vunpack.c.l.b16 %v295
    %v1667 = vunpack.c.l.b16 %v296
    %v1668 = vunpack.c.l.b16 %v297
    %v1669 = vunpack.c.l.b16 %v298
    %v1670 = vunpack.c.l.b16 %v299
    %v1671 = vunpack.c.l.b16 %v300
    %v1672 = vunpack.c.l.b16 %v301
    %v1673 = vunpack.c.l.b16 %v302
    %v1674 = vunpack.c.l.b16 %v303
    %v1675 = vunpack.c.l.b16 %v304
    %v1676 = vunpack.c.l.b16 %v305
    %v1677 = vunpack.c.l.b16 %v306
    %v1678 = vunpack.c.l.b16 %v307
    %v1679 = vunpack.c.l.b16 %v308
    %v1680 = vunpack.c.l.b16 %v309
    %v1681 = vunpack.c.l.b16 %v310
    %v1682 = vunpack.c.l.b16 %v311
    %v1683 = vunpack.c.l.b16 %v312
    %v1684 = vunpack.c.l.b16 %v313
    %v1685 = vunpack.c.l.b16 %v314
    %v1686 = vunpack.c.l.b16 %v315
    %v1687 = vunpack.c.l.b16 %v316
    %v1688 = vunpack.c.l.b16 %v317
    %v1689 = vunpack.c.l.b16 %v318
    %v1690 = vunpack.c.l.b16 %v319
    %v1691 = vunpack.c.l.b16 %v320
    %v1692 = vunpack.c.l.b16 %v321
    %v1693 = vunpack.c.l.b16 %v322
    %v1694 = vunpack.c.l.b16 %v323
    %v1695 = vunpack.c.l.b16 %v324
    %v1696 = vunpack.c.l.b16 %v325
    %v1697 = vunpack.c.l.b16 %v326
    %v1698 = vunpack.c.l.b16 %v327
    %v1699 = vunpack.c.l.b16 %v328
    %v1700 = vunpack.c.l.b16 %v329
    %v1701 = vunpack.c.l.b16 %v330
    %v1702 = vunpack.c.l.b16 %v331
    %v1703 = vunpack.c.l.b16 %v332
    %v1704 = vunpack.c.l.b16 %v333
    %v1705 = vpack.c.b16 %v1658, %v1657
    %v1706 = vpack.c.b16 %v1660, %v1659
    %v1707 = vpack.c.b16 %v1662, %v1661
    %v1708 = vpack.c.b16 %v1664, %v1663
    %v1709 = vpack.c.b16 %v1666, %v1665
    %v1710 = vpack.c.b16 %v1668, %v1667
    %v1711 = vpack.c.b16 %v1670, %v1669
    %v1712 = vpack.c.b16 %v1672, %v1671
    %v1713 = vpack.c.b16 %v1674, %v1673
    %v1714 = vpack.c.b16 %v1676, %v1675
    %v1715 = vpack.c.b16 %v1678, %v1677
    %v1716 = vpack.c.b16 %v1680, %v1679
    %v1717 = vpack.c.b16 %v1682, %v1681
    %v1718 = vpack.c.b16 %v1684, %v1683
    %v1719 = vpack.c.b16 %v1686, %v1685
    %v1720 = vpack.c.b16 %v1688, %v1687
    %v1721 = vpack.c.b16 %v1690, %v1689
    %v1722 = vpack.c.b16 %v1692, %v1691
    %v1723 = vpack.c.b16 %v1694, %v1693
    %v1724 = vpack.c.b16 %v1696, %v1695
    %v1725 = vpack.c.b16 %v1698, %v1697
    %v1726 = vpack.c.b16 %v1700, %v1699
    %v1727 = vpack.c.b16 %v1702, %v1701
    %v1728 = vpack.c.b16 %v1704, %v1703
    %1753 = vmatpush.bf16.msra.mxu0 %v1712
    %1754 = vmatpush.bf16.msra.mxu0 %v1711
    %1755 = vmatpush.bf16.msra.mxu0 %v1710
    %1756 = vmatpush.bf16.msra.mxu0 %v1709
    %1757 = vmatpush.bf16.msra.mxu0 %v1708
    %1758 = vmatpush.bf16.msra.mxu0 %v1707
    %1759 = vmatpush.bf16.msra.mxu0 %v1706
    %1760 = vmatpush.bf16.msra.mxu0 %v1705
    %1761 = vmatmul.bf16.gmra.mxu0 %v1415
    %v1762 = vpop.f32.mrf.mxu0
    %v1763 = vadd.f32 %v1607, %v1762
    %v1764 = vpop.f32.mrf.mxu0
    %1765 = vdwg.mxu0
    %1766 = vmatpush.bf16.msra.mxu0 %v1720
    %1767 = vmatpush.bf16.msra.mxu0 %v1719
    %1768 = vmatpush.bf16.msra.mxu0 %v1718
    %1769 = vmatpush.bf16.msra.mxu0 %v1717
    %1770 = vmatpush.bf16.msra.mxu0 %v1716
    %1771 = vmatpush.bf16.msra.mxu0 %v1715
    %1772 = vmatpush.bf16.msra.mxu0 %v1714
    %1773 = vmatpush.bf16.msra.mxu0 %v1713
    %1774 = vmatmul.bf16.gmra.mxu0 %v1416
    %v1775 = vpop.f32.mrf.mxu0
    %v1776 = vadd.f32 %v1763, %v1775
    %v1777 = vpop.f32.mrf.mxu0
    %1778 = vdwg.mxu0
    %1779 = vmatpush.bf16.msra.mxu0 %v1728
    %1780 = vmatpush.bf16.msra.mxu0 %v1727
    %1781 = vmatpush.bf16.msra.mxu0 %v1726
    %1782 = vmatpush.bf16.msra.mxu0 %v1725
    %1783 = vmatpush.bf16.msra.mxu0 %v1724
    %1784 = vmatpush.bf16.msra.mxu0 %v1723
    %1785 = vmatpush.bf16.msra.mxu0 %v1722
    %1786 = vmatpush.bf16.msra.mxu0 %v1721
    %1787 = vmatmul.bf16.gmra.mxu0 %v1417
    %v1788 = vpop.f32.mrf.mxu0
    %v1789 = vadd.f32 %v1776, %v1788
    %v1790 = vpop.f32.mrf.mxu0
    %1791 = vdwg.mxu0
    %vm1792 = vcmask 27648
    %v1793 = vsel %vm1792, %v1602, -inf
    %1794 = vmax.xlane.f32.xlu0 %v1793
    %v1795 = vpop.xlane.xlu0 %1794
    %vm1796 = vcmask 1043456
    %v1797 = vsel %vm1796, %v1795, -inf
    %v1798 = vrot.slane %v1797, 4
    %v1799 = vmax.f32 %v1797, %v1798
    %v1800 = vrot.slane %v1799, 2
    %v1801 = vmax.f32 %v1799, %v1800
    %v1802 = vrot.slane %v1801, 1
    %v1803 = vmax.f32 %v1801, %v1802
    %v1804 = vsub.f32 %v1602, %v1803
    %v1805 = vmul.f32 %v1804, 1.442695
    %v1806 = vpow.pop %v1805
    %v1807 = vsel %vm1792, %v1806, 0.0
    %1808 = vadd.xlane.f32.xlu0 %v1807
    %v1809 = vpop.xlane.xlu0 %1808
    %v1810 = vsel %vm1796, %v1809, 0.0
    %v1811 = vrot.slane %v1810, 4
    %v1812 = vadd.f32 %v1810, %v1811
    %v1813 = vrot.slane %v1812, 2
    %v1814 = vadd.f32 %v1812, %v1813
    %v1815 = vrot.slane %v1814, 1
    %v1816 = vadd.f32 %v1814, %v1815
    %v1817 = vrcp.pop %v1816
    %v1818 = vmul.f32 %v1806, %v1817
    %v1819 = vsel %vm1792, %v1789, -inf
    %1820 = vmax.xlane.f32.xlu0 %v1819
    %v1821 = vpop.xlane.xlu0 %1820
    %v1822 = vsel %vm1796, %v1821, -inf
    %v1823 = vrot.slane %v1822, 4
    %v1824 = vmax.f32 %v1822, %v1823
    %v1825 = vrot.slane %v1824, 2
    %v1826 = vmax.f32 %v1824, %v1825
    %v1827 = vrot.slane %v1826, 1
    %v1828 = vmax.f32 %v1826, %v1827
    %v1829 = vsub.f32 %v1789, %v1828
    %v1830 = vmul.f32 %v1829, 1.442695
    %v1831 = vpow.pop %v1830
    %v1832 = vsel %vm1792, %v1831, 0.0
    %1833 = vadd.xlane.f32.xlu0 %v1832
    %v1834 = vpop.xlane.xlu0 %1833
    %v1835 = vsel %vm1796, %v1834, 0.0
    %v1836 = vrot.slane %v1835, 4
    %v1837 = vadd.f32 %v1835, %v1836
    %v1838 = vrot.slane %v1837, 2
    %v1839 = vadd.f32 %v1837, %v1838
    %v1840 = vrot.slane %v1839, 1
    %v1841 = vadd.f32 %v1839, %v1840
    %v1842 = vrcp.pop %v1841
    %v1843 = vmul.f32 %v1831, %v1842
    %1844 = vst.msk [vmem:[#allocation6] sm:$0xf] %vm1792, %v1818
    %s1845 = scalar_lea.vmem [#allocation6], 4
    %1846 = vst.msk [vmem:[%s1845] sm:$0xf] %vm1792, %v1843
    %v1847 = vmul.f32 %v1818, %v43
    %v1848 = vsel %vm1792, %v1847, 0.0
    %1849 = vadd.xlane.f32.xlu0 %v1848
    %v1850 = vpop.xlane.xlu0 %1849
    %v1851 = vsel %vm1796, %v1850, 0.0
    %v1852 = vrot.slane %v1851, 4
    %v1853 = vadd.f32 %v1851, %v1852
    %v1854 = vrot.slane %v1853, 2
    %v1855 = vadd.f32 %v1853, %v1854
    %v1856 = vrot.slane %v1855, 1
    %v1857 = vadd.f32 %v1855, %v1856
    %v1858 = vmul.f32 %v1818, %v45
    %v1859 = vsel %vm1792, %v1858, 0.0
    %1860 = vadd.xlane.f32.xlu0 %v1859
    %v1861 = vpop.xlane.xlu0 %1860
    %v1862 = vsel %vm1796, %v1861, 0.0
    %v1863 = vrot.slane %v1862, 4
    %v1864 = vadd.f32 %v1862, %v1863
    %v1865 = vrot.slane %v1864, 2
    %v1866 = vadd.f32 %v1864, %v1865
    %v1867 = vrot.slane %v1866, 1
    %v1868 = vadd.f32 %v1866, %v1867
    %v1869 = vmul.f32 %v1843, %v43
    %v1870 = vsel %vm1792, %v1869, 0.0
    %1871 = vadd.xlane.f32.xlu0 %v1870
    %v1872 = vpop.xlane.xlu0 %1871
    %v1873 = vsel %vm1796, %v1872, 0.0
    %v1874 = vrot.slane %v1873, 4
    %v1875 = vadd.f32 %v1873, %v1874
    %v1876 = vrot.slane %v1875, 2
    %v1877 = vadd.f32 %v1875, %v1876
    %v1878 = vrot.slane %v1877, 1
    %v1879 = vadd.f32 %v1877, %v1878
    %v1880 = vmul.f32 %v1843, %v45
    %v1881 = vsel %vm1792, %v1880, 0.0
    %1882 = vadd.xlane.f32.xlu0 %v1881
    %v1883 = vpop.xlane.xlu0 %1882
    %v1884 = vsel %vm1796, %v1883, 0.0
    %v1885 = vrot.slane %v1884, 4
    %v1886 = vadd.f32 %v1884, %v1885
    %v1887 = vrot.slane %v1886, 2
    %v1888 = vadd.f32 %v1886, %v1887
    %v1889 = vrot.slane %v1888, 1
    %v1890 = vadd.f32 %v1888, %v1889
    %v1891 = vadd.f32 %v1857, %v1879
    %v1892 = vmul.f32 %v1891, 0.5
    %v1893 = vadd.f32 %v1868, %v1890
    %v1894 = vmul.f32 %v1893, 0.5
    %v1895 = vsub.f32 %v1879, %v1857
    %v1896 = vsub.f32 %v1890, %v1868
    %vm1897 = vcmask 7168
    %v1898 = vsel %vm1897, %v1892, %v1894
    %vm1899 = vcmask 15360
    %v1900 = vsel %vm1899, %v1898, %v1895
    %vm1901 = vcmask 23552
    %v1902 = vsel %vm1901, %v1900, %v1896
    %vm1903 = vcmask 24576
    %1904 = vst.msk [vmem:[#allocation4] sm:$0x1] %vm1903, %v1902
    %v1905 = vld [vmem:[%s0] sm:$0xc0]
    %v1906 = vld [vmem:[%s0 + $0x8] sm:$0xc0]
    %v1907 = vld [vmem:[%s0 + $0x10] sm:$0x3]
    %v1908 = vld [vmem:[%s0 + $0x18] sm:$0x3]
    %v1909 = vld [vmem:[%s0] sm:$0x80]
    %v1910 = vld [vmem:[%s0 + $0x8] sm:$0x80]
    %v1911 = vld [vmem:[%s0 + $0x10] sm:$0x7]
    %v1912 = vld [vmem:[%s0 + $0x18] sm:$0x7]
    %v1913 = vld [vmem:[%s0 + $0x10] sm:$0xf]
    %v1914 = vld [vmem:[%s0 + $0x18] sm:$0xf]
    %vm1919 = vcmask 1046528
    %v1920 = vrot.slane %v1909, 1
    %v1921 = vrot.slane %v1911, 1
    %v1922 = vsel %vm1919, %v1920, %v1921
    %v1923 = vrot.slane %v1910, 1
    %v1924 = vrot.slane %v1912, 1
    %v1925 = vsel %vm1919, %v1923, %v1924
    %v1932 = vrot.slane %v1913, 2
    %v1933 = vrot.slane %v1914, 2
    %v1936 = vpack.c.bf16 %v1907, %v1905
    %v1937 = vpack.c.bf16 %v1908, %v1906
    %v1938 = vpack.c.bf16 %v1921, %v1922
    %v1939 = vpack.c.bf16 %v1924, %v1925
    %v1940 = vpack.c.bf16 %v1932, %v1932
    %v1941 = vpack.c.bf16 %v1933, %v1933
    %v1942 = vld [vmem:[%s2] sm:$0x3]
    %v1944 = vperm.slane %v1942, 0
    %v1945 = vperm.slane %v1942, 1
    %v1954 = vrot.slane %v1936, 3
    %v1955 = vrot.slane %v1937, 3
    %v1956 = vrot.slane %v1938, 3
    %v1957 = vrot.slane %v1939, 3
    %v1958 = vrot.slane %v1940, 3
    %v1959 = vrot.slane %v1941, 3
    %1966 = vmatpush.bf16.msra.mxu0 %v672
    %1967 = vmatpush.bf16.msra.mxu0 %v670
    %1968 = vmatpush.bf16.msra.mxu0 %v668
    %1969 = vmatpush.bf16.msra.mxu0 %v666
    %1970 = vmatpush.bf16.msra.mxu0 %v664
    %1971 = vmatpush.bf16.msra.mxu0 %v662
    %1972 = vmatpush.bf16.msra.mxu0 %v660
    %1973 = vmatpush.bf16.msra.mxu0 %v658
    %1974 = vmatmul.bf16.gmra.mxu0 %v1954
    %v1975 = vpop.f32.mrf.mxu0
    %v1976 = vadd.f32 %v1944, %v1975
    %v1977 = vpop.f32.mrf.mxu0
    %1978 = vdwg.mxu0
    %1979 = vmatpush.bf16.msra.mxu0 %v688
    %1980 = vmatpush.bf16.msra.mxu0 %v686
    %1981 = vmatpush.bf16.msra.mxu0 %v684
    %1982 = vmatpush.bf16.msra.mxu0 %v682
    %1983 = vmatpush.bf16.msra.mxu0 %v680
    %1984 = vmatpush.bf16.msra.mxu0 %v678
    %1985 = vmatpush.bf16.msra.mxu0 %v676
    %1986 = vmatpush.bf16.msra.mxu0 %v674
    %1987 = vmatmul.bf16.gmra.mxu0 %v1955
    %v1988 = vpop.f32.mrf.mxu0
    %v1989 = vadd.f32 %v1976, %v1988
    %v1990 = vpop.f32.mrf.mxu0
    %1991 = vdwg.mxu0
    %1992 = vmatpush.bf16.msra.mxu0 %v704
    %1993 = vmatpush.bf16.msra.mxu0 %v702
    %1994 = vmatpush.bf16.msra.mxu0 %v700
    %1995 = vmatpush.bf16.msra.mxu0 %v698
    %1996 = vmatpush.bf16.msra.mxu0 %v696
    %1997 = vmatpush.bf16.msra.mxu0 %v694
    %1998 = vmatpush.bf16.msra.mxu0 %v692
    %1999 = vmatpush.bf16.msra.mxu0 %v690
    %2000 = vmatmul.bf16.gmra.mxu0 %v1956
    %v2001 = vpop.f32.mrf.mxu0
    %v2002 = vadd.f32 %v1989, %v2001
    %v2003 = vpop.f32.mrf.mxu0
    %2004 = vdwg.mxu0
    %2005 = vmatpush.bf16.msra.mxu0 %v720
    %2006 = vmatpush.bf16.msra.mxu0 %v718
    %2007 = vmatpush.bf16.msra.mxu0 %v716
    %2008 = vmatpush.bf16.msra.mxu0 %v714
    %2009 = vmatpush.bf16.msra.mxu0 %v712
    %2010 = vmatpush.bf16.msra.mxu0 %v710
    %2011 = vmatpush.bf16.msra.mxu0 %v708
    %2012 = vmatpush.bf16.msra.mxu0 %v706
    %2013 = vmatmul.bf16.gmra.mxu0 %v1957
    %v2014 = vpop.f32.mrf.mxu0
    %v2015 = vadd.f32 %v2002, %v2014
    %v2016 = vpop.f32.mrf.mxu0
    %2017 = vdwg.mxu0
    %2018 = vmatpush.bf16.msra.mxu0 %v736
    %2019 = vmatpush.bf16.msra.mxu0 %v734
    %2020 = vmatpush.bf16.msra.mxu0 %v732
    %2021 = vmatpush.bf16.msra.mxu0 %v730
    %2022 = vmatpush.bf16.msra.mxu0 %v728
    %2023 = vmatpush.bf16.msra.mxu0 %v726
    %2024 = vmatpush.bf16.msra.mxu0 %v724
    %2025 = vmatpush.bf16.msra.mxu0 %v722
    %2026 = vmatmul.bf16.gmra.mxu0 %v1958
    %v2027 = vpop.f32.mrf.mxu0
    %v2028 = vadd.f32 %v2015, %v2027
    %v2029 = vpop.f32.mrf.mxu0
    %2030 = vdwg.mxu0
    %2031 = vmatpush.bf16.msra.mxu0 %v752
    %2032 = vmatpush.bf16.msra.mxu0 %v750
    %2033 = vmatpush.bf16.msra.mxu0 %v748
    %2034 = vmatpush.bf16.msra.mxu0 %v746
    %2035 = vmatpush.bf16.msra.mxu0 %v744
    %2036 = vmatpush.bf16.msra.mxu0 %v742
    %2037 = vmatpush.bf16.msra.mxu0 %v740
    %2038 = vmatpush.bf16.msra.mxu0 %v738
    %2039 = vmatmul.bf16.gmra.mxu0 %v1959
    %v2040 = vpop.f32.mrf.mxu0
    %v2041 = vadd.f32 %v2028, %v2040
    %v2042 = vpop.f32.mrf.mxu0
    %2043 = vdwg.mxu0
    %2044 = vmatpush.bf16.msra.mxu0 %v673
    %2045 = vmatpush.bf16.msra.mxu0 %v671
    %2046 = vmatpush.bf16.msra.mxu0 %v669
    %2047 = vmatpush.bf16.msra.mxu0 %v667
    %2048 = vmatpush.bf16.msra.mxu0 %v665
    %2049 = vmatpush.bf16.msra.mxu0 %v663
    %2050 = vmatpush.bf16.msra.mxu0 %v661
    %2051 = vmatpush.bf16.msra.mxu0 %v659
    %2052 = vmatmul.bf16.gmra.mxu0 %v1954
    %v2053 = vpop.f32.mrf.mxu0
    %v2054 = vadd.f32 %v1945, %v2053
    %v2055 = vpop.f32.mrf.mxu0
    %2056 = vdwg.mxu0
    %2057 = vmatpush.bf16.msra.mxu0 %v689
    %2058 = vmatpush.bf16.msra.mxu0 %v687
    %2059 = vmatpush.bf16.msra.mxu0 %v685
    %2060 = vmatpush.bf16.msra.mxu0 %v683
    %2061 = vmatpush.bf16.msra.mxu0 %v681
    %2062 = vmatpush.bf16.msra.mxu0 %v679
    %2063 = vmatpush.bf16.msra.mxu0 %v677
    %2064 = vmatpush.bf16.msra.mxu0 %v675
    %2065 = vmatmul.bf16.gmra.mxu0 %v1955
    %v2066 = vpop.f32.mrf.mxu0
    %v2067 = vadd.f32 %v2054, %v2066
    %v2068 = vpop.f32.mrf.mxu0
    %2069 = vdwg.mxu0
    %2070 = vmatpush.bf16.msra.mxu0 %v705
    %2071 = vmatpush.bf16.msra.mxu0 %v703
    %2072 = vmatpush.bf16.msra.mxu0 %v701
    %2073 = vmatpush.bf16.msra.mxu0 %v699
    %2074 = vmatpush.bf16.msra.mxu0 %v697
    %2075 = vmatpush.bf16.msra.mxu0 %v695
    %2076 = vmatpush.bf16.msra.mxu0 %v693
    %2077 = vmatpush.bf16.msra.mxu0 %v691
    %2078 = vmatmul.bf16.gmra.mxu0 %v1956
    %v2079 = vpop.f32.mrf.mxu0
    %v2080 = vadd.f32 %v2067, %v2079
    %v2081 = vpop.f32.mrf.mxu0
    %2082 = vdwg.mxu0
    %2083 = vmatpush.bf16.msra.mxu0 %v721
    %2084 = vmatpush.bf16.msra.mxu0 %v719
    %2085 = vmatpush.bf16.msra.mxu0 %v717
    %2086 = vmatpush.bf16.msra.mxu0 %v715
    %2087 = vmatpush.bf16.msra.mxu0 %v713
    %2088 = vmatpush.bf16.msra.mxu0 %v711
    %2089 = vmatpush.bf16.msra.mxu0 %v709
    %2090 = vmatpush.bf16.msra.mxu0 %v707
    %2091 = vmatmul.bf16.gmra.mxu0 %v1957
    %v2092 = vpop.f32.mrf.mxu0
    %v2093 = vadd.f32 %v2080, %v2092
    %v2094 = vpop.f32.mrf.mxu0
    %2095 = vdwg.mxu0
    %2096 = vmatpush.bf16.msra.mxu0 %v737
    %2097 = vmatpush.bf16.msra.mxu0 %v735
    %2098 = vmatpush.bf16.msra.mxu0 %v733
    %2099 = vmatpush.bf16.msra.mxu0 %v731
    %2100 = vmatpush.bf16.msra.mxu0 %v729
    %2101 = vmatpush.bf16.msra.mxu0 %v727
    %2102 = vmatpush.bf16.msra.mxu0 %v725
    %2103 = vmatpush.bf16.msra.mxu0 %v723
    %2104 = vmatmul.bf16.gmra.mxu0 %v1958
    %v2105 = vpop.f32.mrf.mxu0
    %v2106 = vadd.f32 %v2093, %v2105
    %v2107 = vpop.f32.mrf.mxu0
    %2108 = vdwg.mxu0
    %2109 = vmatpush.bf16.msra.mxu0 %v753
    %2110 = vmatpush.bf16.msra.mxu0 %v751
    %2111 = vmatpush.bf16.msra.mxu0 %v749
    %2112 = vmatpush.bf16.msra.mxu0 %v747
    %2113 = vmatpush.bf16.msra.mxu0 %v745
    %2114 = vmatpush.bf16.msra.mxu0 %v743
    %2115 = vmatpush.bf16.msra.mxu0 %v741
    %2116 = vmatpush.bf16.msra.mxu0 %v739
    %2117 = vmatmul.bf16.gmra.mxu0 %v1959
    %v2118 = vpop.f32.mrf.mxu0
    %v2119 = vadd.f32 %v2106, %v2118
    %v2120 = vpop.f32.mrf.mxu0
    %2121 = vdwg.mxu0
    %v2122 = vmax.f32 %v2041, 0.0
    %v2123 = vmax.f32 %v2119, 0.0
    %v2126 = vrot.slane %v2122, 1
    %v2127 = vrot.slane %v2123, 1
    %2130 = vst [vmem:[#allocation2] sm:$0x80] %v2126
    %2131 = vst [vmem:[#allocation2 + $0x8] sm:$0x80] %v2127
    %2132 = vst [vmem:[#allocation2 + $0x10] sm:$0x7] %v2126
    %2133 = vst [vmem:[#allocation2 + $0x18] sm:$0x7] %v2127
    %v2134 = vld [vmem:[#allocation2] sm:$0xc0]
    %v2135 = vld [vmem:[#allocation2 + $0x8] sm:$0xc0]
    %v2136 = vld [vmem:[#allocation2 + $0x10] sm:$0x3]
    %v2137 = vld [vmem:[#allocation2 + $0x18] sm:$0x3]
    %v2138 = vld [vmem:[#allocation2] sm:$0x80]
    %v2139 = vld [vmem:[#allocation2 + $0x8] sm:$0x80]
    %v2140 = vld [vmem:[#allocation2 + $0x10] sm:$0x7]
    %v2141 = vld [vmem:[#allocation2 + $0x18] sm:$0x7]
    %v2142 = vld [vmem:[#allocation2 + $0x10] sm:$0xf]
    %v2143 = vld [vmem:[#allocation2 + $0x18] sm:$0xf]
    %v2148 = vrot.slane %v2138, 1
    %v2149 = vrot.slane %v2140, 1
    %v2150 = vsel %vm1919, %v2148, %v2149
    %v2151 = vrot.slane %v2139, 1
    %v2152 = vrot.slane %v2141, 1
    %v2153 = vsel %vm1919, %v2151, %v2152
    %v2160 = vrot.slane %v2142, 2
    %v2161 = vrot.slane %v2143, 2
    %v2164 = vpack.c.bf16 %v2136, %v2134
    %v2165 = vpack.c.bf16 %v2137, %v2135
    %v2166 = vpack.c.bf16 %v2149, %v2150
    %v2167 = vpack.c.bf16 %v2152, %v2153
    %v2168 = vpack.c.bf16 %v2160, %v2160
    %v2169 = vpack.c.bf16 %v2161, %v2161
    %v2170 = vld [vmem:[%s4] sm:$0x1]
    %v2172 = vperm.slane %v2170, 0
    %v2180 = vrot.slane %v2164, 3
    %v2181 = vrot.slane %v2165, 3
    %v2182 = vrot.slane %v2166, 3
    %v2183 = vrot.slane %v2167, 3
    %v2184 = vrot.slane %v2168, 3
    %v2185 = vrot.slane %v2169, 3
    %2192 = vmatpush.bf16.msra.mxu0 %v1243
    %2193 = vmatpush.bf16.msra.mxu0 %v1242
    %2194 = vmatpush.bf16.msra.mxu0 %v1241
    %2195 = vmatpush.bf16.msra.mxu0 %v1240
    %2196 = vmatpush.bf16.msra.mxu0 %v1239
    %2197 = vmatpush.bf16.msra.mxu0 %v1238
    %2198 = vmatpush.bf16.msra.mxu0 %v1237
    %2199 = vmatpush.bf16.msra.mxu0 %v1236
    %2200 = vmatmul.bf16.gmra.mxu0 %v2180
    %v2201 = vpop.f32.mrf.mxu0
    %v2202 = vadd.f32 %v2172, %v2201
    %v2203 = vpop.f32.mrf.mxu0
    %2204 = vdwg.mxu0
    %2205 = vmatpush.bf16.msra.mxu0 %v1251
    %2206 = vmatpush.bf16.msra.mxu0 %v1250
    %2207 = vmatpush.bf16.msra.mxu0 %v1249
    %2208 = vmatpush.bf16.msra.mxu0 %v1248
    %2209 = vmatpush.bf16.msra.mxu0 %v1247
    %2210 = vmatpush.bf16.msra.mxu0 %v1246
    %2211 = vmatpush.bf16.msra.mxu0 %v1245
    %2212 = vmatpush.bf16.msra.mxu0 %v1244
    %2213 = vmatmul.bf16.gmra.mxu0 %v2181
    %v2214 = vpop.f32.mrf.mxu0
    %v2215 = vadd.f32 %v2202, %v2214
    %v2216 = vpop.f32.mrf.mxu0
    %2217 = vdwg.mxu0
    %2218 = vmatpush.bf16.msra.mxu0 %v1259
    %2219 = vmatpush.bf16.msra.mxu0 %v1258
    %2220 = vmatpush.bf16.msra.mxu0 %v1257
    %2221 = vmatpush.bf16.msra.mxu0 %v1256
    %2222 = vmatpush.bf16.msra.mxu0 %v1255
    %2223 = vmatpush.bf16.msra.mxu0 %v1254
    %2224 = vmatpush.bf16.msra.mxu0 %v1253
    %2225 = vmatpush.bf16.msra.mxu0 %v1252
    %2226 = vmatmul.bf16.gmra.mxu0 %v2182
    %v2227 = vpop.f32.mrf.mxu0
    %v2228 = vadd.f32 %v2215, %v2227
    %v2229 = vpop.f32.mrf.mxu0
    %2230 = vdwg.mxu0
    %2231 = vmatpush.bf16.msra.mxu0 %v1267
    %2232 = vmatpush.bf16.msra.mxu0 %v1266
    %2233 = vmatpush.bf16.msra.mxu0 %v1265
    %2234 = vmatpush.bf16.msra.mxu0 %v1264
    %2235 = vmatpush.bf16.msra.mxu0 %v1263
    %2236 = vmatpush.bf16.msra.mxu0 %v1262
    %2237 = vmatpush.bf16.msra.mxu0 %v1261
    %2238 = vmatpush.bf16.msra.mxu0 %v1260
    %2239 = vmatmul.bf16.gmra.mxu0 %v2183
    %v2240 = vpop.f32.mrf.mxu0
    %v2241 = vadd.f32 %v2228, %v2240
    %v2242 = vpop.f32.mrf.mxu0
    %2243 = vdwg.mxu0
    %2244 = vmatpush.bf16.msra.mxu0 %v1275
    %2245 = vmatpush.bf16.msra.mxu0 %v1274
    %2246 = vmatpush.bf16.msra.mxu0 %v1273
    %2247 = vmatpush.bf16.msra.mxu0 %v1272
    %2248 = vmatpush.bf16.msra.mxu0 %v1271
    %2249 = vmatpush.bf16.msra.mxu0 %v1270
    %2250 = vmatpush.bf16.msra.mxu0 %v1269
    %2251 = vmatpush.bf16.msra.mxu0 %v1268
    %2252 = vmatmul.bf16.gmra.mxu0 %v2184
    %v2253 = vpop.f32.mrf.mxu0
    %v2254 = vadd.f32 %v2241, %v2253
    %v2255 = vpop.f32.mrf.mxu0
    %2256 = vdwg.mxu0
    %2257 = vmatpush.bf16.msra.mxu0 %v1283
    %2258 = vmatpush.bf16.msra.mxu0 %v1282
    %2259 = vmatpush.bf16.msra.mxu0 %v1281
    %2260 = vmatpush.bf16.msra.mxu0 %v1280
    %2261 = vmatpush.bf16.msra.mxu0 %v1279
    %2262 = vmatpush.bf16.msra.mxu0 %v1278
    %2263 = vmatpush.bf16.msra.mxu0 %v1277
    %2264 = vmatpush.bf16.msra.mxu0 %v1276
    %2265 = vmatmul.bf16.gmra.mxu0 %v2185
    %v2266 = vpop.f32.mrf.mxu0
    %v2267 = vadd.f32 %v2254, %v2266
    %v2268 = vpop.f32.mrf.mxu0
    %2269 = vdwg.mxu0
    %v2270 = vmax.f32 %v2267, 0.0
    %2271 = vst [vmem:[#allocation3 + $0x7] sm:$0xf] %v2270
    %v2272 = vld [vmem:[#allocation3 + $0x6] sm:$0xf]
    %v2273 = vld [vmem:[#allocation3 + $0x7] sm:$0xf]
    %v2274 = vld [vmem:[#allocation3 + $0x8] sm:$0xf]
    %v2275 = vpack.c.bf16 %v2272, %v2272
    %v2276 = vpack.c.bf16 %v2273, %v2273
    %v2277 = vpack.c.bf16 %v2274, %v2274
    %v2278 = vld [vmem:[%s6] sm:$0x1]
    %v2280 = vperm.slane %v2278, 0
    %2282 = vmatpush.bf16.msra.mxu0 %v1525
    %2283 = vmatpush.bf16.msra.mxu0 %v1524
    %2284 = vmatpush.bf16.msra.mxu0 %v1523
    %2285 = vmatpush.bf16.msra.mxu0 %v1522
    %2286 = vmatpush.bf16.msra.mxu0 %v1521
    %2287 = vmatpush.bf16.msra.mxu0 %v1520
    %2288 = vmatpush.bf16.msra.mxu0 %v1519
    %2289 = vmatpush.bf16.msra.mxu0 %v1518
    %2290 = vmatmul.bf16.gmra.mxu0 %v2275
    %v2291 = vpop.f32.mrf.mxu0
    %v2292 = vadd.f32 %v2280, %v2291
    %v2293 = vpop.f32.mrf.mxu0
    %2294 = vdwg.mxu0
    %2295 = vmatpush.bf16.msra.mxu0 %v1533
    %2296 = vmatpush.bf16.msra.mxu0 %v1532
    %2297 = vmatpush.bf16.msra.mxu0 %v1531
    %2298 = vmatpush.bf16.msra.mxu0 %v1530
    %2299 = vmatpush.bf16.msra.mxu0 %v1529
    %2300 = vmatpush.bf16.msra.mxu0 %v1528
    %2301 = vmatpush.bf16.msra.mxu0 %v1527
    %2302 = vmatpush.bf16.msra.mxu0 %v1526
    %2303 = vmatmul.bf16.gmra.mxu0 %v2276
    %v2304 = vpop.f32.mrf.mxu0
    %v2305 = vadd.f32 %v2292, %v2304
    %v2306 = vpop.f32.mrf.mxu0
    %2307 = vdwg.mxu0
    %2308 = vmatpush.bf16.msra.mxu0 %v1541
    %2309 = vmatpush.bf16.msra.mxu0 %v1540
    %2310 = vmatpush.bf16.msra.mxu0 %v1539
    %2311 = vmatpush.bf16.msra.mxu0 %v1538
    %2312 = vmatpush.bf16.msra.mxu0 %v1537
    %2313 = vmatpush.bf16.msra.mxu0 %v1536
    %2314 = vmatpush.bf16.msra.mxu0 %v1535
    %2315 = vmatpush.bf16.msra.mxu0 %v1534
    %2316 = vmatmul.bf16.gmra.mxu0 %v2277
    %v2317 = vpop.f32.mrf.mxu0
    %v2318 = vadd.f32 %v2305, %v2317
    %v2319 = vpop.f32.mrf.mxu0
    %2320 = vdwg.mxu0
    %v2321 = vld [vmem:[%s8] sm:$0x1]
    %v2323 = vperm.slane %v2321, 0
    %2325 = vmatpush.bf16.msra.mxu0 %v1712
    %2326 = vmatpush.bf16.msra.mxu0 %v1711
    %2327 = vmatpush.bf16.msra.mxu0 %v1710
    %2328 = vmatpush.bf16.msra.mxu0 %v1709
    %2329 = vmatpush.bf16.msra.mxu0 %v1708
    %2330 = vmatpush.bf16.msra.mxu0 %v1707
    %2331 = vmatpush.bf16.msra.mxu0 %v1706
    %2332 = vmatpush.bf16.msra.mxu0 %v1705
    %2333 = vmatmul.bf16.gmra.mxu0 %v2275
    %v2334 = vpop.f32.mrf.mxu0
    %v2335 = vadd.f32 %v2323, %v2334
    %v2336 = vpop.f32.mrf.mxu0
    %2337 = vdwg.mxu0
    %2338 = vmatpush.bf16.msra.mxu0 %v1720
    %2339 = vmatpush.bf16.msra.mxu0 %v1719
    %2340 = vmatpush.bf16.msra.mxu0 %v1718
    %2341 = vmatpush.bf16.msra.mxu0 %v1717
    %2342 = vmatpush.bf16.msra.mxu0 %v1716
    %2343 = vmatpush.bf16.msra.mxu0 %v1715
    %2344 = vmatpush.bf16.msra.mxu0 %v1714
    %2345 = vmatpush.bf16.msra.mxu0 %v1713
    %2346 = vmatmul.bf16.gmra.mxu0 %v2276
    %v2347 = vpop.f32.mrf.mxu0
    %v2348 = vadd.f32 %v2335, %v2347
    %v2349 = vpop.f32.mrf.mxu0
    %2350 = vdwg.mxu0
    %2351 = vmatpush.bf16.msra.mxu0 %v1728
    %2352 = vmatpush.bf16.msra.mxu0 %v1727
    %2353 = vmatpush.bf16.msra.mxu0 %v1726
    %2354 = vmatpush.bf16.msra.mxu0 %v1725
    %2355 = vmatpush.bf16.msra.mxu0 %v1724
    %2356 = vmatpush.bf16.msra.mxu0 %v1723
    %2357 = vmatpush.bf16.msra.mxu0 %v1722
    %2358 = vmatpush.bf16.msra.mxu0 %v1721
    %2359 = vmatmul.bf16.gmra.mxu0 %v2277
    %v2360 = vpop.f32.mrf.mxu0
    %v2361 = vadd.f32 %v2348, %v2360
    %v2362 = vpop.f32.mrf.mxu0
    %2363 = vdwg.mxu0
    %v2364 = vsel %vm1792, %v2318, -inf
    %2365 = vmax.xlane.f32.xlu0 %v2364
    %v2366 = vpop.xlane.xlu0 %2365
    %v2367 = vsel %vm1796, %v2366, -inf
    %v2368 = vrot.slane %v2367, 4
    %v2369 = vmax.f32 %v2367, %v2368
    %v2370 = vrot.slane %v2369, 2
    %v2371 = vmax.f32 %v2369, %v2370
    %v2372 = vrot.slane %v2371, 1
    %v2373 = vmax.f32 %v2371, %v2372
    %v2374 = vsub.f32 %v2318, %v2373
    %v2375 = vmul.f32 %v2374, 1.442695
    %v2376 = vpow.pop %v2375
    %v2377 = vsel %vm1792, %v2376, 0.0
    %2378 = vadd.xlane.f32.xlu0 %v2377
    %v2379 = vpop.xlane.xlu0 %2378
    %v2380 = vsel %vm1796, %v2379, 0.0
    %v2381 = vrot.slane %v2380, 4
    %v2382 = vadd.f32 %v2380, %v2381
    %v2383 = vrot.slane %v2382, 2
    %v2384 = vadd.f32 %v2382, %v2383
    %v2385 = vrot.slane %v2384, 1
    %v2386 = vadd.f32 %v2384, %v2385
    %v2387 = vrcp.pop %v2386
    %v2388 = vmul.f32 %v2376, %v2387
    %v2389 = vsel %vm1792, %v2361, -inf
    %2390 = vmax.xlane.f32.xlu0 %v2389
    %v2391 = vpop.xlane.xlu0 %2390
    %v2392 = vsel %vm1796, %v2391, -inf
    %v2393 = vrot.slane %v2392, 4
    %v2394 = vmax.f32 %v2392, %v2393
    %v2395 = vrot.slane %v2394, 2
    %v2396 = vmax.f32 %v2394, %v2395
    %v2397 = vrot.slane %v2396, 1
    %v2398 = vmax.f32 %v2396, %v2397
    %v2399 = vsub.f32 %v2361, %v2398
    %v2400 = vmul.f32 %v2399, 1.442695
    %v2401 = vpow.pop %v2400
    %v2402 = vsel %vm1792, %v2401, 0.0
    %2403 = vadd.xlane.f32.xlu0 %v2402
    %v2404 = vpop.xlane.xlu0 %2403
    %v2405 = vsel %vm1796, %v2404, 0.0
    %v2406 = vrot.slane %v2405, 4
    %v2407 = vadd.f32 %v2405, %v2406
    %v2408 = vrot.slane %v2407, 2
    %v2409 = vadd.f32 %v2407, %v2408
    %v2410 = vrot.slane %v2409, 1
    %v2411 = vadd.f32 %v2409, %v2410
    %v2412 = vrcp.pop %v2411
    %v2413 = vmul.f32 %v2401, %v2412
    %s2414 = scalar_lea.vmem [#allocation6], 8
    %2415 = vst.msk [vmem:[%s2414] sm:$0xf] %vm1792, %v2388
    %s2416 = scalar_lea.vmem [#allocation6], 12
    %2417 = vst.msk [vmem:[%s2416] sm:$0xf] %vm1792, %v2413
    %v2418 = vmul.f32 %v2388, %v43
    %v2419 = vsel %vm1792, %v2418, 0.0
    %2420 = vadd.xlane.f32.xlu0 %v2419
    %v2421 = vpop.xlane.xlu0 %2420
    %v2422 = vsel %vm1796, %v2421, 0.0
    %v2423 = vrot.slane %v2422, 4
    %v2424 = vadd.f32 %v2422, %v2423
    %v2425 = vrot.slane %v2424, 2
    %v2426 = vadd.f32 %v2424, %v2425
    %v2427 = vrot.slane %v2426, 1
    %v2428 = vadd.f32 %v2426, %v2427
    %v2429 = vmul.f32 %v2388, %v45
    %v2430 = vsel %vm1792, %v2429, 0.0
    %2431 = vadd.xlane.f32.xlu0 %v2430
    %v2432 = vpop.xlane.xlu0 %2431
    %v2433 = vsel %vm1796, %v2432, 0.0
    %v2434 = vrot.slane %v2433, 4
    %v2435 = vadd.f32 %v2433, %v2434
    %v2436 = vrot.slane %v2435, 2
    %v2437 = vadd.f32 %v2435, %v2436
    %v2438 = vrot.slane %v2437, 1
    %v2439 = vadd.f32 %v2437, %v2438
    %v2440 = vmul.f32 %v2413, %v43
    %v2441 = vsel %vm1792, %v2440, 0.0
    %2442 = vadd.xlane.f32.xlu0 %v2441
    %v2443 = vpop.xlane.xlu0 %2442
    %v2444 = vsel %vm1796, %v2443, 0.0
    %v2445 = vrot.slane %v2444, 4
    %v2446 = vadd.f32 %v2444, %v2445
    %v2447 = vrot.slane %v2446, 2
    %v2448 = vadd.f32 %v2446, %v2447
    %v2449 = vrot.slane %v2448, 1
    %v2450 = vadd.f32 %v2448, %v2449
    %v2451 = vmul.f32 %v2413, %v45
    %v2452 = vsel %vm1792, %v2451, 0.0
    %2453 = vadd.xlane.f32.xlu0 %v2452
    %v2454 = vpop.xlane.xlu0 %2453
    %v2455 = vsel %vm1796, %v2454, 0.0
    %v2456 = vrot.slane %v2455, 4
    %v2457 = vadd.f32 %v2455, %v2456
    %v2458 = vrot.slane %v2457, 2
    %v2459 = vadd.f32 %v2457, %v2458
    %v2460 = vrot.slane %v2459, 1
    %v2461 = vadd.f32 %v2459, %v2460
    %v2462 = vadd.f32 %v2428, %v2450
    %v2463 = vmul.f32 %v2462, 0.5
    %v2464 = vadd.f32 %v2439, %v2461
    %v2465 = vmul.f32 %v2464, 0.5
    %v2466 = vsub.f32 %v2450, %v2428
    %v2467 = vsub.f32 %v2461, %v2439
    %v2468 = vsel %vm1897, %v2463, %v2465
    %v2469 = vsel %vm1899, %v2468, %v2466
    %v2470 = vsel %vm1901, %v2469, %v2467
    %2471 = vst.msk [vmem:[#allocation4 + $0x1] sm:$0x1] %vm1903, %v2470
    // Predicated region
    $region38: #{_ceutrack_forward_jit.3} parent=1 // pred_check
      _
    $region39: #{_ceutrack_forward_jit.3} parent=1 // pred_check_branch
      %2473 = sbr.rel (0) target = $region41
    $region40: #{_ceutrack_forward_jit.3} parent=1 // pred_region
      %2475 = vsyncadd [#allocation5], 0
      %s2477 = sshll.u32 [#allocation4], 4
      %s2478 = int_to_ptr.vmem [resolvable:$true] %s2477
      %s2479 = sshll.u32 %s9, 4
      %s2480 = int_to_ptr.hbm [resolvable:$true] %s2479
      %2482 = dma.vmem_to_hbm [thread:$0]  %s2478, 32, %s2480, [#allocation5]
    $region41: #{_ceutrack_forward_jit.3} parent=1 // pred_fallthru
      _
    // Predicated region
    $region42: #{_ceutrack_forward_jit.3} parent=1 // pred_check
      _
    $region43: #{_ceutrack_forward_jit.3} parent=1 // pred_check_branch
      %2484 = sbr.rel (0) target = $region45
    $region44: #{_ceutrack_forward_jit.3} parent=1 // pred_region
      %2486 = vsyncadd [#allocation7], 0
      %s2487 = sshll.u32 [#allocation6], 4
      %s2488 = int_to_ptr.vmem [resolvable:$true] %s2487
      %s2489 = sshll.u32 %s10, 4
      %s2490 = int_to_ptr.hbm [resolvable:$true] %s2489
      %2495 = dma.vmem_to_hbm [thread:$0]  %s2488, 256, %s2490, [#allocation7], 64, 64, 4
    $region45: #{_ceutrack_forward_jit.3} parent=1 // pred_fallthru
      _
    // Predicated region
    $region46: #{_ceutrack_forward_jit.3} parent=1 // pred_check
      _
    $region47: #{_ceutrack_forward_jit.3} parent=1 // pred_check_branch
      %2497 = sbr.rel (0) target = $region49
    $region48: #{_ceutrack_forward_jit.3} parent=1 // pred_region
      %2499 = dma.done [#allocation5], 32
    $region49: #{_ceutrack_forward_jit.3} parent=1 // pred_fallthru
      _
    // Predicated region
    $region50: #{_ceutrack_forward_jit.3} parent=1 // pred_check
      _
    $region51: #{_ceutrack_forward_jit.3} parent=1 // pred_check_branch
      %2501 = sbr.rel (0) target = $region53
    $region52: #{_ceutrack_forward_jit.3} parent=1 // pred_region
      %2503 = dma.done [#allocation7], 256
    $region53: #{_ceutrack_forward_jit.3} parent=1 // pred_fallthru
      _
    %2504 = vsyncpa [#allocation5], 1
    %2505 = vsyncpa [#allocation7], 1

</llo_original>
